<compile_context>
chip_gen: v6e
topology: v6e:2x2x1
jax: 0.10.0
libtpu: 0.0.40
codegen_flags: <defaults>
</compile_context>

<pallas_src>
import functools

import jax
import jax.numpy as jnp
from jax.experimental import pallas as pl
from jax.experimental.pallas import tpu as pltpu

CFG = dict(
    gnn_hidden_dim=32,
    gnn_n_layers=2,
    n_relations=3,
    att_heads=4,
    RGT_semantic_heads=2,
    dropout=0.3,
    activation='leakyrelu',
    lm_dim=32,
    num_dim=8,
    cat_dim=8,
    sem_hidden=16,
)


# ----------------------------- fused kernel ---------------------------------


def _act(y, name):
    if name == 'leakyrelu':
        return jnp.where(y >= 0, y, 0.01 * y)
    if name == 'relu':
        return jnp.maximum(y, 0.0)
    if name == 'elu':
        return jnp.where(y >= 0, y, jnp.exp(y) - 1.0)
    return y


def _rgt_fused_kernel(feat_ref, adj_ref, narrow_ref, wide_ref, o_ref, *,
                      n_layers, n_relations, heads, hidden, sem_heads,
                      act_name):
    """Whole-model forward, fully VMEM resident, 4 input DMAs total."""
    f32, bf16 = jnp.float32, jnp.bfloat16
    R, H, D, Hs = n_relations, heads, hidden, sem_heads
    HD = H * D
    PT = R * HD                      # lane extent of each Q / K / V group
    N = feat_ref.shape[0]

    # ---- unpack narrow param slab with static offsets -----------------------
    narrow = narrow_ref[...]                                   # (rows, D) bf16
    cur = [0]

    def take(nrows):
        r0 = cur[0]
        cur[0] = r0 + nrows
        return narrow[r0:r0 + nrows, :]

    w_in = take(feat_ref.shape[1]); b_in = take(1)
    w_proj = take(D);               b_proj = take(1)
    layer_np = []
    for _ in range(n_layers):
        layer_np.append((take(D), take(D), take(1), take(D)))  # wu, w1, b1, w2
    w_pool = take(D); b_pool = take(1)
    w_out = take(D);  b_out = take(1)

    # ---- MLP front end: per-source linears fused as one block-diag matmul ---
    feat = feat_ref[...].astype(bf16)
    h0 = _act(jnp.dot(feat, w_in, preferred_element_type=f32) + b_in, act_name)
    x = _act(jnp.dot(h0.astype(bf16), w_proj, preferred_element_type=f32)
             + b_proj, act_name)

    # ---- layer-invariant attention structure (once, not per layer/head) -----
    adj_pages = [adj_ref[r] for r in range(R)]                    # (N, N) f32
    bias_pages = [jnp.where(a > 0.0, 0.0, -1e30) for a in adj_pages]
    adj_stack = jnp.stack([adj_pages[i // H] for i in range(R * H)], axis=0)
    bias_stack = jnp.stack([bias_pages[i // H] for i in range(R * H)], axis=0)

    # ---- RGT layers ----------------------------------------------------------
    for l in range(n_layers):
        wu, w_sem1, b_sem1, w_sem2 = layer_np[l]
        w_l = wide_ref[l * (D + 1):l * (D + 1) + D, :]            # (D, 1280)
        b_l = wide_ref[l * (D + 1) + D:l * (D + 1) + D + 1, :]    # (1, 1280)

        x_bf = x.astype(bf16)
        # one wide matmul: scaled-Q / K / V / skip for every relation + gate-x
        proj = jnp.dot(x_bf, w_l, preferred_element_type=f32) + b_l
        proj_bf = proj.astype(bf16)

        q_h = jnp.stack([proj_bf[:, i * D:(i + 1) * D]
                         for i in range(R * H)], axis=0)          # (RH, N, D)
        k_h = jnp.stack([proj_bf[:, PT + i * D:PT + (i + 1) * D]
                         for i in range(R * H)], axis=0)
        v_h = jnp.stack([proj_bf[:, 2 * PT + i * D:2 * PT + (i + 1) * D]
                         for i in range(R * H)], axis=0)

        # all relations x heads: two batched matmuls + one batched softmax
        s = jnp.einsum('bqd,bkd->bqk', q_h, k_h,
                       preferred_element_type=f32) + bias_stack   # (RH, N, N)
        s_max = jnp.max(s, axis=-1, keepdims=True)
        p = jnp.exp(s - s_max) * adj_stack       # repeated-edge multiplicity
        denom = jnp.sum(p, axis=-1, keepdims=True)
        p = p / jnp.maximum(denom, 1e-20)        # exact divide (review note)
        ctx = jnp.einsum('bqk,bkd->bqd', p.astype(bf16), v_h,
                         preferred_element_type=f32)              # (RH, N, D)

        # head average + root skip, relations stacked along sublanes (R*N, D)
        u_rs = []
        for r in range(R):
            head_sum = ctx[r * H]
            for hh in range(1, H):
                head_sum = head_sum + ctx[r * H + hh]
            skip_r = proj[:, 3 * PT + r * D:3 * PT + (r + 1) * D]
            u_rs.append(head_sum * (1.0 / H) + skip_r)
        u = jnp.concatenate(u_rs, axis=0)                         # (R*N, D)

        xwx = proj[:, 3 * PT + R * D:3 * PT + R * D + D]  # x@Wx + b_gate, hoisted
        xwx_s = jnp.concatenate([xwx] * R, axis=0)
        x_s = jnp.concatenate([x] * R, axis=0)

        # sigmoid-gated residual, all relations in one matmul
        pre = jnp.dot(u.astype(bf16), wu, preferred_element_type=f32) + xwx_s
        a = jax.nn.sigmoid(pre)
        g = jnp.tanh(u) * a + x_s * (1.0 - a)                     # (R*N, D)

        # semantic attention: both heads + all relations batched
        hr = jnp.tanh(jnp.dot(g.astype(bf16), w_sem1,
                              preferred_element_type=f32) + b_sem1)
        sr = jnp.dot(hr.astype(bf16), w_sem2, preferred_element_type=f32)

        sc = [jnp.mean(sr[r * N:(r + 1) * N], axis=0, keepdims=True)[:, :Hs]
              for r in range(R)]                                  # (1, Hs) each
        m = sc[0]
        for r in range(1, R):
            m = jnp.maximum(m, sc[r])
        exps = [jnp.exp(s_r - m) for s_r in sc]
        den = exps[0]
        for r in range(1, R):
            den = den + exps[r]
        out = jnp.zeros((N, D), f32)
        for r in range(R):
            coef = jnp.sum(exps[r] / den, axis=1, keepdims=True)  # (1, 1)
            out = out + g[r * N:(r + 1) * N] * coef
        x = _act(out * (1.0 / Hs), act_name)        # post-layer activation fused

    # ---- pool head + output head (dropout = identity in eval mode) ----------
    # TODO(synk): nn.Dropout training-mode RNG dropout not implemented (eval).
    x = _act(jnp.dot(x.astype(bf16), w_pool, preferred_element_type=f32)
             + b_pool, act_name)
    logits = jnp.dot(x.astype(bf16), w_out, preferred_element_type=f32) + b_out
    o_ref[...] = logits[:, :2]


# ----------------------------- glue / packing -------------------------------


def pack_params(params, cfg):
    """Pack ALL weights/biases into two contiguous bf16 slabs (runs host-side).

    narrow slab (rows, hid): w_in | b_in | w_proj | b_proj |
                             per layer: gate_wu | w_sem1 | b_sem1 | w_sem2(pad)
                             | w_pool | b_pool | w_out(pad) | b_out(pad)
    wide slab (L*(hid+1), 3*R*H*hid + R*hid + hid):
                             per layer: [scaled-Q | K | V | skip | gate_wx]
                             weights row-block then the matching bias row.
    """
    hid = cfg['gnn_hidden_dim']
    R = cfg['n_relations']
    Hs = cfg['RGT_semantic_heads']
    sh = cfg['sem_hidden']
    lm_d, num_d, cat_d = cfg['lm_dim'], cfg['num_dim'], cfg['cat_dim']
    scale = 1.0 / (hid ** 0.5)
    assert Hs * sh <= hid

    def pad_w(a):
        a = jnp.asarray(a, jnp.float32)
        if a.ndim == 1:
            a = a[None, :]
        if a.shape[1] < hid:
            a = jnp.pad(a, ((0, 0), (0, hid - a.shape[1])))
        return a

    mlp = params['mlp']
    (w_lm, b_lm) = mlp['lm']
    (w_num, b_num) = mlp['num']
    (w_cat, b_cat) = mlp['cat']
    o1, o2 = hid // 2, hid // 2 + hid // 4
    w_in = jnp.zeros((lm_d + num_d + cat_d, hid), jnp.float32)
    w_in = w_in.at[:lm_d, :o1].set(w_lm)
    w_in = w_in.at[lm_d:lm_d + num_d, o1:o2].set(w_num)
    w_in = w_in.at[lm_d + num_d:, o2:].set(w_cat)
    b_in = jnp.concatenate([b_lm, b_num, b_cat])
    w_proj, b_proj = mlp['proj']

    narrow = [pad_w(w_in), pad_w(b_in), pad_w(w_proj), pad_w(b_proj)]
    wide = []
    for lp in params['layers']:
        convs = lp['conv']
        w_big = jnp.concatenate(
            [scale * convs[r]['q'][0] for r in range(R)]
            + [convs[r]['k'][0] for r in range(R)]
            + [convs[r]['v'][0] for r in range(R)]
            + [convs[r]['skip'][0] for r in range(R)]
            + [lp['gate_wx']], axis=1)
        b_big = jnp.concatenate(
            [scale * convs[r]['q'][1] for r in range(R)]
            + [convs[r]['k'][1] for r in range(R)]
            + [convs[r]['v'][1] for r in range(R)]
            + [convs[r]['skip'][1] for r in range(R)]
            + [lp['gate_b']])[None, :]
        wide += [w_big, b_big]

        heads = lp['sem']['heads']
        w_sem1 = jnp.concatenate([h['w1'] for h in heads], axis=1)
        b_sem1 = jnp.concatenate([h['b1'] for h in heads])
        w_sem2 = jnp.zeros((Hs * sh, Hs), jnp.float32)         # block-diagonal
        for i, h in enumerate(heads):
            w_sem2 = w_sem2.at[i * sh:(i + 1) * sh, i].set(h['w2'][:, 0])
        narrow += [pad_w(lp['gate_wu']), pad_w(w_sem1),
                   pad_w(b_sem1), pad_w(w_sem2)]

    narrow += [pad_w(params['pool'][0]), pad_w(params['pool'][1]),
               pad_w(params['out'][0]), pad_w(params['out'][1])]

    narrow_slab = jnp.concatenate(narrow, axis=0).astype(jnp.bfloat16)
    wide_slab = jnp.concatenate(wide, axis=0).astype(jnp.bfloat16)
    return narrow_slab, wide_slab


def rgt_forward(params, lm, num, cat, adj, cfg):
    """adj: (R, N, N) float32 edge-multiplicity tensor."""
    feat = jnp.concatenate([lm, num, cat], axis=1)
    narrow, wide = pack_params(params, cfg)
    N = feat.shape[0]

    kernel = functools.partial(
        _rgt_fused_kernel,
        n_layers=cfg['gnn_n_layers'],
        n_relations=cfg['n_relations'],
        heads=cfg['att_heads'],
        hidden=cfg['gnn_hidden_dim'],
        sem_heads=cfg['RGT_semantic_heads'],
        act_name=cfg['activation'].lower(),
    )
    vmem = pl.BlockSpec(memory_space=pltpu.MemorySpace.VMEM)
    return pl.pallas_call(
        kernel,
        in_specs=[vmem, vmem, vmem, vmem],
        out_specs=vmem,
        out_shape=jax.ShapeDtypeStruct((N, 2), jnp.float32),
    )(feat, adj, narrow, wide)


# ----------------------------- params ----------------------------------------


def init_params(key, cfg):
    hid = cfg['gnn_hidden_dim']
    H = cfg['att_heads']
    R = cfg['n_relations']
    Hs = cfg['RGT_semantic_heads']
    sh = cfg['sem_hidden']
    keys = iter(jax.random.split(key, 512))

    def lin(fan_in, fan_out):
        k1, k2 = jax.random.split(next(keys))
        bound = 1.0 / (fan_in ** 0.5)
        w = jax.random.uniform(k1, (fan_in, fan_out), jnp.float32, -bound, bound)
        b = jax.random.uniform(k2, (fan_out,), jnp.float32, -bound, bound)
        return w, b

    params = {}
    params['mlp'] = dict(lm=lin(cfg['lm_dim'], hid // 2),
                         num=lin(cfg['num_dim'], hid // 4),
                         cat=lin(cfg['cat_dim'], hid // 4),
                         proj=lin(hid, hid))
    layers = []
    for _ in range(cfg['gnn_n_layers']):
        convs = []
        for _r in range(R):
            convs.append(dict(q=lin(hid, H * hid), k=lin(hid, H * hid),
                              v=lin(hid, H * hid), skip=lin(hid, hid)))
        gw, gb = lin(2 * hid, hid)           # gate on cat([u, x])
        sem_heads = []
        for _s in range(Hs):
            w1, b1 = lin(hid, sh)
            w2, _ = lin(sh, 1)               # no bias in original
            sem_heads.append(dict(w1=w1, b1=b1, w2=w2))
        layers.append(dict(conv=convs,
                           gate_wu=gw[:hid], gate_wx=gw[hid:], gate_b=gb,
                           sem=dict(heads=sem_heads)))
    params['layers'] = layers
    params['pool'] = lin(hid, hid)
    params['out'] = lin(hid, 2)
    return params


# ----------------------------- main ------------------------------------------


if __name__ == "__main__":
    cfg = CFG
    key = jax.random.PRNGKey(0)
    k1, k2, k3, k4, k5, kp = jax.random.split(key, 6)

    N, E = 16, 48
    lm = jax.random.normal(k1, (N, cfg['lm_dim']), jnp.float32)
    num = jax.random.normal(k2, (N, cfg['num_dim']), jnp.float32)
    cat = jax.random.normal(k3, (N, cfg['cat_dim']), jnp.float32)
    edge_index = jax.random.randint(k4, (2, E), 0, N)
    edge_type = jax.random.randint(k5, (E,), 0, cfg['n_relations'])

    params = init_params(kp, cfg)

    # prepare_data_for_RGT: split edges by relation, densify to (R,N,N) counts.
    src, dst = edge_index[0], edge_index[1]
    adj = jnp.zeros((cfg['n_relations'], N, N), jnp.float32)
    adj = adj.at[edge_type, dst, src].add(1.0)

    fwd = jax.jit(functools.partial(rgt_forward, cfg=cfg))
    out = jax.block_until_ready(fwd(params, lm, num, cat, adj))
    assert out.shape == (N, 2) and out.dtype == jnp.float32
    print("KERNEL_OK")
</pallas_src>

<mosaic_0001>
module attributes {stable_mosaic.version = 11 : i64} {
  func.func @_rgt_fused_kernel(%arg0: memref<16x48xf32, #tpu.memory_space<vmem>>, %arg1: memref<3x16x16xf32, #tpu.memory_space<vmem>>, %arg2: memref<342x32xbf16, #tpu.memory_space<vmem>>, %arg3: memref<66x1280xbf16, #tpu.memory_space<vmem>>, %arg4: memref<16x2xf32, #tpu.memory_space<vmem>>) attributes {dimension_semantics = [], scalar_prefetch = 0 : i64, scratch_operands = 0 : i64, tpu.core_type = #tpu.core_type<tc>} {
    %c0 = arith.constant 0 : index
    %c0_0 = arith.constant 0 : index
    %0 = vector.load %arg2[%c0, %c0_0] : memref<342x32xbf16, #tpu.memory_space<vmem>>, vector<342x32xbf16>
    %1 = vector.extract_strided_slice %0 {offsets = [0, 0], sizes = [48, 32], strides = [1, 1]} : vector<342x32xbf16> to vector<48x32xbf16>
    %2 = vector.extract_strided_slice %0 {offsets = [48, 0], sizes = [1, 32], strides = [1, 1]} : vector<342x32xbf16> to vector<1x32xbf16>
    %3 = vector.extract_strided_slice %0 {offsets = [49, 0], sizes = [32, 32], strides = [1, 1]} : vector<342x32xbf16> to vector<32x32xbf16>
    %4 = vector.extract_strided_slice %0 {offsets = [81, 0], sizes = [1, 32], strides = [1, 1]} : vector<342x32xbf16> to vector<1x32xbf16>
    %5 = vector.extract_strided_slice %0 {offsets = [82, 0], sizes = [32, 32], strides = [1, 1]} : vector<342x32xbf16> to vector<32x32xbf16>
    %6 = vector.extract_strided_slice %0 {offsets = [114, 0], sizes = [32, 32], strides = [1, 1]} : vector<342x32xbf16> to vector<32x32xbf16>
    %7 = vector.extract_strided_slice %0 {offsets = [146, 0], sizes = [1, 32], strides = [1, 1]} : vector<342x32xbf16> to vector<1x32xbf16>
    %8 = vector.extract_strided_slice %0 {offsets = [147, 0], sizes = [32, 32], strides = [1, 1]} : vector<342x32xbf16> to vector<32x32xbf16>
    %9 = vector.extract_strided_slice %0 {offsets = [179, 0], sizes = [32, 32], strides = [1, 1]} : vector<342x32xbf16> to vector<32x32xbf16>
    %10 = vector.extract_strided_slice %0 {offsets = [211, 0], sizes = [32, 32], strides = [1, 1]} : vector<342x32xbf16> to vector<32x32xbf16>
    %11 = vector.extract_strided_slice %0 {offsets = [243, 0], sizes = [1, 32], strides = [1, 1]} : vector<342x32xbf16> to vector<1x32xbf16>
    %12 = vector.extract_strided_slice %0 {offsets = [244, 0], sizes = [32, 32], strides = [1, 1]} : vector<342x32xbf16> to vector<32x32xbf16>
    %13 = vector.extract_strided_slice %0 {offsets = [276, 0], sizes = [32, 32], strides = [1, 1]} : vector<342x32xbf16> to vector<32x32xbf16>
    %14 = vector.extract_strided_slice %0 {offsets = [308, 0], sizes = [1, 32], strides = [1, 1]} : vector<342x32xbf16> to vector<1x32xbf16>
    %15 = vector.extract_strided_slice %0 {offsets = [309, 0], sizes = [32, 32], strides = [1, 1]} : vector<342x32xbf16> to vector<32x32xbf16>
    %16 = vector.extract_strided_slice %0 {offsets = [341, 0], sizes = [1, 32], strides = [1, 1]} : vector<342x32xbf16> to vector<1x32xbf16>
    %c0_1 = arith.constant 0 : index
    %c0_2 = arith.constant 0 : index
    %17 = vector.load %arg0[%c0_1, %c0_2] : memref<16x48xf32, #tpu.memory_space<vmem>>, vector<16x48xf32>
    %18 = arith.truncf %17 : vector<16x48xf32> to vector<16x48xbf16>
    %cst = arith.constant dense<0.000000e+00> : vector<16x32xf32>
    %19 = tpu.matmul %18, %1, %cst {dimension_numbers = #tpu.dot_dimension_numbers<[1], [0], [0], [1], [0, 0, 1, 1], [], []>} : vector<16x48xbf16>, vector<48x32xbf16>, vector<16x32xf32> -> vector<16x32xf32>
    %20 = arith.extf %2 : vector<1x32xbf16> to vector<1x32xf32>
    %21 = vector.broadcast %20 : vector<1x32xf32> to vector<16x32xf32>
    %22 = arith.addf %19, %21 : vector<16x32xf32>
    %cst_3 = arith.constant 0.000000e+00 : f32
    %23 = vector.broadcast %cst_3 : f32 to vector<16x32xf32>
    %24 = arith.cmpf oge, %22, %23 : vector<16x32xf32>
    %cst_4 = arith.constant 0.00999999977 : f32
    %25 = vector.broadcast %cst_4 : f32 to vector<16x32xf32>
    %26 = arith.mulf %25, %22 : vector<16x32xf32>
    %27 = arith.select %24, %22, %26 : vector<16x32xi1>, vector<16x32xf32>
    %28 = arith.truncf %27 : vector<16x32xf32> to vector<16x32xbf16>
    %cst_5 = arith.constant dense<0.000000e+00> : vector<16x32xf32>
    %29 = tpu.matmul %28, %3, %cst_5 {dimension_numbers = #tpu.dot_dimension_numbers<[1], [0], [0], [1], [0, 0, 1, 1], [], []>} : vector<16x32xbf16>, vector<32x32xbf16>, vector<16x32xf32> -> vector<16x32xf32>
    %30 = arith.extf %4 : vector<1x32xbf16> to vector<1x32xf32>
    %31 = vector.broadcast %30 : vector<1x32xf32> to vector<16x32xf32>
    %32 = arith.addf %29, %31 : vector<16x32xf32>
    %cst_6 = arith.constant 0.000000e+00 : f32
    %33 = vector.broadcast %cst_6 : f32 to vector<16x32xf32>
    %34 = arith.cmpf oge, %32, %33 : vector<16x32xf32>
    %cst_7 = arith.constant 0.00999999977 : f32
    %35 = vector.broadcast %cst_7 : f32 to vector<16x32xf32>
    %36 = arith.mulf %35, %32 : vector<16x32xf32>
    %37 = arith.select %34, %32, %36 : vector<16x32xi1>, vector<16x32xf32>
    %c0_8 = arith.constant 0 : index
    %c0_9 = arith.constant 0 : index
    %c0_10 = arith.constant 0 : index
    %38 = vector.load %arg1[%c0_8, %c0_9, %c0_10] : memref<3x16x16xf32, #tpu.memory_space<vmem>>, vector<1x16x16xf32>
    %39 = vector.shape_cast %38 : vector<1x16x16xf32> to vector<16x16xf32>
    %c1 = arith.constant 1 : index
    %c0_11 = arith.constant 0 : index
    %c0_12 = arith.constant 0 : index
    %40 = vector.load %arg1[%c1, %c0_11, %c0_12] : memref<3x16x16xf32, #tpu.memory_space<vmem>>, vector<1x16x16xf32>
    %41 = vector.shape_cast %40 : vector<1x16x16xf32> to vector<16x16xf32>
    %c2 = arith.constant 2 : index
    %c0_13 = arith.constant 0 : index
    %c0_14 = arith.constant 0 : index
    %42 = vector.load %arg1[%c2, %c0_13, %c0_14] : memref<3x16x16xf32, #tpu.memory_space<vmem>>, vector<1x16x16xf32>
    %43 = vector.shape_cast %42 : vector<1x16x16xf32> to vector<16x16xf32>
    %cst_15 = arith.constant 0.000000e+00 : f32
    %44 = vector.broadcast %cst_15 : f32 to vector<16x16xf32>
    %45 = arith.cmpf ogt, %39, %44 : vector<16x16xf32>
    %cst_16 = arith.constant 0.000000e+00 : f32
    %cst_17 = arith.constant -1.000000e+30 : f32
    %46 = vector.broadcast %cst_16 : f32 to vector<16x16xf32>
    %47 = vector.broadcast %cst_17 : f32 to vector<16x16xf32>
    %48 = arith.select %45, %46, %47 : vector<16x16xi1>, vector<16x16xf32>
    %cst_18 = arith.constant 0.000000e+00 : f32
    %49 = vector.broadcast %cst_18 : f32 to vector<16x16xf32>
    %50 = arith.cmpf ogt, %41, %49 : vector<16x16xf32>
    %cst_19 = arith.constant 0.000000e+00 : f32
    %cst_20 = arith.constant -1.000000e+30 : f32
    %51 = vector.broadcast %cst_19 : f32 to vector<16x16xf32>
    %52 = vector.broadcast %cst_20 : f32 to vector<16x16xf32>
    %53 = arith.select %50, %51, %52 : vector<16x16xi1>, vector<16x16xf32>
    %cst_21 = arith.constant 0.000000e+00 : f32
    %54 = vector.broadcast %cst_21 : f32 to vector<16x16xf32>
    %55 = arith.cmpf ogt, %43, %54 : vector<16x16xf32>
    %cst_22 = arith.constant 0.000000e+00 : f32
    %cst_23 = arith.constant -1.000000e+30 : f32
    %56 = vector.broadcast %cst_22 : f32 to vector<16x16xf32>
    %57 = vector.broadcast %cst_23 : f32 to vector<16x16xf32>
    %58 = arith.select %55, %56, %57 : vector<16x16xi1>, vector<16x16xf32>
    %59 = vector.shape_cast %39 : vector<16x16xf32> to vector<1x16x16xf32>
    %60 = vector.shape_cast %39 : vector<16x16xf32> to vector<1x16x16xf32>
    %61 = vector.shape_cast %39 : vector<16x16xf32> to vector<1x16x16xf32>
    %62 = vector.shape_cast %39 : vector<16x16xf32> to vector<1x16x16xf32>
    %63 = vector.shape_cast %41 : vector<16x16xf32> to vector<1x16x16xf32>
    %64 = vector.shape_cast %41 : vector<16x16xf32> to vector<1x16x16xf32>
    %65 = vector.shape_cast %41 : vector<16x16xf32> to vector<1x16x16xf32>
    %66 = vector.shape_cast %41 : vector<16x16xf32> to vector<1x16x16xf32>
    %67 = vector.shape_cast %43 : vector<16x16xf32> to vector<1x16x16xf32>
    %68 = vector.shape_cast %43 : vector<16x16xf32> to vector<1x16x16xf32>
    %69 = vector.shape_cast %43 : vector<16x16xf32> to vector<1x16x16xf32>
    %70 = vector.shape_cast %43 : vector<16x16xf32> to vector<1x16x16xf32>
    %71 = tpu.concatenate %59, %60, %61, %62, %63, %64, %65, %66, %67, %68, %69, %70 in 0 : vector<1x16x16xf32>, vector<1x16x16xf32>, vector<1x16x16xf32>, vector<1x16x16xf32>, vector<1x16x16xf32>, vector<1x16x16xf32>, vector<1x16x16xf32>, vector<1x16x16xf32>, vector<1x16x16xf32>, vector<1x16x16xf32>, vector<1x16x16xf32>, vector<1x16x16xf32> -> vector<12x16x16xf32>
    %72 = vector.shape_cast %48 : vector<16x16xf32> to vector<1x16x16xf32>
    %73 = vector.shape_cast %48 : vector<16x16xf32> to vector<1x16x16xf32>
    %74 = vector.shape_cast %48 : vector<16x16xf32> to vector<1x16x16xf32>
    %75 = vector.shape_cast %48 : vector<16x16xf32> to vector<1x16x16xf32>
    %76 = vector.shape_cast %53 : vector<16x16xf32> to vector<1x16x16xf32>
    %77 = vector.shape_cast %53 : vector<16x16xf32> to vector<1x16x16xf32>
    %78 = vector.shape_cast %53 : vector<16x16xf32> to vector<1x16x16xf32>
    %79 = vector.shape_cast %53 : vector<16x16xf32> to vector<1x16x16xf32>
    %80 = vector.shape_cast %58 : vector<16x16xf32> to vector<1x16x16xf32>
    %81 = vector.shape_cast %58 : vector<16x16xf32> to vector<1x16x16xf32>
    %82 = vector.shape_cast %58 : vector<16x16xf32> to vector<1x16x16xf32>
    %83 = vector.shape_cast %58 : vector<16x16xf32> to vector<1x16x16xf32>
    %84 = tpu.concatenate %72, %73, %74, %75, %76, %77, %78, %79, %80, %81, %82, %83 in 0 : vector<1x16x16xf32>, vector<1x16x16xf32>, vector<1x16x16xf32>, vector<1x16x16xf32>, vector<1x16x16xf32>, vector<1x16x16xf32>, vector<1x16x16xf32>, vector<1x16x16xf32>, vector<1x16x16xf32>, vector<1x16x16xf32>, vector<1x16x16xf32>, vector<1x16x16xf32> -> vector<12x16x16xf32>
    %c0_24 = arith.constant 0 : index
    %c0_25 = arith.constant 0 : index
    %85 = vector.load %arg3[%c0_24, %c0_25] : memref<66x1280xbf16, #tpu.memory_space<vmem>>, vector<32x1280xbf16>
    %c32 = arith.constant 32 : index
    %c0_26 = arith.constant 0 : index
    %86 = vector.load %arg3[%c32, %c0_26] : memref<66x1280xbf16, #tpu.memory_space<vmem>>, vector<1x1280xbf16>
    %87 = arith.truncf %37 : vector<16x32xf32> to vector<16x32xbf16>
    %cst_27 = arith.constant dense<0.000000e+00> : vector<16x1280xf32>
    %88 = tpu.matmul %87, %85, %cst_27 {dimension_numbers = #tpu.dot_dimension_numbers<[1], [0], [0], [1], [0, 0, 1, 1], [], []>} : vector<16x32xbf16>, vector<32x1280xbf16>, vector<16x1280xf32> -> vector<16x1280xf32>
    %89 = arith.extf %86 : vector<1x1280xbf16> to vector<1x1280xf32>
    %90 = vector.broadcast %89 : vector<1x1280xf32> to vector<16x1280xf32>
    %91 = arith.addf %88, %90 : vector<16x1280xf32>
    %92 = arith.truncf %91 : vector<16x1280xf32> to vector<16x1280xbf16>
    %93 = vector.extract_strided_slice %92 {offsets = [0, 0], sizes = [16, 32], strides = [1, 1]} : vector<16x1280xbf16> to vector<16x32xbf16>
    %94 = vector.extract_strided_slice %92 {offsets = [0, 32], sizes = [16, 32], strides = [1, 1]} : vector<16x1280xbf16> to vector<16x32xbf16>
    %95 = vector.extract_strided_slice %92 {offsets = [0, 64], sizes = [16, 32], strides = [1, 1]} : vector<16x1280xbf16> to vector<16x32xbf16>
    %96 = vector.extract_strided_slice %92 {offsets = [0, 96], sizes = [16, 32], strides = [1, 1]} : vector<16x1280xbf16> to vector<16x32xbf16>
    %97 = vector.extract_strided_slice %92 {offsets = [0, 128], sizes = [16, 32], strides = [1, 1]} : vector<16x1280xbf16> to vector<16x32xbf16>
    %98 = vector.extract_strided_slice %92 {offsets = [0, 160], sizes = [16, 32], strides = [1, 1]} : vector<16x1280xbf16> to vector<16x32xbf16>
    %99 = vector.extract_strided_slice %92 {offsets = [0, 192], sizes = [16, 32], strides = [1, 1]} : vector<16x1280xbf16> to vector<16x32xbf16>
    %100 = vector.extract_strided_slice %92 {offsets = [0, 224], sizes = [16, 32], strides = [1, 1]} : vector<16x1280xbf16> to vector<16x32xbf16>
    %101 = vector.extract_strided_slice %92 {offsets = [0, 256], sizes = [16, 32], strides = [1, 1]} : vector<16x1280xbf16> to vector<16x32xbf16>
    %102 = vector.extract_strided_slice %92 {offsets = [0, 288], sizes = [16, 32], strides = [1, 1]} : vector<16x1280xbf16> to vector<16x32xbf16>
    %103 = vector.extract_strided_slice %92 {offsets = [0, 320], sizes = [16, 32], strides = [1, 1]} : vector<16x1280xbf16> to vector<16x32xbf16>
    %104 = vector.extract_strided_slice %92 {offsets = [0, 352], sizes = [16, 32], strides = [1, 1]} : vector<16x1280xbf16> to vector<16x32xbf16>
    %105 = vector.shape_cast %93 : vector<16x32xbf16> to vector<1x16x32xbf16>
    %106 = vector.shape_cast %94 : vector<16x32xbf16> to vector<1x16x32xbf16>
    %107 = vector.shape_cast %95 : vector<16x32xbf16> to vector<1x16x32xbf16>
    %108 = vector.shape_cast %96 : vector<16x32xbf16> to vector<1x16x32xbf16>
    %109 = vector.shape_cast %97 : vector<16x32xbf16> to vector<1x16x32xbf16>
    %110 = vector.shape_cast %98 : vector<16x32xbf16> to vector<1x16x32xbf16>
    %111 = vector.shape_cast %99 : vector<16x32xbf16> to vector<1x16x32xbf16>
    %112 = vector.shape_cast %100 : vector<16x32xbf16> to vector<1x16x32xbf16>
    %113 = vector.shape_cast %101 : vector<16x32xbf16> to vector<1x16x32xbf16>
    %114 = vector.shape_cast %102 : vector<16x32xbf16> to vector<1x16x32xbf16>
    %115 = vector.shape_cast %103 : vector<16x32xbf16> to vector<1x16x32xbf16>
    %116 = vector.shape_cast %104 : vector<16x32xbf16> to vector<1x16x32xbf16>
    %117 = tpu.concatenate %105, %106, %107, %108, %109, %110, %111, %112, %113, %114, %115, %116 in 0 : vector<1x16x32xbf16>, vector<1x16x32xbf16>, vector<1x16x32xbf16>, vector<1x16x32xbf16>, vector<1x16x32xbf16>, vector<1x16x32xbf16>, vector<1x16x32xbf16>, vector<1x16x32xbf16>, vector<1x16x32xbf16>, vector<1x16x32xbf16>, vector<1x16x32xbf16>, vector<1x16x32xbf16> -> vector<12x16x32xbf16>
    %118 = vector.extract_strided_slice %92 {offsets = [0, 384], sizes = [16, 32], strides = [1, 1]} : vector<16x1280xbf16> to vector<16x32xbf16>
    %119 = vector.extract_strided_slice %92 {offsets = [0, 416], sizes = [16, 32], strides = [1, 1]} : vector<16x1280xbf16> to vector<16x32xbf16>
    %120 = vector.extract_strided_slice %92 {offsets = [0, 448], sizes = [16, 32], strides = [1, 1]} : vector<16x1280xbf16> to vector<16x32xbf16>
    %121 = vector.extract_strided_slice %92 {offsets = [0, 480], sizes = [16, 32], strides = [1, 1]} : vector<16x1280xbf16> to vector<16x32xbf16>
    %122 = vector.extract_strided_slice %92 {offsets = [0, 512], sizes = [16, 32], strides = [1, 1]} : vector<16x1280xbf16> to vector<16x32xbf16>
    %123 = vector.extract_strided_slice %92 {offsets = [0, 544], sizes = [16, 32], strides = [1, 1]} : vector<16x1280xbf16> to vector<16x32xbf16>
    %124 = vector.extract_strided_slice %92 {offsets = [0, 576], sizes = [16, 32], strides = [1, 1]} : vector<16x1280xbf16> to vector<16x32xbf16>
    %125 = vector.extract_strided_slice %92 {offsets = [0, 608], sizes = [16, 32], strides = [1, 1]} : vector<16x1280xbf16> to vector<16x32xbf16>
    %126 = vector.extract_strided_slice %92 {offsets = [0, 640], sizes = [16, 32], strides = [1, 1]} : vector<16x1280xbf16> to vector<16x32xbf16>
    %127 = vector.extract_strided_slice %92 {offsets = [0, 672], sizes = [16, 32], strides = [1, 1]} : vector<16x1280xbf16> to vector<16x32xbf16>
    %128 = vector.extract_strided_slice %92 {offsets = [0, 704], sizes = [16, 32], strides = [1, 1]} : vector<16x1280xbf16> to vector<16x32xbf16>
    %129 = vector.extract_strided_slice %92 {offsets = [0, 736], sizes = [16, 32], strides = [1, 1]} : vector<16x1280xbf16> to vector<16x32xbf16>
    %130 = vector.shape_cast %118 : vector<16x32xbf16> to vector<1x16x32xbf16>
    %131 = vector.shape_cast %119 : vector<16x32xbf16> to vector<1x16x32xbf16>
    %132 = vector.shape_cast %120 : vector<16x32xbf16> to vector<1x16x32xbf16>
    %133 = vector.shape_cast %121 : vector<16x32xbf16> to vector<1x16x32xbf16>
    %134 = vector.shape_cast %122 : vector<16x32xbf16> to vector<1x16x32xbf16>
    %135 = vector.shape_cast %123 : vector<16x32xbf16> to vector<1x16x32xbf16>
    %136 = vector.shape_cast %124 : vector<16x32xbf16> to vector<1x16x32xbf16>
    %137 = vector.shape_cast %125 : vector<16x32xbf16> to vector<1x16x32xbf16>
    %138 = vector.shape_cast %126 : vector<16x32xbf16> to vector<1x16x32xbf16>
    %139 = vector.shape_cast %127 : vector<16x32xbf16> to vector<1x16x32xbf16>
    %140 = vector.shape_cast %128 : vector<16x32xbf16> to vector<1x16x32xbf16>
    %141 = vector.shape_cast %129 : vector<16x32xbf16> to vector<1x16x32xbf16>
    %142 = tpu.concatenate %130, %131, %132, %133, %134, %135, %136, %137, %138, %139, %140, %141 in 0 : vector<1x16x32xbf16>, vector<1x16x32xbf16>, vector<1x16x32xbf16>, vector<1x16x32xbf16>, vector<1x16x32xbf16>, vector<1x16x32xbf16>, vector<1x16x32xbf16>, vector<1x16x32xbf16>, vector<1x16x32xbf16>, vector<1x16x32xbf16>, vector<1x16x32xbf16>, vector<1x16x32xbf16> -> vector<12x16x32xbf16>
    %143 = vector.extract_strided_slice %92 {offsets = [0, 768], sizes = [16, 32], strides = [1, 1]} : vector<16x1280xbf16> to vector<16x32xbf16>
    %144 = vector.extract_strided_slice %92 {offsets = [0, 800], sizes = [16, 32], strides = [1, 1]} : vector<16x1280xbf16> to vector<16x32xbf16>
    %145 = vector.extract_strided_slice %92 {offsets = [0, 832], sizes = [16, 32], strides = [1, 1]} : vector<16x1280xbf16> to vector<16x32xbf16>
    %146 = vector.extract_strided_slice %92 {offsets = [0, 864], sizes = [16, 32], strides = [1, 1]} : vector<16x1280xbf16> to vector<16x32xbf16>
    %147 = vector.extract_strided_slice %92 {offsets = [0, 896], sizes = [16, 32], strides = [1, 1]} : vector<16x1280xbf16> to vector<16x32xbf16>
    %148 = vector.extract_strided_slice %92 {offsets = [0, 928], sizes = [16, 32], strides = [1, 1]} : vector<16x1280xbf16> to vector<16x32xbf16>
    %149 = vector.extract_strided_slice %92 {offsets = [0, 960], sizes = [16, 32], strides = [1, 1]} : vector<16x1280xbf16> to vector<16x32xbf16>
    %150 = vector.extract_strided_slice %92 {offsets = [0, 992], sizes = [16, 32], strides = [1, 1]} : vector<16x1280xbf16> to vector<16x32xbf16>
    %151 = vector.extract_strided_slice %92 {offsets = [0, 1024], sizes = [16, 32], strides = [1, 1]} : vector<16x1280xbf16> to vector<16x32xbf16>
    %152 = vector.extract_strided_slice %92 {offsets = [0, 1056], sizes = [16, 32], strides = [1, 1]} : vector<16x1280xbf16> to vector<16x32xbf16>
    %153 = vector.extract_strided_slice %92 {offsets = [0, 1088], sizes = [16, 32], strides = [1, 1]} : vector<16x1280xbf16> to vector<16x32xbf16>
    %154 = vector.extract_strided_slice %92 {offsets = [0, 1120], sizes = [16, 32], strides = [1, 1]} : vector<16x1280xbf16> to vector<16x32xbf16>
    %155 = vector.shape_cast %143 : vector<16x32xbf16> to vector<1x16x32xbf16>
    %156 = vector.shape_cast %144 : vector<16x32xbf16> to vector<1x16x32xbf16>
    %157 = vector.shape_cast %145 : vector<16x32xbf16> to vector<1x16x32xbf16>
    %158 = vector.shape_cast %146 : vector<16x32xbf16> to vector<1x16x32xbf16>
    %159 = vector.shape_cast %147 : vector<16x32xbf16> to vector<1x16x32xbf16>
    %160 = vector.shape_cast %148 : vector<16x32xbf16> to vector<1x16x32xbf16>
    %161 = vector.shape_cast %149 : vector<16x32xbf16> to vector<1x16x32xbf16>
    %162 = vector.shape_cast %150 : vector<16x32xbf16> to vector<1x16x32xbf16>
    %163 = vector.shape_cast %151 : vector<16x32xbf16> to vector<1x16x32xbf16>
    %164 = vector.shape_cast %152 : vector<16x32xbf16> to vector<1x16x32xbf16>
    %165 = vector.shape_cast %153 : vector<16x32xbf16> to vector<1x16x32xbf16>
    %166 = vector.shape_cast %154 : vector<16x32xbf16> to vector<1x16x32xbf16>
    %167 = tpu.concatenate %155, %156, %157, %158, %159, %160, %161, %162, %163, %164, %165, %166 in 0 : vector<1x16x32xbf16>, vector<1x16x32xbf16>, vector<1x16x32xbf16>, vector<1x16x32xbf16>, vector<1x16x32xbf16>, vector<1x16x32xbf16>, vector<1x16x32xbf16>, vector<1x16x32xbf16>, vector<1x16x32xbf16>, vector<1x16x32xbf16>, vector<1x16x32xbf16>, vector<1x16x32xbf16> -> vector<12x16x32xbf16>
    "tpu.trace_start"() <{level = 10 : i32, message = "bqd,bkd->bqk"}> : () -> ()
    %cst_28 = arith.constant dense<0.000000e+00> : vector<12x16x16xf32>
    %168 = tpu.matmul %117, %142, %cst_28 {dimension_numbers = #tpu.dot_dimension_numbers<[2], [2], [1], [1], [0, 0, 0, 1, 1, 1], [0], [0]>} : vector<12x16x32xbf16>, vector<12x16x32xbf16>, vector<12x16x16xf32> -> vector<12x16x16xf32>
    "tpu.trace_stop"() : () -> ()
    %169 = arith.addf %168, %84 : vector<12x16x16xf32>
    %cst_29 = arith.constant dense<0xFF800000> : vector<12x16xf32>
    %170 = vector.multi_reduction <maximumf>, %169, %cst_29 [2] : vector<12x16x16xf32> to vector<12x16xf32>
    %171 = vector.shape_cast %170 : vector<12x16xf32> to vector<12x16x1xf32>
    %172 = vector.broadcast %171 : vector<12x16x1xf32> to vector<12x16x16xf32>
    %173 = arith.subf %169, %172 : vector<12x16x16xf32>
    %174 = math.exp %173 : vector<12x16x16xf32>
    %175 = arith.mulf %174, %71 : vector<12x16x16xf32>
    %cst_30 = arith.constant dense<0.000000e+00> : vector<12x16xf32>
    %176 = vector.multi_reduction <add>, %175, %cst_30 [2] : vector<12x16x16xf32> to vector<12x16xf32>
    %177 = vector.shape_cast %176 : vector<12x16xf32> to vector<12x16x1xf32>
    %cst_31 = arith.constant 9.99999968E-21 : f32
    %178 = vector.broadcast %cst_31 : f32 to vector<12x16x1xf32>
    %179 = arith.maximumf %177, %178 : vector<12x16x1xf32>
    %180 = vector.broadcast %179 : vector<12x16x1xf32> to vector<12x16x16xf32>
    %181 = arith.divf %175, %180 : vector<12x16x16xf32>
    %182 = arith.truncf %181 : vector<12x16x16xf32> to vector<12x16x16xbf16>
    "tpu.trace_start"() <{level = 10 : i32, message = "bqk,bkd->bqd"}> : () -> ()
    %cst_32 = arith.constant dense<0.000000e+00> : vector<12x16x32xf32>
    %183 = tpu.matmul %182, %167, %cst_32 {dimension_numbers = #tpu.dot_dimension_numbers<[2], [1], [1], [2], [0, 0, 0, 1, 1, 2], [0], [0]>} : vector<12x16x16xbf16>, vector<12x16x32xbf16>, vector<12x16x32xf32> -> vector<12x16x32xf32>
    "tpu.trace_stop"() : () -> ()
    %184 = vector.extract_strided_slice %183 {offsets = [0, 0, 0], sizes = [1, 16, 32], strides = [1, 1, 1]} : vector<12x16x32xf32> to vector<1x16x32xf32>
    %185 = vector.shape_cast %184 : vector<1x16x32xf32> to vector<16x32xf32>
    %186 = vector.extract_strided_slice %183 {offsets = [1, 0, 0], sizes = [1, 16, 32], strides = [1, 1, 1]} : vector<12x16x32xf32> to vector<1x16x32xf32>
    %187 = vector.shape_cast %186 : vector<1x16x32xf32> to vector<16x32xf32>
    %188 = arith.addf %185, %187 : vector<16x32xf32>
    %189 = vector.extract_strided_slice %183 {offsets = [2, 0, 0], sizes = [1, 16, 32], strides = [1, 1, 1]} : vector<12x16x32xf32> to vector<1x16x32xf32>
    %190 = vector.shape_cast %189 : vector<1x16x32xf32> to vector<16x32xf32>
    %191 = arith.addf %188, %190 : vector<16x32xf32>
    %192 = vector.extract_strided_slice %183 {offsets = [3, 0, 0], sizes = [1, 16, 32], strides = [1, 1, 1]} : vector<12x16x32xf32> to vector<1x16x32xf32>
    %193 = vector.shape_cast %192 : vector<1x16x32xf32> to vector<16x32xf32>
    %194 = arith.addf %191, %193 : vector<16x32xf32>
    %195 = vector.extract_strided_slice %91 {offsets = [0, 1152], sizes = [16, 32], strides = [1, 1]} : vector<16x1280xf32> to vector<16x32xf32>
    %cst_33 = arith.constant 2.500000e-01 : f32
    %196 = vector.broadcast %cst_33 : f32 to vector<16x32xf32>
    %197 = arith.mulf %194, %196 : vector<16x32xf32>
    %198 = arith.addf %197, %195 : vector<16x32xf32>
    %199 = vector.extract_strided_slice %183 {offsets = [4, 0, 0], sizes = [1, 16, 32], strides = [1, 1, 1]} : vector<12x16x32xf32> to vector<1x16x32xf32>
    %200 = vector.shape_cast %199 : vector<1x16x32xf32> to vector<16x32xf32>
    %201 = vector.extract_strided_slice %183 {offsets = [5, 0, 0], sizes = [1, 16, 32], strides = [1, 1, 1]} : vector<12x16x32xf32> to vector<1x16x32xf32>
    %202 = vector.shape_cast %201 : vector<1x16x32xf32> to vector<16x32xf32>
    %203 = arith.addf %200, %202 : vector<16x32xf32>
    %204 = vector.extract_strided_slice %183 {offsets = [6, 0, 0], sizes = [1, 16, 32], strides = [1, 1, 1]} : vector<12x16x32xf32> to vector<1x16x32xf32>
    %205 = vector.shape_cast %204 : vector<1x16x32xf32> to vector<16x32xf32>
    %206 = arith.addf %203, %205 : vector<16x32xf32>
    %207 = vector.extract_strided_slice %183 {offsets = [7, 0, 0], sizes = [1, 16, 32], strides = [1, 1, 1]} : vector<12x16x32xf32> to vector<1x16x32xf32>
    %208 = vector.shape_cast %207 : vector<1x16x32xf32> to vector<16x32xf32>
    %209 = arith.addf %206, %208 : vector<16x32xf32>
    %210 = vector.extract_strided_slice %91 {offsets = [0, 1184], sizes = [16, 32], strides = [1, 1]} : vector<16x1280xf32> to vector<16x32xf32>
    %cst_34 = arith.constant 2.500000e-01 : f32
    %211 = vector.broadcast %cst_34 : f32 to vector<16x32xf32>
    %212 = arith.mulf %209, %211 : vector<16x32xf32>
    %213 = arith.addf %212, %210 : vector<16x32xf32>
    %214 = vector.extract_strided_slice %183 {offsets = [8, 0, 0], sizes = [1, 16, 32], strides = [1, 1, 1]} : vector<12x16x32xf32> to vector<1x16x32xf32>
    %215 = vector.shape_cast %214 : vector<1x16x32xf32> to vector<16x32xf32>
    %216 = vector.extract_strided_slice %183 {offsets = [9, 0, 0], sizes = [1, 16, 32], strides = [1, 1, 1]} : vector<12x16x32xf32> to vector<1x16x32xf32>
    %217 = vector.shape_cast %216 : vector<1x16x32xf32> to vector<16x32xf32>
    %218 = arith.addf %215, %217 : vector<16x32xf32>
    %219 = vector.extract_strided_slice %183 {offsets = [10, 0, 0], sizes = [1, 16, 32], strides = [1, 1, 1]} : vector<12x16x32xf32> to vector<1x16x32xf32>
    %220 = vector.shape_cast %219 : vector<1x16x32xf32> to vector<16x32xf32>
    %221 = arith.addf %218, %220 : vector<16x32xf32>
    %222 = vector.extract_strided_slice %183 {offsets = [11, 0, 0], sizes = [1, 16, 32], strides = [1, 1, 1]} : vector<12x16x32xf32> to vector<1x16x32xf32>
    %223 = vector.shape_cast %222 : vector<1x16x32xf32> to vector<16x32xf32>
    %224 = arith.addf %221, %223 : vector<16x32xf32>
    %225 = vector.extract_strided_slice %91 {offsets = [0, 1216], sizes = [16, 32], strides = [1, 1]} : vector<16x1280xf32> to vector<16x32xf32>
    %cst_35 = arith.constant 2.500000e-01 : f32
    %226 = vector.broadcast %cst_35 : f32 to vector<16x32xf32>
    %227 = arith.mulf %224, %226 : vector<16x32xf32>
    %228 = arith.addf %227, %225 : vector<16x32xf32>
    %229 = tpu.concatenate %198, %213, %228 in 0 : vector<16x32xf32>, vector<16x32xf32>, vector<16x32xf32> -> vector<48x32xf32>
    %230 = vector.extract_strided_slice %91 {offsets = [0, 1248], sizes = [16, 32], strides = [1, 1]} : vector<16x1280xf32> to vector<16x32xf32>
    %231 = tpu.concatenate %230, %230, %230 in 0 : vector<16x32xf32>, vector<16x32xf32>, vector<16x32xf32> -> vector<48x32xf32>
    %232 = tpu.concatenate %37, %37, %37 in 0 : vector<16x32xf32>, vector<16x32xf32>, vector<16x32xf32> -> vector<48x32xf32>
    %233 = arith.truncf %229 : vector<48x32xf32> to vector<48x32xbf16>
    %cst_36 = arith.constant dense<0.000000e+00> : vector<48x32xf32>
    %234 = tpu.matmul %233, %5, %cst_36 {dimension_numbers = #tpu.dot_dimension_numbers<[1], [0], [0], [1], [0, 0, 1, 1], [], []>} : vector<48x32xbf16>, vector<32x32xbf16>, vector<48x32xf32> -> vector<48x32xf32>
    %235 = arith.addf %234, %231 : vector<48x32xf32>
    %236 = arith.negf %235 : vector<48x32xf32>
    %237 = math.exp %236 : vector<48x32xf32>
    %cst_37 = arith.constant 1.000000e+00 : f32
    %238 = vector.broadcast %cst_37 : f32 to vector<48x32xf32>
    %239 = arith.addf %238, %237 : vector<48x32xf32>
    %240 = arith.divf %238, %239 : vector<48x32xf32>
    %241 = math.tanh %229 : vector<48x32xf32>
    %242 = arith.mulf %241, %240 : vector<48x32xf32>
    %cst_38 = arith.constant 1.000000e+00 : f32
    %243 = vector.broadcast %cst_38 : f32 to vector<48x32xf32>
    %244 = arith.subf %243, %240 : vector<48x32xf32>
    %245 = arith.mulf %232, %244 : vector<48x32xf32>
    %246 = arith.addf %242, %245 : vector<48x32xf32>
    %247 = arith.truncf %246 : vector<48x32xf32> to vector<48x32xbf16>
    %cst_39 = arith.constant dense<0.000000e+00> : vector<48x32xf32>
    %248 = tpu.matmul %247, %6, %cst_39 {dimension_numbers = #tpu.dot_dimension_numbers<[1], [0], [0], [1], [0, 0, 1, 1], [], []>} : vector<48x32xbf16>, vector<32x32xbf16>, vector<48x32xf32> -> vector<48x32xf32>
    %249 = arith.extf %7 : vector<1x32xbf16> to vector<1x32xf32>
    %250 = vector.broadcast %249 : vector<1x32xf32> to vector<48x32xf32>
    %251 = arith.addf %248, %250 : vector<48x32xf32>
    %252 = math.tanh %251 : vector<48x32xf32>
    %253 = arith.truncf %252 : vector<48x32xf32> to vector<48x32xbf16>
    %cst_40 = arith.constant dense<0.000000e+00> : vector<48x32xf32>
    %254 = tpu.matmul %253, %8, %cst_40 {dimension_numbers = #tpu.dot_dimension_numbers<[1], [0], [0], [1], [0, 0, 1, 1], [], []>} : vector<48x32xbf16>, vector<32x32xbf16>, vector<48x32xf32> -> vector<48x32xf32>
    %255 = vector.extract_strided_slice %254 {offsets = [0, 0], sizes = [16, 32], strides = [1, 1]} : vector<48x32xf32> to vector<16x32xf32>
    %cst_41 = arith.constant dense<0.000000e+00> : vector<32xf32>
    %256 = vector.multi_reduction <add>, %255, %cst_41 [0] : vector<16x32xf32> to vector<32xf32>
    %257 = vector.shape_cast %256 : vector<32xf32> to vector<1x32xf32>
    %cst_42 = arith.constant 1.600000e+01 : f32
    %258 = vector.broadcast %cst_42 : f32 to vector<1x32xf32>
    %259 = arith.divf %257, %258 : vector<1x32xf32>
    %260 = vector.extract_strided_slice %259 {offsets = [0, 0], sizes = [1, 2], strides = [1, 1]} : vector<1x32xf32> to vector<1x2xf32>
    %261 = vector.extract_strided_slice %254 {offsets = [16, 0], sizes = [16, 32], strides = [1, 1]} : vector<48x32xf32> to vector<16x32xf32>
    %cst_43 = arith.constant dense<0.000000e+00> : vector<32xf32>
    %262 = vector.multi_reduction <add>, %261, %cst_43 [0] : vector<16x32xf32> to vector<32xf32>
    %263 = vector.shape_cast %262 : vector<32xf32> to vector<1x32xf32>
    %cst_44 = arith.constant 1.600000e+01 : f32
    %264 = vector.broadcast %cst_44 : f32 to vector<1x32xf32>
    %265 = arith.divf %263, %264 : vector<1x32xf32>
    %266 = vector.extract_strided_slice %265 {offsets = [0, 0], sizes = [1, 2], strides = [1, 1]} : vector<1x32xf32> to vector<1x2xf32>
    %267 = vector.extract_strided_slice %254 {offsets = [32, 0], sizes = [16, 32], strides = [1, 1]} : vector<48x32xf32> to vector<16x32xf32>
    %cst_45 = arith.constant dense<0.000000e+00> : vector<32xf32>
    %268 = vector.multi_reduction <add>, %267, %cst_45 [0] : vector<16x32xf32> to vector<32xf32>
    %269 = vector.shape_cast %268 : vector<32xf32> to vector<1x32xf32>
    %cst_46 = arith.constant 1.600000e+01 : f32
    %270 = vector.broadcast %cst_46 : f32 to vector<1x32xf32>
    %271 = arith.divf %269, %270 : vector<1x32xf32>
    %272 = vector.extract_strided_slice %271 {offsets = [0, 0], sizes = [1, 2], strides = [1, 1]} : vector<1x32xf32> to vector<1x2xf32>
    %273 = arith.maximumf %260, %266 : vector<1x2xf32>
    %274 = arith.maximumf %273, %272 : vector<1x2xf32>
    %275 = arith.subf %260, %274 : vector<1x2xf32>
    %276 = math.exp %275 : vector<1x2xf32>
    %277 = arith.subf %266, %274 : vector<1x2xf32>
    %278 = math.exp %277 : vector<1x2xf32>
    %279 = arith.subf %272, %274 : vector<1x2xf32>
    %280 = math.exp %279 : vector<1x2xf32>
    %281 = arith.addf %276, %278 : vector<1x2xf32>
    %282 = arith.addf %281, %280 : vector<1x2xf32>
    %cst_47 = arith.constant 0.000000e+00 : f32
    %283 = vector.broadcast %cst_47 : f32 to vector<16x32xf32>
    %284 = arith.divf %276, %282 : vector<1x2xf32>
    %cst_48 = arith.constant dense<0.000000e+00> : vector<1xf32>
    %285 = vector.multi_reduction <add>, %284, %cst_48 [1] : vector<1x2xf32> to vector<1xf32>
    %286 = vector.shape_cast %285 : vector<1xf32> to vector<1x1xf32>
    %287 = vector.extract_strided_slice %246 {offsets = [0, 0], sizes = [16, 32], strides = [1, 1]} : vector<48x32xf32> to vector<16x32xf32>
    %288 = vector.broadcast %286 : vector<1x1xf32> to vector<16x32xf32>
    %289 = arith.mulf %287, %288 : vector<16x32xf32>
    %290 = arith.addf %283, %289 : vector<16x32xf32>
    %291 = arith.divf %278, %282 : vector<1x2xf32>
    %cst_49 = arith.constant dense<0.000000e+00> : vector<1xf32>
    %292 = vector.multi_reduction <add>, %291, %cst_49 [1] : vector<1x2xf32> to vector<1xf32>
    %293 = vector.shape_cast %292 : vector<1xf32> to vector<1x1xf32>
    %294 = vector.extract_strided_slice %246 {offsets = [16, 0], sizes = [16, 32], strides = [1, 1]} : vector<48x32xf32> to vector<16x32xf32>
    %295 = vector.broadcast %293 : vector<1x1xf32> to vector<16x32xf32>
    %296 = arith.mulf %294, %295 : vector<16x32xf32>
    %297 = arith.addf %290, %296 : vector<16x32xf32>
    %298 = arith.divf %280, %282 : vector<1x2xf32>
    %cst_50 = arith.constant dense<0.000000e+00> : vector<1xf32>
    %299 = vector.multi_reduction <add>, %298, %cst_50 [1] : vector<1x2xf32> to vector<1xf32>
    %300 = vector.shape_cast %299 : vector<1xf32> to vector<1x1xf32>
    %301 = vector.extract_strided_slice %246 {offsets = [32, 0], sizes = [16, 32], strides = [1, 1]} : vector<48x32xf32> to vector<16x32xf32>
    %302 = vector.broadcast %300 : vector<1x1xf32> to vector<16x32xf32>
    %303 = arith.mulf %301, %302 : vector<16x32xf32>
    %304 = arith.addf %297, %303 : vector<16x32xf32>
    %cst_51 = arith.constant 5.000000e-01 : f32
    %305 = vector.broadcast %cst_51 : f32 to vector<16x32xf32>
    %306 = arith.mulf %304, %305 : vector<16x32xf32>
    %cst_52 = arith.constant 0.000000e+00 : f32
    %307 = vector.broadcast %cst_52 : f32 to vector<16x32xf32>
    %308 = arith.cmpf oge, %306, %307 : vector<16x32xf32>
    %cst_53 = arith.constant 0.00999999977 : f32
    %309 = vector.broadcast %cst_53 : f32 to vector<16x32xf32>
    %310 = arith.mulf %309, %306 : vector<16x32xf32>
    %311 = arith.select %308, %306, %310 : vector<16x32xi1>, vector<16x32xf32>
    %c33 = arith.constant 33 : index
    %c0_54 = arith.constant 0 : index
    %312 = vector.load %arg3[%c33, %c0_54] : memref<66x1280xbf16, #tpu.memory_space<vmem>>, vector<32x1280xbf16>
    %c65 = arith.constant 65 : index
    %c0_55 = arith.constant 0 : index
    %313 = vector.load %arg3[%c65, %c0_55] : memref<66x1280xbf16, #tpu.memory_space<vmem>>, vector<1x1280xbf16>
    %314 = arith.truncf %311 : vector<16x32xf32> to vector<16x32xbf16>
    %cst_56 = arith.constant dense<0.000000e+00> : vector<16x1280xf32>
    %315 = tpu.matmul %314, %312, %cst_56 {dimension_numbers = #tpu.dot_dimension_numbers<[1], [0], [0], [1], [0, 0, 1, 1], [], []>} : vector<16x32xbf16>, vector<32x1280xbf16>, vector<16x1280xf32> -> vector<16x1280xf32>
    %316 = arith.extf %313 : vector<1x1280xbf16> to vector<1x1280xf32>
    %317 = vector.broadcast %316 : vector<1x1280xf32> to vector<16x1280xf32>
    %318 = arith.addf %315, %317 : vector<16x1280xf32>
    %319 = arith.truncf %318 : vector<16x1280xf32> to vector<16x1280xbf16>
    %320 = vector.extract_strided_slice %319 {offsets = [0, 0], sizes = [16, 32], strides = [1, 1]} : vector<16x1280xbf16> to vector<16x32xbf16>
    %321 = vector.extract_strided_slice %319 {offsets = [0, 32], sizes = [16, 32], strides = [1, 1]} : vector<16x1280xbf16> to vector<16x32xbf16>
    %322 = vector.extract_strided_slice %319 {offsets = [0, 64], sizes = [16, 32], strides = [1, 1]} : vector<16x1280xbf16> to vector<16x32xbf16>
    %323 = vector.extract_strided_slice %319 {offsets = [0, 96], sizes = [16, 32], strides = [1, 1]} : vector<16x1280xbf16> to vector<16x32xbf16>
    %324 = vector.extract_strided_slice %319 {offsets = [0, 128], sizes = [16, 32], strides = [1, 1]} : vector<16x1280xbf16> to vector<16x32xbf16>
    %325 = vector.extract_strided_slice %319 {offsets = [0, 160], sizes = [16, 32], strides = [1, 1]} : vector<16x1280xbf16> to vector<16x32xbf16>
    %326 = vector.extract_strided_slice %319 {offsets = [0, 192], sizes = [16, 32], strides = [1, 1]} : vector<16x1280xbf16> to vector<16x32xbf16>
    %327 = vector.extract_strided_slice %319 {offsets = [0, 224], sizes = [16, 32], strides = [1, 1]} : vector<16x1280xbf16> to vector<16x32xbf16>
    %328 = vector.extract_strided_slice %319 {offsets = [0, 256], sizes = [16, 32], strides = [1, 1]} : vector<16x1280xbf16> to vector<16x32xbf16>
    %329 = vector.extract_strided_slice %319 {offsets = [0, 288], sizes = [16, 32], strides = [1, 1]} : vector<16x1280xbf16> to vector<16x32xbf16>
    %330 = vector.extract_strided_slice %319 {offsets = [0, 320], sizes = [16, 32], strides = [1, 1]} : vector<16x1280xbf16> to vector<16x32xbf16>
    %331 = vector.extract_strided_slice %319 {offsets = [0, 352], sizes = [16, 32], strides = [1, 1]} : vector<16x1280xbf16> to vector<16x32xbf16>
    %332 = vector.shape_cast %320 : vector<16x32xbf16> to vector<1x16x32xbf16>
    %333 = vector.shape_cast %321 : vector<16x32xbf16> to vector<1x16x32xbf16>
    %334 = vector.shape_cast %322 : vector<16x32xbf16> to vector<1x16x32xbf16>
    %335 = vector.shape_cast %323 : vector<16x32xbf16> to vector<1x16x32xbf16>
    %336 = vector.shape_cast %324 : vector<16x32xbf16> to vector<1x16x32xbf16>
    %337 = vector.shape_cast %325 : vector<16x32xbf16> to vector<1x16x32xbf16>
    %338 = vector.shape_cast %326 : vector<16x32xbf16> to vector<1x16x32xbf16>
    %339 = vector.shape_cast %327 : vector<16x32xbf16> to vector<1x16x32xbf16>
    %340 = vector.shape_cast %328 : vector<16x32xbf16> to vector<1x16x32xbf16>
    %341 = vector.shape_cast %329 : vector<16x32xbf16> to vector<1x16x32xbf16>
    %342 = vector.shape_cast %330 : vector<16x32xbf16> to vector<1x16x32xbf16>
    %343 = vector.shape_cast %331 : vector<16x32xbf16> to vector<1x16x32xbf16>
    %344 = tpu.concatenate %332, %333, %334, %335, %336, %337, %338, %339, %340, %341, %342, %343 in 0 : vector<1x16x32xbf16>, vector<1x16x32xbf16>, vector<1x16x32xbf16>, vector<1x16x32xbf16>, vector<1x16x32xbf16>, vector<1x16x32xbf16>, vector<1x16x32xbf16>, vector<1x16x32xbf16>, vector<1x16x32xbf16>, vector<1x16x32xbf16>, vector<1x16x32xbf16>, vector<1x16x32xbf16> -> vector<12x16x32xbf16>
    %345 = vector.extract_strided_slice %319 {offsets = [0, 384], sizes = [16, 32], strides = [1, 1]} : vector<16x1280xbf16> to vector<16x32xbf16>
    %346 = vector.extract_strided_slice %319 {offsets = [0, 416], sizes = [16, 32], strides = [1, 1]} : vector<16x1280xbf16> to vector<16x32xbf16>
    %347 = vector.extract_strided_slice %319 {offsets = [0, 448], sizes = [16, 32], strides = [1, 1]} : vector<16x1280xbf16> to vector<16x32xbf16>
    %348 = vector.extract_strided_slice %319 {offsets = [0, 480], sizes = [16, 32], strides = [1, 1]} : vector<16x1280xbf16> to vector<16x32xbf16>
    %349 = vector.extract_strided_slice %319 {offsets = [0, 512], sizes = [16, 32], strides = [1, 1]} : vector<16x1280xbf16> to vector<16x32xbf16>
    %350 = vector.extract_strided_slice %319 {offsets = [0, 544], sizes = [16, 32], strides = [1, 1]} : vector<16x1280xbf16> to vector<16x32xbf16>
    %351 = vector.extract_strided_slice %319 {offsets = [0, 576], sizes = [16, 32], strides = [1, 1]} : vector<16x1280xbf16> to vector<16x32xbf16>
    %352 = vector.extract_strided_slice %319 {offsets = [0, 608], sizes = [16, 32], strides = [1, 1]} : vector<16x1280xbf16> to vector<16x32xbf16>
    %353 = vector.extract_strided_slice %319 {offsets = [0, 640], sizes = [16, 32], strides = [1, 1]} : vector<16x1280xbf16> to vector<16x32xbf16>
    %354 = vector.extract_strided_slice %319 {offsets = [0, 672], sizes = [16, 32], strides = [1, 1]} : vector<16x1280xbf16> to vector<16x32xbf16>
    %355 = vector.extract_strided_slice %319 {offsets = [0, 704], sizes = [16, 32], strides = [1, 1]} : vector<16x1280xbf16> to vector<16x32xbf16>
    %356 = vector.extract_strided_slice %319 {offsets = [0, 736], sizes = [16, 32], strides = [1, 1]} : vector<16x1280xbf16> to vector<16x32xbf16>
    %357 = vector.shape_cast %345 : vector<16x32xbf16> to vector<1x16x32xbf16>
    %358 = vector.shape_cast %346 : vector<16x32xbf16> to vector<1x16x32xbf16>
    %359 = vector.shape_cast %347 : vector<16x32xbf16> to vector<1x16x32xbf16>
    %360 = vector.shape_cast %348 : vector<16x32xbf16> to vector<1x16x32xbf16>
    %361 = vector.shape_cast %349 : vector<16x32xbf16> to vector<1x16x32xbf16>
    %362 = vector.shape_cast %350 : vector<16x32xbf16> to vector<1x16x32xbf16>
    %363 = vector.shape_cast %351 : vector<16x32xbf16> to vector<1x16x32xbf16>
    %364 = vector.shape_cast %352 : vector<16x32xbf16> to vector<1x16x32xbf16>
    %365 = vector.shape_cast %353 : vector<16x32xbf16> to vector<1x16x32xbf16>
    %366 = vector.shape_cast %354 : vector<16x32xbf16> to vector<1x16x32xbf16>
    %367 = vector.shape_cast %355 : vector<16x32xbf16> to vector<1x16x32xbf16>
    %368 = vector.shape_cast %356 : vector<16x32xbf16> to vector<1x16x32xbf16>
    %369 = tpu.concatenate %357, %358, %359, %360, %361, %362, %363, %364, %365, %366, %367, %368 in 0 : vector<1x16x32xbf16>, vector<1x16x32xbf16>, vector<1x16x32xbf16>, vector<1x16x32xbf16>, vector<1x16x32xbf16>, vector<1x16x32xbf16>, vector<1x16x32xbf16>, vector<1x16x32xbf16>, vector<1x16x32xbf16>, vector<1x16x32xbf16>, vector<1x16x32xbf16>, vector<1x16x32xbf16> -> vector<12x16x32xbf16>
    %370 = vector.extract_strided_slice %319 {offsets = [0, 768], sizes = [16, 32], strides = [1, 1]} : vector<16x1280xbf16> to vector<16x32xbf16>
    %371 = vector.extract_strided_slice %319 {offsets = [0, 800], sizes = [16, 32], strides = [1, 1]} : vector<16x1280xbf16> to vector<16x32xbf16>
    %372 = vector.extract_strided_slice %319 {offsets = [0, 832], sizes = [16, 32], strides = [1, 1]} : vector<16x1280xbf16> to vector<16x32xbf16>
    %373 = vector.extract_strided_slice %319 {offsets = [0, 864], sizes = [16, 32], strides = [1, 1]} : vector<16x1280xbf16> to vector<16x32xbf16>
    %374 = vector.extract_strided_slice %319 {offsets = [0, 896], sizes = [16, 32], strides = [1, 1]} : vector<16x1280xbf16> to vector<16x32xbf16>
    %375 = vector.extract_strided_slice %319 {offsets = [0, 928], sizes = [16, 32], strides = [1, 1]} : vector<16x1280xbf16> to vector<16x32xbf16>
    %376 = vector.extract_strided_slice %319 {offsets = [0, 960], sizes = [16, 32], strides = [1, 1]} : vector<16x1280xbf16> to vector<16x32xbf16>
    %377 = vector.extract_strided_slice %319 {offsets = [0, 992], sizes = [16, 32], strides = [1, 1]} : vector<16x1280xbf16> to vector<16x32xbf16>
    %378 = vector.extract_strided_slice %319 {offsets = [0, 1024], sizes = [16, 32], strides = [1, 1]} : vector<16x1280xbf16> to vector<16x32xbf16>
    %379 = vector.extract_strided_slice %319 {offsets = [0, 1056], sizes = [16, 32], strides = [1, 1]} : vector<16x1280xbf16> to vector<16x32xbf16>
    %380 = vector.extract_strided_slice %319 {offsets = [0, 1088], sizes = [16, 32], strides = [1, 1]} : vector<16x1280xbf16> to vector<16x32xbf16>
    %381 = vector.extract_strided_slice %319 {offsets = [0, 1120], sizes = [16, 32], strides = [1, 1]} : vector<16x1280xbf16> to vector<16x32xbf16>
    %382 = vector.shape_cast %370 : vector<16x32xbf16> to vector<1x16x32xbf16>
    %383 = vector.shape_cast %371 : vector<16x32xbf16> to vector<1x16x32xbf16>
    %384 = vector.shape_cast %372 : vector<16x32xbf16> to vector<1x16x32xbf16>
    %385 = vector.shape_cast %373 : vector<16x32xbf16> to vector<1x16x32xbf16>
    %386 = vector.shape_cast %374 : vector<16x32xbf16> to vector<1x16x32xbf16>
    %387 = vector.shape_cast %375 : vector<16x32xbf16> to vector<1x16x32xbf16>
    %388 = vector.shape_cast %376 : vector<16x32xbf16> to vector<1x16x32xbf16>
    %389 = vector.shape_cast %377 : vector<16x32xbf16> to vector<1x16x32xbf16>
    %390 = vector.shape_cast %378 : vector<16x32xbf16> to vector<1x16x32xbf16>
    %391 = vector.shape_cast %379 : vector<16x32xbf16> to vector<1x16x32xbf16>
    %392 = vector.shape_cast %380 : vector<16x32xbf16> to vector<1x16x32xbf16>
    %393 = vector.shape_cast %381 : vector<16x32xbf16> to vector<1x16x32xbf16>
    %394 = tpu.concatenate %382, %383, %384, %385, %386, %387, %388, %389, %390, %391, %392, %393 in 0 : vector<1x16x32xbf16>, vector<1x16x32xbf16>, vector<1x16x32xbf16>, vector<1x16x32xbf16>, vector<1x16x32xbf16>, vector<1x16x32xbf16>, vector<1x16x32xbf16>, vector<1x16x32xbf16>, vector<1x16x32xbf16>, vector<1x16x32xbf16>, vector<1x16x32xbf16>, vector<1x16x32xbf16> -> vector<12x16x32xbf16>
    "tpu.trace_start"() <{level = 10 : i32, message = "bqd,bkd->bqk"}> : () -> ()
    %cst_57 = arith.constant dense<0.000000e+00> : vector<12x16x16xf32>
    %395 = tpu.matmul %344, %369, %cst_57 {dimension_numbers = #tpu.dot_dimension_numbers<[2], [2], [1], [1], [0, 0, 0, 1, 1, 1], [0], [0]>} : vector<12x16x32xbf16>, vector<12x16x32xbf16>, vector<12x16x16xf32> -> vector<12x16x16xf32>
    "tpu.trace_stop"() : () -> ()
    %396 = arith.addf %395, %84 : vector<12x16x16xf32>
    %cst_58 = arith.constant dense<0xFF800000> : vector<12x16xf32>
    %397 = vector.multi_reduction <maximumf>, %396, %cst_58 [2] : vector<12x16x16xf32> to vector<12x16xf32>
    %398 = vector.shape_cast %397 : vector<12x16xf32> to vector<12x16x1xf32>
    %399 = vector.broadcast %398 : vector<12x16x1xf32> to vector<12x16x16xf32>
    %400 = arith.subf %396, %399 : vector<12x16x16xf32>
    %401 = math.exp %400 : vector<12x16x16xf32>
    %402 = arith.mulf %401, %71 : vector<12x16x16xf32>
    %cst_59 = arith.constant dense<0.000000e+00> : vector<12x16xf32>
    %403 = vector.multi_reduction <add>, %402, %cst_59 [2] : vector<12x16x16xf32> to vector<12x16xf32>
    %404 = vector.shape_cast %403 : vector<12x16xf32> to vector<12x16x1xf32>
    %cst_60 = arith.constant 9.99999968E-21 : f32
    %405 = vector.broadcast %cst_60 : f32 to vector<12x16x1xf32>
    %406 = arith.maximumf %404, %405 : vector<12x16x1xf32>
    %407 = vector.broadcast %406 : vector<12x16x1xf32> to vector<12x16x16xf32>
    %408 = arith.divf %402, %407 : vector<12x16x16xf32>
    %409 = arith.truncf %408 : vector<12x16x16xf32> to vector<12x16x16xbf16>
    "tpu.trace_start"() <{level = 10 : i32, message = "bqk,bkd->bqd"}> : () -> ()
    %cst_61 = arith.constant dense<0.000000e+00> : vector<12x16x32xf32>
    %410 = tpu.matmul %409, %394, %cst_61 {dimension_numbers = #tpu.dot_dimension_numbers<[2], [1], [1], [2], [0, 0, 0, 1, 1, 2], [0], [0]>} : vector<12x16x16xbf16>, vector<12x16x32xbf16>, vector<12x16x32xf32> -> vector<12x16x32xf32>
    "tpu.trace_stop"() : () -> ()
    %411 = vector.extract_strided_slice %410 {offsets = [0, 0, 0], sizes = [1, 16, 32], strides = [1, 1, 1]} : vector<12x16x32xf32> to vector<1x16x32xf32>
    %412 = vector.shape_cast %411 : vector<1x16x32xf32> to vector<16x32xf32>
    %413 = vector.extract_strided_slice %410 {offsets = [1, 0, 0], sizes = [1, 16, 32], strides = [1, 1, 1]} : vector<12x16x32xf32> to vector<1x16x32xf32>
    %414 = vector.shape_cast %413 : vector<1x16x32xf32> to vector<16x32xf32>
    %415 = arith.addf %412, %414 : vector<16x32xf32>
    %416 = vector.extract_strided_slice %410 {offsets = [2, 0, 0], sizes = [1, 16, 32], strides = [1, 1, 1]} : vector<12x16x32xf32> to vector<1x16x32xf32>
    %417 = vector.shape_cast %416 : vector<1x16x32xf32> to vector<16x32xf32>
    %418 = arith.addf %415, %417 : vector<16x32xf32>
    %419 = vector.extract_strided_slice %410 {offsets = [3, 0, 0], sizes = [1, 16, 32], strides = [1, 1, 1]} : vector<12x16x32xf32> to vector<1x16x32xf32>
    %420 = vector.shape_cast %419 : vector<1x16x32xf32> to vector<16x32xf32>
    %421 = arith.addf %418, %420 : vector<16x32xf32>
    %422 = vector.extract_strided_slice %318 {offsets = [0, 1152], sizes = [16, 32], strides = [1, 1]} : vector<16x1280xf32> to vector<16x32xf32>
    %cst_62 = arith.constant 2.500000e-01 : f32
    %423 = vector.broadcast %cst_62 : f32 to vector<16x32xf32>
    %424 = arith.mulf %421, %423 : vector<16x32xf32>
    %425 = arith.addf %424, %422 : vector<16x32xf32>
    %426 = vector.extract_strided_slice %410 {offsets = [4, 0, 0], sizes = [1, 16, 32], strides = [1, 1, 1]} : vector<12x16x32xf32> to vector<1x16x32xf32>
    %427 = vector.shape_cast %426 : vector<1x16x32xf32> to vector<16x32xf32>
    %428 = vector.extract_strided_slice %410 {offsets = [5, 0, 0], sizes = [1, 16, 32], strides = [1, 1, 1]} : vector<12x16x32xf32> to vector<1x16x32xf32>
    %429 = vector.shape_cast %428 : vector<1x16x32xf32> to vector<16x32xf32>
    %430 = arith.addf %427, %429 : vector<16x32xf32>
    %431 = vector.extract_strided_slice %410 {offsets = [6, 0, 0], sizes = [1, 16, 32], strides = [1, 1, 1]} : vector<12x16x32xf32> to vector<1x16x32xf32>
    %432 = vector.shape_cast %431 : vector<1x16x32xf32> to vector<16x32xf32>
    %433 = arith.addf %430, %432 : vector<16x32xf32>
    %434 = vector.extract_strided_slice %410 {offsets = [7, 0, 0], sizes = [1, 16, 32], strides = [1, 1, 1]} : vector<12x16x32xf32> to vector<1x16x32xf32>
    %435 = vector.shape_cast %434 : vector<1x16x32xf32> to vector<16x32xf32>
    %436 = arith.addf %433, %435 : vector<16x32xf32>
    %437 = vector.extract_strided_slice %318 {offsets = [0, 1184], sizes = [16, 32], strides = [1, 1]} : vector<16x1280xf32> to vector<16x32xf32>
    %cst_63 = arith.constant 2.500000e-01 : f32
    %438 = vector.broadcast %cst_63 : f32 to vector<16x32xf32>
    %439 = arith.mulf %436, %438 : vector<16x32xf32>
    %440 = arith.addf %439, %437 : vector<16x32xf32>
    %441 = vector.extract_strided_slice %410 {offsets = [8, 0, 0], sizes = [1, 16, 32], strides = [1, 1, 1]} : vector<12x16x32xf32> to vector<1x16x32xf32>
    %442 = vector.shape_cast %441 : vector<1x16x32xf32> to vector<16x32xf32>
    %443 = vector.extract_strided_slice %410 {offsets = [9, 0, 0], sizes = [1, 16, 32], strides = [1, 1, 1]} : vector<12x16x32xf32> to vector<1x16x32xf32>
    %444 = vector.shape_cast %443 : vector<1x16x32xf32> to vector<16x32xf32>
    %445 = arith.addf %442, %444 : vector<16x32xf32>
    %446 = vector.extract_strided_slice %410 {offsets = [10, 0, 0], sizes = [1, 16, 32], strides = [1, 1, 1]} : vector<12x16x32xf32> to vector<1x16x32xf32>
    %447 = vector.shape_cast %446 : vector<1x16x32xf32> to vector<16x32xf32>
    %448 = arith.addf %445, %447 : vector<16x32xf32>
    %449 = vector.extract_strided_slice %410 {offsets = [11, 0, 0], sizes = [1, 16, 32], strides = [1, 1, 1]} : vector<12x16x32xf32> to vector<1x16x32xf32>
    %450 = vector.shape_cast %449 : vector<1x16x32xf32> to vector<16x32xf32>
    %451 = arith.addf %448, %450 : vector<16x32xf32>
    %452 = vector.extract_strided_slice %318 {offsets = [0, 1216], sizes = [16, 32], strides = [1, 1]} : vector<16x1280xf32> to vector<16x32xf32>
    %cst_64 = arith.constant 2.500000e-01 : f32
    %453 = vector.broadcast %cst_64 : f32 to vector<16x32xf32>
    %454 = arith.mulf %451, %453 : vector<16x32xf32>
    %455 = arith.addf %454, %452 : vector<16x32xf32>
    %456 = tpu.concatenate %425, %440, %455 in 0 : vector<16x32xf32>, vector<16x32xf32>, vector<16x32xf32> -> vector<48x32xf32>
    %457 = vector.extract_strided_slice %318 {offsets = [0, 1248], sizes = [16, 32], strides = [1, 1]} : vector<16x1280xf32> to vector<16x32xf32>
    %458 = tpu.concatenate %457, %457, %457 in 0 : vector<16x32xf32>, vector<16x32xf32>, vector<16x32xf32> -> vector<48x32xf32>
    %459 = tpu.concatenate %311, %311, %311 in 0 : vector<16x32xf32>, vector<16x32xf32>, vector<16x32xf32> -> vector<48x32xf32>
    %460 = arith.truncf %456 : vector<48x32xf32> to vector<48x32xbf16>
    %cst_65 = arith.constant dense<0.000000e+00> : vector<48x32xf32>
    %461 = tpu.matmul %460, %9, %cst_65 {dimension_numbers = #tpu.dot_dimension_numbers<[1], [0], [0], [1], [0, 0, 1, 1], [], []>} : vector<48x32xbf16>, vector<32x32xbf16>, vector<48x32xf32> -> vector<48x32xf32>
    %462 = arith.addf %461, %458 : vector<48x32xf32>
    %463 = arith.negf %462 : vector<48x32xf32>
    %464 = math.exp %463 : vector<48x32xf32>
    %cst_66 = arith.constant 1.000000e+00 : f32
    %465 = vector.broadcast %cst_66 : f32 to vector<48x32xf32>
    %466 = arith.addf %465, %464 : vector<48x32xf32>
    %467 = arith.divf %465, %466 : vector<48x32xf32>
    %468 = math.tanh %456 : vector<48x32xf32>
    %469 = arith.mulf %468, %467 : vector<48x32xf32>
    %cst_67 = arith.constant 1.000000e+00 : f32
    %470 = vector.broadcast %cst_67 : f32 to vector<48x32xf32>
    %471 = arith.subf %470, %467 : vector<48x32xf32>
    %472 = arith.mulf %459, %471 : vector<48x32xf32>
    %473 = arith.addf %469, %472 : vector<48x32xf32>
    %474 = arith.truncf %473 : vector<48x32xf32> to vector<48x32xbf16>
    %cst_68 = arith.constant dense<0.000000e+00> : vector<48x32xf32>
    %475 = tpu.matmul %474, %10, %cst_68 {dimension_numbers = #tpu.dot_dimension_numbers<[1], [0], [0], [1], [0, 0, 1, 1], [], []>} : vector<48x32xbf16>, vector<32x32xbf16>, vector<48x32xf32> -> vector<48x32xf32>
    %476 = arith.extf %11 : vector<1x32xbf16> to vector<1x32xf32>
    %477 = vector.broadcast %476 : vector<1x32xf32> to vector<48x32xf32>
    %478 = arith.addf %475, %477 : vector<48x32xf32>
    %479 = math.tanh %478 : vector<48x32xf32>
    %480 = arith.truncf %479 : vector<48x32xf32> to vector<48x32xbf16>
    %cst_69 = arith.constant dense<0.000000e+00> : vector<48x32xf32>
    %481 = tpu.matmul %480, %12, %cst_69 {dimension_numbers = #tpu.dot_dimension_numbers<[1], [0], [0], [1], [0, 0, 1, 1], [], []>} : vector<48x32xbf16>, vector<32x32xbf16>, vector<48x32xf32> -> vector<48x32xf32>
    %482 = vector.extract_strided_slice %481 {offsets = [0, 0], sizes = [16, 32], strides = [1, 1]} : vector<48x32xf32> to vector<16x32xf32>
    %cst_70 = arith.constant dense<0.000000e+00> : vector<32xf32>
    %483 = vector.multi_reduction <add>, %482, %cst_70 [0] : vector<16x32xf32> to vector<32xf32>
    %484 = vector.shape_cast %483 : vector<32xf32> to vector<1x32xf32>
    %cst_71 = arith.constant 1.600000e+01 : f32
    %485 = vector.broadcast %cst_71 : f32 to vector<1x32xf32>
    %486 = arith.divf %484, %485 : vector<1x32xf32>
    %487 = vector.extract_strided_slice %486 {offsets = [0, 0], sizes = [1, 2], strides = [1, 1]} : vector<1x32xf32> to vector<1x2xf32>
    %488 = vector.extract_strided_slice %481 {offsets = [16, 0], sizes = [16, 32], strides = [1, 1]} : vector<48x32xf32> to vector<16x32xf32>
    %cst_72 = arith.constant dense<0.000000e+00> : vector<32xf32>
    %489 = vector.multi_reduction <add>, %488, %cst_72 [0] : vector<16x32xf32> to vector<32xf32>
    %490 = vector.shape_cast %489 : vector<32xf32> to vector<1x32xf32>
    %cst_73 = arith.constant 1.600000e+01 : f32
    %491 = vector.broadcast %cst_73 : f32 to vector<1x32xf32>
    %492 = arith.divf %490, %491 : vector<1x32xf32>
    %493 = vector.extract_strided_slice %492 {offsets = [0, 0], sizes = [1, 2], strides = [1, 1]} : vector<1x32xf32> to vector<1x2xf32>
    %494 = vector.extract_strided_slice %481 {offsets = [32, 0], sizes = [16, 32], strides = [1, 1]} : vector<48x32xf32> to vector<16x32xf32>
    %cst_74 = arith.constant dense<0.000000e+00> : vector<32xf32>
    %495 = vector.multi_reduction <add>, %494, %cst_74 [0] : vector<16x32xf32> to vector<32xf32>
    %496 = vector.shape_cast %495 : vector<32xf32> to vector<1x32xf32>
    %cst_75 = arith.constant 1.600000e+01 : f32
    %497 = vector.broadcast %cst_75 : f32 to vector<1x32xf32>
    %498 = arith.divf %496, %497 : vector<1x32xf32>
    %499 = vector.extract_strided_slice %498 {offsets = [0, 0], sizes = [1, 2], strides = [1, 1]} : vector<1x32xf32> to vector<1x2xf32>
    %500 = arith.maximumf %487, %493 : vector<1x2xf32>
    %501 = arith.maximumf %500, %499 : vector<1x2xf32>
    %502 = arith.subf %487, %501 : vector<1x2xf32>
    %503 = math.exp %502 : vector<1x2xf32>
    %504 = arith.subf %493, %501 : vector<1x2xf32>
    %505 = math.exp %504 : vector<1x2xf32>
    %506 = arith.subf %499, %501 : vector<1x2xf32>
    %507 = math.exp %506 : vector<1x2xf32>
    %508 = arith.addf %503, %505 : vector<1x2xf32>
    %509 = arith.addf %508, %507 : vector<1x2xf32>
    %cst_76 = arith.constant 0.000000e+00 : f32
    %510 = vector.broadcast %cst_76 : f32 to vector<16x32xf32>
    %511 = arith.divf %503, %509 : vector<1x2xf32>
    %cst_77 = arith.constant dense<0.000000e+00> : vector<1xf32>
    %512 = vector.multi_reduction <add>, %511, %cst_77 [1] : vector<1x2xf32> to vector<1xf32>
    %513 = vector.shape_cast %512 : vector<1xf32> to vector<1x1xf32>
    %514 = vector.extract_strided_slice %473 {offsets = [0, 0], sizes = [16, 32], strides = [1, 1]} : vector<48x32xf32> to vector<16x32xf32>
    %515 = vector.broadcast %513 : vector<1x1xf32> to vector<16x32xf32>
    %516 = arith.mulf %514, %515 : vector<16x32xf32>
    %517 = arith.addf %510, %516 : vector<16x32xf32>
    %518 = arith.divf %505, %509 : vector<1x2xf32>
    %cst_78 = arith.constant dense<0.000000e+00> : vector<1xf32>
    %519 = vector.multi_reduction <add>, %518, %cst_78 [1] : vector<1x2xf32> to vector<1xf32>
    %520 = vector.shape_cast %519 : vector<1xf32> to vector<1x1xf32>
    %521 = vector.extract_strided_slice %473 {offsets = [16, 0], sizes = [16, 32], strides = [1, 1]} : vector<48x32xf32> to vector<16x32xf32>
    %522 = vector.broadcast %520 : vector<1x1xf32> to vector<16x32xf32>
    %523 = arith.mulf %521, %522 : vector<16x32xf32>
    %524 = arith.addf %517, %523 : vector<16x32xf32>
    %525 = arith.divf %507, %509 : vector<1x2xf32>
    %cst_79 = arith.constant dense<0.000000e+00> : vector<1xf32>
    %526 = vector.multi_reduction <add>, %525, %cst_79 [1] : vector<1x2xf32> to vector<1xf32>
    %527 = vector.shape_cast %526 : vector<1xf32> to vector<1x1xf32>
    %528 = vector.extract_strided_slice %473 {offsets = [32, 0], sizes = [16, 32], strides = [1, 1]} : vector<48x32xf32> to vector<16x32xf32>
    %529 = vector.broadcast %527 : vector<1x1xf32> to vector<16x32xf32>
    %530 = arith.mulf %528, %529 : vector<16x32xf32>
    %531 = arith.addf %524, %530 : vector<16x32xf32>
    %cst_80 = arith.constant 5.000000e-01 : f32
    %532 = vector.broadcast %cst_80 : f32 to vector<16x32xf32>
    %533 = arith.mulf %531, %532 : vector<16x32xf32>
    %cst_81 = arith.constant 0.000000e+00 : f32
    %534 = vector.broadcast %cst_81 : f32 to vector<16x32xf32>
    %535 = arith.cmpf oge, %533, %534 : vector<16x32xf32>
    %cst_82 = arith.constant 0.00999999977 : f32
    %536 = vector.broadcast %cst_82 : f32 to vector<16x32xf32>
    %537 = arith.mulf %536, %533 : vector<16x32xf32>
    %538 = arith.select %535, %533, %537 : vector<16x32xi1>, vector<16x32xf32>
    %539 = arith.truncf %538 : vector<16x32xf32> to vector<16x32xbf16>
    %cst_83 = arith.constant dense<0.000000e+00> : vector<16x32xf32>
    %540 = tpu.matmul %539, %13, %cst_83 {dimension_numbers = #tpu.dot_dimension_numbers<[1], [0], [0], [1], [0, 0, 1, 1], [], []>} : vector<16x32xbf16>, vector<32x32xbf16>, vector<16x32xf32> -> vector<16x32xf32>
    %541 = arith.extf %14 : vector<1x32xbf16> to vector<1x32xf32>
    %542 = vector.broadcast %541 : vector<1x32xf32> to vector<16x32xf32>
    %543 = arith.addf %540, %542 : vector<16x32xf32>
    %cst_84 = arith.constant 0.000000e+00 : f32
    %544 = vector.broadcast %cst_84 : f32 to vector<16x32xf32>
    %545 = arith.cmpf oge, %543, %544 : vector<16x32xf32>
    %cst_85 = arith.constant 0.00999999977 : f32
    %546 = vector.broadcast %cst_85 : f32 to vector<16x32xf32>
    %547 = arith.mulf %546, %543 : vector<16x32xf32>
    %548 = arith.select %545, %543, %547 : vector<16x32xi1>, vector<16x32xf32>
    %549 = arith.truncf %548 : vector<16x32xf32> to vector<16x32xbf16>
    %cst_86 = arith.constant dense<0.000000e+00> : vector<16x32xf32>
    %550 = tpu.matmul %549, %15, %cst_86 {dimension_numbers = #tpu.dot_dimension_numbers<[1], [0], [0], [1], [0, 0, 1, 1], [], []>} : vector<16x32xbf16>, vector<32x32xbf16>, vector<16x32xf32> -> vector<16x32xf32>
    %551 = arith.extf %16 : vector<1x32xbf16> to vector<1x32xf32>
    %552 = vector.broadcast %551 : vector<1x32xf32> to vector<16x32xf32>
    %553 = arith.addf %550, %552 : vector<16x32xf32>
    %554 = vector.extract_strided_slice %553 {offsets = [0, 0], sizes = [16, 2], strides = [1, 1]} : vector<16x32xf32> to vector<16x2xf32>
    %c0_87 = arith.constant 0 : index
    %c0_88 = arith.constant 0 : index
    %555 = vector.load %arg4[%c0_87, %c0_88] : memref<16x2xf32, #tpu.memory_space<vmem>>, vector<16x2xf32>
    tpu.vector_store %arg4[%c0_87, %c0_88], %554 {strides = array<i32>} : memref<16x2xf32, #tpu.memory_space<vmem>>, vector<16x2xf32>,
    return
  }
}

</mosaic_0001>

<llo_original>
// kernel: rgt_forward.1
$region0: #{rgt_forward.1}
  #allocation0 [shape = 'u32[]', space=smem, size = 0x4, offset = 0x4, fixed_abs, tag = 'smem constant byte address 0x4 - core index']
  #allocation1 [shape = 'u32[144,128]{1,0:T(1,128)}', space=vmem, size = 0x12000, scoped, tag = 'internal scratch']
  %s0 = inlined_call_operand.vmem [shape: f32[16,48], index: 0, kind: input, shape index: {}]
  %s1 = inlined_call_operand.vmem [shape: f32[3,16,16], index: 1, kind: input, shape index: {}]
  %s2 = inlined_call_operand.vmem [shape: bf16[342,32], index: 2, kind: input, shape index: {}]
  %s3 = inlined_call_operand.vmem [shape: bf16[66,1280], index: 3, kind: input, shape index: {}]
  %s4 = inlined_call_operand.vmem [shape: f32[16,2], index: 4, kind: output, shape index: {}]
  %s5 = sld [smem:[#allocation0]]
  $region26: #{rgt_forward.1} parent=0
    _
  %s7 = ssub.s32 1, %s5
  %s8 = scalar_select 0, %s7, %s5
  // Predicated region
  $region2: #{rgt_forward.1} parent=0 // pred_check
    _
  $region3: #{rgt_forward.1} parent=0 // pred_check_branch
    %10 = sbr.rel (0) target = $region5
  $region4: #{rgt_forward.1} parent=0 // pred_region
    _
  $region5: #{rgt_forward.1} parent=0 // pred_fallthru
    _
  // Predicated region
  $region6: #{rgt_forward.1} parent=0 // pred_check
    _
  $region7: #{rgt_forward.1} parent=0 // pred_check_branch
    %12 = sbr.rel (0) target = $region9
  $region8: #{rgt_forward.1} parent=0 // pred_region
    _
  $region9: #{rgt_forward.1} parent=0 // pred_fallthru
    _
  // Predicated region
  $region10: #{rgt_forward.1} parent=0 // pred_check
    _
  $region11: #{rgt_forward.1} parent=0 // pred_check_branch
    %14 = sbr.rel (0) target = $region13
  $region12: #{rgt_forward.1} parent=0 // pred_region
    _
  $region13: #{rgt_forward.1} parent=0 // pred_fallthru
    _
  // Predicated region
  $region14: #{rgt_forward.1} parent=0 // pred_check
    _
  $region15: #{rgt_forward.1} parent=0 // pred_check_branch
    %16 = sbr.rel (0) target = $region17
  $region16: #{rgt_forward.1} parent=0 // pred_region
    _
  $region17: #{rgt_forward.1} parent=0 // pred_fallthru
    _
  %v18 = vld [vmem:[%s2] sm:$0xf]
  %v19 = vld [vmem:[%s2 + $0x4] sm:$0xf]
  %v20 = vld [vmem:[%s2 + $0x8] sm:$0xf]
  %v21 = vld [vmem:[%s2 + $0xc] sm:$0xf]
  %v22 = vld [vmem:[%s2 + $0x10] sm:$0xf]
  %v23 = vld [vmem:[%s2 + $0x14] sm:$0xf]
  %v24 = vld [vmem:[%s2 + $0x18] sm:$0xf]
  %v25 = vld [vmem:[%s2 + $0x1c] sm:$0xf]
  %v26 = vld [vmem:[%s2 + $0x20] sm:$0xf]
  %v27 = vld [vmem:[%s2 + $0x24] sm:$0xf]
  %v28 = vld [vmem:[%s2 + $0x28] sm:$0xf]
  %v29 = vld [vmem:[%s2 + $0x2c] sm:$0xf]
  %v30 = vld [vmem:[%s2 + $0x30] sm:$0xf]
  %v31 = vld [vmem:[%s2 + $0x34] sm:$0xf]
  %v32 = vld [vmem:[%s2 + $0x38] sm:$0xf]
  %v33 = vld [vmem:[%s2 + $0x3c] sm:$0xf]
  %v34 = vld [vmem:[%s2 + $0x40] sm:$0xf]
  %v35 = vld [vmem:[%s2 + $0x44] sm:$0xf]
  %v36 = vld [vmem:[%s2 + $0x48] sm:$0xf]
  %v37 = vld [vmem:[%s2 + $0x4c] sm:$0xf]
  %v38 = vld [vmem:[%s2 + $0x50] sm:$0xf]
  %v39 = vld [vmem:[%s2 + $0x54] sm:$0xf]
  %v40 = vld [vmem:[%s2 + $0x58] sm:$0xf]
  %v41 = vld [vmem:[%s2 + $0x5c] sm:$0xf]
  %v42 = vld [vmem:[%s2 + $0x60] sm:$0xf]
  %v43 = vld [vmem:[%s2 + $0x64] sm:$0xf]
  %v44 = vld [vmem:[%s2 + $0x68] sm:$0xf]
  %v45 = vld [vmem:[%s2 + $0x6c] sm:$0xf]
  %v46 = vld [vmem:[%s2 + $0x70] sm:$0xf]
  %v47 = vld [vmem:[%s2 + $0x74] sm:$0xf]
  %v48 = vld [vmem:[%s2 + $0x78] sm:$0xf]
  %v49 = vld [vmem:[%s2 + $0x7c] sm:$0xf]
  %v50 = vld [vmem:[%s2 + $0x80] sm:$0xf]
  %v51 = vld [vmem:[%s2 + $0x84] sm:$0xf]
  %v52 = vld [vmem:[%s2 + $0x88] sm:$0xf]
  %v53 = vld [vmem:[%s2 + $0x8c] sm:$0xf]
  %v54 = vld [vmem:[%s2 + $0x90] sm:$0xf]
  %v55 = vld [vmem:[%s2 + $0x94] sm:$0xf]
  %v56 = vld [vmem:[%s2 + $0x98] sm:$0xf]
  %v57 = vld [vmem:[%s2 + $0x9c] sm:$0xf]
  %v58 = vld [vmem:[%s2 + $0xa0] sm:$0xf]
  %v59 = vld [vmem:[%s2 + $0xa4] sm:$0xf]
  %v60 = vld [vmem:[%s2 + $0xa8] sm:$0x7]
  %v61 = vld [vmem:[%s0] sm:$0xff]
  %v62 = vld [vmem:[%s0 + $0x8] sm:$0xff]
  %v63 = vpack.c.bf16 %v62, %v61
  %v64 = vunpack.c.l.bf16 %v24
  %v65 = vlaneseq
  %v66 = vshrl.u32 %v65, 7
  %v67 = vsub.s32 0, %v66
  %v68 = vrot.slane %v64, %v67
  %v75 = vunpack.c.l.b16 %v18
  %v76 = vunpack.c.l.b16 %v19
  %v77 = vunpack.c.l.b16 %v20
  %v78 = vunpack.c.l.b16 %v21
  %v79 = vunpack.c.l.b16 %v22
  %v80 = vunpack.c.l.b16 %v23
  %v81 = vpack.c.b16 %v76, %v75
  %v82 = vpack.c.b16 %v78, %v77
  %v83 = vpack.c.b16 %v80, %v79
  %vm87 = vcmask 392192
  %v89 = vsel %vm87, %v63, 0
  %91 = vmatprep.subr.bf16.mxu0 0
  %92 = vmatpush1.bf16.msra.mxu0 0
  %93 = vmatprep.subr.bf16.mxu0 0
  %94 = vmatpush1.bf16.msra.mxu0 0
  %95 = vmatprep.subr.bf16.mxu0 0
  %96 = vmatpush1.bf16.msra.mxu0 0
  %97 = vmatprep.subr.bf16.mxu0 0
  %98 = vmatpush1.bf16.msra.mxu0 0
  %99 = vmatprep.subr.bf16.mxu0 0
  %100 = vmatpush1.bf16.msra.mxu0 0
  %101 = vmatprep.subr.bf16.mxu0 0
  %102 = vmatpush1.bf16.msra.mxu0 %v83
  %103 = vmatprep.subr.bf16.mxu0 0
  %104 = vmatpush1.bf16.msra.mxu0 %v82
  %105 = vmatprep.subr.bf16.mxu0 0
  %106 = vmatpush1.bf16.msra.mxu0 %v81
  %107 = vmatprep.subr.bf16.mxu0 0
  %108 = vmatpush2.bf16.msra.mxu0 0
  %109 = vmatprep.subr.bf16.mxu0 0
  %110 = vmatpush2.bf16.msra.mxu0 0
  %111 = vmatprep.subr.bf16.mxu0 0
  %112 = vmatpush2.bf16.msra.mxu0 0
  %113 = vmatprep.subr.bf16.mxu0 0
  %114 = vmatpush2.bf16.msra.mxu0 0
  %115 = vmatprep.subr.bf16.mxu0 0
  %116 = vmatpush2.bf16.msra.mxu0 0
  %117 = vmatprep.subr.bf16.mxu0 0
  %118 = vmatpush2.bf16.msra.mxu0 0
  %119 = vmatprep.subr.bf16.mxu0 0
  %120 = vmatpush2.bf16.msra.mxu0 0
  %121 = vmatprep.subr.bf16.mxu0 0
  %122 = vmatpush2.bf16.msra.mxu0 0
  %123 = vmatprep.mubr.bf16.mxu0 0
  %124 = vmatmul.mubr.bf16.gmra.mxu0 %v89
  %v125 = vpop.f32.mrf.mxu0
  %v126 = vadd.f32 %v68, %v125
  %v127 = vpop.f32.mrf.mxu0
  %v128 = vpop.f32.mrf.mxu0
  %v129 = vadd.f32 %v68, %v128
  %v130 = vpop.f32.mrf.mxu0
  %131 = vdwg.mxu0
  %vm132 = vcmp.ge.f32.partialorder %v126, 0.0
  %vm133 = vcmp.ge.f32.partialorder %v129, 0.0
  %v134 = vmul.f32 %v126, 0.01
  %v135 = vmul.f32 %v129, 0.01
  %v136 = vsel %vm132, %v126, %v134
  %v137 = vsel %vm133, %v129, %v135
  %v138 = vpack.c.bf16 %v137, %v136
  %v139 = vunpack.c.l.bf16 %v28
  %v140 = vlaneseq
  %v141 = vshrl.u32 %v140, 7
  %v142 = vsub.s32 1, %v141
  %v143 = vrot.slane %v139, %v142
  %v149 = vunpack.c.l.b16 %v24
  %v150 = vunpack.c.l.b16 %v25
  %v151 = vunpack.c.l.b16 %v26
  %v152 = vunpack.c.l.b16 %v27
  %v153 = vunpack.c.l.b16 %v28
  %v154 = vpack.c.b16 %v150, %v149
  %v155 = vpack.c.b16 %v152, %v151
  %v156 = vpack.c.b16 %v153, %v153
  %vm157 = vsmask.f32 7424
  %v159 = vshrl.u32 %v154, 16
  %v161 = vshll.u32 %v154, 16
  %v163 = vrot.slane %v161, 1
  %v164 = vor.u32 %v159, %v163
  %v166 = vshll.u32 %v155, 16
  %v168 = vrot.slane %v166, 1
  %v169 = vsel %vm157, %v164, %v168
  %v170 = vshrl.u32 %v155, 16
  %v172 = vor.u32 %v170, %v168
  %v174 = vshll.u32 %v156, 16
  %v176 = vrot.slane %v174, 1
  %v177 = vsel %vm157, %v172, %v176
  %vm180 = vcmask 261120
  %v182 = vsel %vm180, %v138, 0
  %184 = vmatprep.subr.bf16.mxu0 0
  %185 = vmatpush1.bf16.msra.mxu0 0
  %186 = vmatprep.subr.bf16.mxu0 0
  %187 = vmatpush1.bf16.msra.mxu0 0
  %188 = vmatprep.subr.bf16.mxu0 0
  %189 = vmatpush1.bf16.msra.mxu0 0
  %190 = vmatprep.subr.bf16.mxu0 0
  %191 = vmatpush1.bf16.msra.mxu0 0
  %192 = vmatprep.subr.bf16.mxu0 0
  %193 = vmatpush1.bf16.msra.mxu0 0
  %194 = vmatprep.subr.bf16.mxu0 0
  %195 = vmatpush1.bf16.msra.mxu0 0
  %196 = vmatprep.subr.bf16.mxu0 0
  %197 = vmatpush1.bf16.msra.mxu0 %v177
  %198 = vmatprep.subr.bf16.mxu0 0
  %199 = vmatpush1.bf16.msra.mxu0 %v169
  %200 = vmatprep.subr.bf16.mxu0 0
  %201 = vmatpush2.bf16.msra.mxu0 0
  %202 = vmatprep.subr.bf16.mxu0 0
  %203 = vmatpush2.bf16.msra.mxu0 0
  %204 = vmatprep.subr.bf16.mxu0 0
  %205 = vmatpush2.bf16.msra.mxu0 0
  %206 = vmatprep.subr.bf16.mxu0 0
  %207 = vmatpush2.bf16.msra.mxu0 0
  %208 = vmatprep.subr.bf16.mxu0 0
  %209 = vmatpush2.bf16.msra.mxu0 0
  %210 = vmatprep.subr.bf16.mxu0 0
  %211 = vmatpush2.bf16.msra.mxu0 0
  %212 = vmatprep.subr.bf16.mxu0 0
  %213 = vmatpush2.bf16.msra.mxu0 0
  %214 = vmatprep.subr.bf16.mxu0 0
  %215 = vmatpush2.bf16.msra.mxu0 0
  %216 = vmatprep.mubr.bf16.mxu0 0
  %217 = vmatmul.mubr.bf16.gmra.mxu0 %v182
  %v218 = vpop.f32.mrf.mxu0
  %v219 = vadd.f32 %v143, %v218
  %v220 = vpop.f32.mrf.mxu0
  %v221 = vpop.f32.mrf.mxu0
  %v222 = vadd.f32 %v143, %v221
  %v223 = vpop.f32.mrf.mxu0
  %224 = vdwg.mxu0
  %vm225 = vcmp.ge.f32.partialorder %v219, 0.0
  %vm226 = vcmp.ge.f32.partialorder %v222, 0.0
  %v227 = vmul.f32 %v219, 0.01
  %v228 = vmul.f32 %v222, 0.01
  %v229 = vsel %vm225, %v219, %v227
  %v230 = vsel %vm226, %v222, %v228
  %v231 = vld [vmem:[%s1] sm:$0xff]
  %v232 = vld [vmem:[%s1 + $0x8] sm:$0xff]
  %s233 = scalar_lea.vmem %s1, 16
  %v234 = vld [vmem:[%s233] sm:$0xff]
  %v235 = vld [vmem:[%s233 + $0x8] sm:$0xff]
  %s236 = scalar_lea.vmem %s1, 32
  %v237 = vld [vmem:[%s236] sm:$0xff]
  %v238 = vld [vmem:[%s236 + $0x8] sm:$0xff]
  %vm239 = vcmp.gt.f32.partialorder %v231, 0.0
  %vm240 = vcmp.gt.f32.partialorder %v232, 0.0
  %v241 = vsel %vm239, 0.0, -1e+30
  %v242 = vsel %vm240, 0.0, -1e+30
  %vm243 = vcmp.gt.f32.partialorder %v234, 0.0
  %vm244 = vcmp.gt.f32.partialorder %v235, 0.0
  %v245 = vsel %vm243, 0.0, -1e+30
  %v246 = vsel %vm244, 0.0, -1e+30
  %vm247 = vcmp.gt.f32.partialorder %v237, 0.0
  %vm248 = vcmp.gt.f32.partialorder %v238, 0.0
  %v249 = vsel %vm247, 0.0, -1e+30
  %v250 = vsel %vm248, 0.0, -1e+30
  %v251 = vld [vmem:[%s3] sm:$0xff]
  %v252 = vld [vmem:[%s3 + $0x8] sm:$0xff]
  %v253 = vld [vmem:[%s3 + $0x10] sm:$0xff]
  %v254 = vld [vmem:[%s3 + $0x18] sm:$0xff]
  %v255 = vld [vmem:[%s3 + $0x20] sm:$0xff]
  %v256 = vld [vmem:[%s3 + $0x28] sm:$0xff]
  %v257 = vld [vmem:[%s3 + $0x30] sm:$0xff]
  %v258 = vld [vmem:[%s3 + $0x38] sm:$0xff]
  %v259 = vld [vmem:[%s3 + $0x40] sm:$0xff]
  %v260 = vld [vmem:[%s3 + $0x48] sm:$0xff]
  %v261 = vld [vmem:[%s3 + $0x50] sm:$0xff]
  %v262 = vld [vmem:[%s3 + $0x58] sm:$0xff]
  %v263 = vld [vmem:[%s3 + $0x60] sm:$0xff]
  %v264 = vld [vmem:[%s3 + $0x68] sm:$0xff]
  %v265 = vld [vmem:[%s3 + $0x70] sm:$0xff]
  %v266 = vld [vmem:[%s3 + $0x78] sm:$0xff]
  %v267 = vld [vmem:[%s3 + $0x80] sm:$0xff]
  %v268 = vld [vmem:[%s3 + $0x88] sm:$0xff]
  %v269 = vld [vmem:[%s3 + $0x90] sm:$0xff]
  %v270 = vld [vmem:[%s3 + $0x98] sm:$0xff]
  %v271 = vld [vmem:[%s3 + $0xa0] sm:$0x11]
  %v272 = vld [vmem:[%s3 + $0xa8] sm:$0x11]
  %v273 = vld [vmem:[%s3 + $0xb0] sm:$0x11]
  %v274 = vld [vmem:[%s3 + $0xb8] sm:$0x11]
  %v275 = vld [vmem:[%s3 + $0xc0] sm:$0x11]
  %v276 = vpack.c.bf16 %v230, %v229
  %v277 = vunpack.c.l.bf16 %v271
  %v278 = vunpack.c.h.bf16 %v271
  %v279 = vunpack.c.l.bf16 %v272
  %v280 = vunpack.c.h.bf16 %v272
  %v281 = vunpack.c.l.bf16 %v273
  %v282 = vunpack.c.h.bf16 %v273
  %v283 = vunpack.c.l.bf16 %v274
  %v284 = vunpack.c.h.bf16 %v274
  %v285 = vunpack.c.l.bf16 %v275
  %v286 = vunpack.c.h.bf16 %v275
  %v287 = vlaneseq
  %v288 = vshrl.u32 %v287, 7
  %v289 = vsub.s32 0, %v288
  %v290 = vrot.slane %v277, %v289
  %v291 = vlaneseq
  %v292 = vshrl.u32 %v291, 7
  %v293 = vsub.s32 0, %v292
  %v294 = vrot.slane %v278, %v293
  %v295 = vlaneseq
  %v296 = vshrl.u32 %v295, 7
  %v297 = vsub.s32 0, %v296
  %v298 = vrot.slane %v279, %v297
  %v299 = vlaneseq
  %v300 = vshrl.u32 %v299, 7
  %v301 = vsub.s32 0, %v300
  %v302 = vrot.slane %v280, %v301
  %v303 = vlaneseq
  %v304 = vshrl.u32 %v303, 7
  %v305 = vsub.s32 0, %v304
  %v306 = vrot.slane %v281, %v305
  %v307 = vlaneseq
  %v308 = vshrl.u32 %v307, 7
  %v309 = vsub.s32 0, %v308
  %v310 = vrot.slane %v282, %v309
  %v311 = vlaneseq
  %v312 = vshrl.u32 %v311, 7
  %v313 = vsub.s32 0, %v312
  %v314 = vrot.slane %v283, %v313
  %v315 = vlaneseq
  %v316 = vshrl.u32 %v315, 7
  %v317 = vsub.s32 0, %v316
  %v318 = vrot.slane %v284, %v317
  %v319 = vlaneseq
  %v320 = vshrl.u32 %v319, 7
  %v321 = vsub.s32 0, %v320
  %v322 = vrot.slane %v285, %v321
  %v323 = vlaneseq
  %v324 = vshrl.u32 %v323, 7
  %v325 = vsub.s32 0, %v324
  %v326 = vrot.slane %v286, %v325
  %v347 = vunpack.c.l.b16 %v251
  %v348 = vunpack.c.h.b16 %v251
  %v349 = vunpack.c.l.b16 %v252
  %v350 = vunpack.c.h.b16 %v252
  %v351 = vunpack.c.l.b16 %v253
  %v352 = vunpack.c.h.b16 %v253
  %v353 = vunpack.c.l.b16 %v254
  %v354 = vunpack.c.h.b16 %v254
  %v355 = vunpack.c.l.b16 %v255
  %v356 = vunpack.c.h.b16 %v255
  %v357 = vunpack.c.l.b16 %v256
  %v358 = vunpack.c.h.b16 %v256
  %v359 = vunpack.c.l.b16 %v257
  %v360 = vunpack.c.h.b16 %v257
  %v361 = vunpack.c.l.b16 %v258
  %v362 = vunpack.c.h.b16 %v258
  %v363 = vunpack.c.l.b16 %v259
  %v364 = vunpack.c.h.b16 %v259
  %v365 = vunpack.c.l.b16 %v260
  %v366 = vunpack.c.h.b16 %v260
  %v367 = vunpack.c.l.b16 %v261
  %v368 = vunpack.c.h.b16 %v261
  %v369 = vunpack.c.l.b16 %v262
  %v370 = vunpack.c.h.b16 %v262
  %v371 = vunpack.c.l.b16 %v263
  %v372 = vunpack.c.h.b16 %v263
  %v373 = vunpack.c.l.b16 %v264
  %v374 = vunpack.c.h.b16 %v264
  %v375 = vunpack.c.l.b16 %v265
  %v376 = vunpack.c.h.b16 %v265
  %v377 = vunpack.c.l.b16 %v266
  %v378 = vunpack.c.h.b16 %v266
  %v379 = vunpack.c.l.b16 %v267
  %v380 = vunpack.c.h.b16 %v267
  %v381 = vunpack.c.l.b16 %v268
  %v382 = vunpack.c.h.b16 %v268
  %v383 = vunpack.c.l.b16 %v269
  %v384 = vunpack.c.h.b16 %v269
  %v385 = vunpack.c.l.b16 %v270
  %v386 = vunpack.c.h.b16 %v270
  %v387 = vpack.c.b16 %v357, %v347
  %v388 = vpack.c.b16 %v358, %v348
  %v389 = vpack.c.b16 %v359, %v349
  %v390 = vpack.c.b16 %v360, %v350
  %v391 = vpack.c.b16 %v361, %v351
  %v392 = vpack.c.b16 %v362, %v352
  %v393 = vpack.c.b16 %v363, %v353
  %v394 = vpack.c.b16 %v364, %v354
  %v395 = vpack.c.b16 %v365, %v355
  %v396 = vpack.c.b16 %v366, %v356
  %v397 = vpack.c.b16 %v377, %v367
  %v398 = vpack.c.b16 %v378, %v368
  %v399 = vpack.c.b16 %v379, %v369
  %v400 = vpack.c.b16 %v380, %v370
  %v401 = vpack.c.b16 %v381, %v371
  %v402 = vpack.c.b16 %v382, %v372
  %v403 = vpack.c.b16 %v383, %v373
  %v404 = vpack.c.b16 %v384, %v374
  %v405 = vpack.c.b16 %v385, %v375
  %v406 = vpack.c.b16 %v386, %v376
  %v428 = vsel %vm180, %v276, 0
  %430 = vmatprep.subr.bf16.mxu0 0
  %431 = vmatpush1.bf16.msra.mxu0 0
  %432 = vmatprep.subr.bf16.mxu0 0
  %433 = vmatpush1.bf16.msra.mxu0 0
  %434 = vmatprep.subr.bf16.mxu0 0
  %435 = vmatpush1.bf16.msra.mxu0 0
  %436 = vmatprep.subr.bf16.mxu0 0
  %437 = vmatpush1.bf16.msra.mxu0 0
  %438 = vmatprep.subr.bf16.mxu0 0
  %439 = vmatpush1.bf16.msra.mxu0 0
  %440 = vmatprep.subr.bf16.mxu0 0
  %441 = vmatpush1.bf16.msra.mxu0 0
  %442 = vmatprep.subr.bf16.mxu0 %v398
  %443 = vmatpush1.bf16.msra.mxu0 %v397
  %444 = vmatprep.subr.bf16.mxu0 %v388
  %445 = vmatpush1.bf16.msra.mxu0 %v387
  %446 = vmatprep.subr.bf16.mxu0 0
  %447 = vmatpush2.bf16.msra.mxu0 0
  %448 = vmatprep.subr.bf16.mxu0 0
  %449 = vmatpush2.bf16.msra.mxu0 0
  %450 = vmatprep.subr.bf16.mxu0 0
  %451 = vmatpush2.bf16.msra.mxu0 0
  %452 = vmatprep.subr.bf16.mxu0 0
  %453 = vmatpush2.bf16.msra.mxu0 0
  %454 = vmatprep.subr.bf16.mxu0 0
  %455 = vmatpush2.bf16.msra.mxu0 0
  %456 = vmatprep.subr.bf16.mxu0 0
  %457 = vmatpush2.bf16.msra.mxu0 0
  %458 = vmatprep.subr.bf16.mxu0 0
  %459 = vmatpush2.bf16.msra.mxu0 0
  %460 = vmatprep.subr.bf16.mxu0 0
  %461 = vmatpush2.bf16.msra.mxu0 0
  %462 = vmatprep.mubr.bf16.mxu0 0
  %463 = vmatmul.mubr.bf16.gmra.mxu0 %v428
  %v464 = vpop.f32.mrf.mxu0
  %v465 = vadd.f32 %v290, %v464
  %v466 = vpop.f32.mrf.mxu0
  %v467 = vadd.f32 %v294, %v466
  %v468 = vpop.f32.mrf.mxu0
  %v469 = vadd.f32 %v290, %v468
  %v470 = vpop.f32.mrf.mxu0
  %v471 = vadd.f32 %v294, %v470
  %472 = vdwg.mxu0
  %473 = vmatprep.subr.bf16.mxu0 0
  %474 = vmatpush1.bf16.msra.mxu0 0
  %475 = vmatprep.subr.bf16.mxu0 0
  %476 = vmatpush1.bf16.msra.mxu0 0
  %477 = vmatprep.subr.bf16.mxu0 0
  %478 = vmatpush1.bf16.msra.mxu0 0
  %479 = vmatprep.subr.bf16.mxu0 0
  %480 = vmatpush1.bf16.msra.mxu0 0
  %481 = vmatprep.subr.bf16.mxu0 0
  %482 = vmatpush1.bf16.msra.mxu0 0
  %483 = vmatprep.subr.bf16.mxu0 0
  %484 = vmatpush1.bf16.msra.mxu0 0
  %485 = vmatprep.subr.bf16.mxu0 %v400
  %486 = vmatpush1.bf16.msra.mxu0 %v399
  %487 = vmatprep.subr.bf16.mxu0 %v390
  %488 = vmatpush1.bf16.msra.mxu0 %v389
  %489 = vmatprep.subr.bf16.mxu0 0
  %490 = vmatpush2.bf16.msra.mxu0 0
  %491 = vmatprep.subr.bf16.mxu0 0
  %492 = vmatpush2.bf16.msra.mxu0 0
  %493 = vmatprep.subr.bf16.mxu0 0
  %494 = vmatpush2.bf16.msra.mxu0 0
  %495 = vmatprep.subr.bf16.mxu0 0
  %496 = vmatpush2.bf16.msra.mxu0 0
  %497 = vmatprep.subr.bf16.mxu0 0
  %498 = vmatpush2.bf16.msra.mxu0 0
  %499 = vmatprep.subr.bf16.mxu0 0
  %500 = vmatpush2.bf16.msra.mxu0 0
  %501 = vmatprep.subr.bf16.mxu0 0
  %502 = vmatpush2.bf16.msra.mxu0 0
  %503 = vmatprep.subr.bf16.mxu0 0
  %504 = vmatpush2.bf16.msra.mxu0 0
  %505 = vmatprep.mubr.bf16.mxu0 0
  %506 = vmatmul.mubr.bf16.gmra.mxu0 %v428
  %v507 = vpop.f32.mrf.mxu0
  %v508 = vadd.f32 %v298, %v507
  %v509 = vpop.f32.mrf.mxu0
  %v510 = vadd.f32 %v302, %v509
  %v511 = vpop.f32.mrf.mxu0
  %v512 = vadd.f32 %v298, %v511
  %v513 = vpop.f32.mrf.mxu0
  %v514 = vadd.f32 %v302, %v513
  %515 = vdwg.mxu0
  %516 = vmatprep.subr.bf16.mxu0 0
  %517 = vmatpush1.bf16.msra.mxu0 0
  %518 = vmatprep.subr.bf16.mxu0 0
  %519 = vmatpush1.bf16.msra.mxu0 0
  %520 = vmatprep.subr.bf16.mxu0 0
  %521 = vmatpush1.bf16.msra.mxu0 0
  %522 = vmatprep.subr.bf16.mxu0 0
  %523 = vmatpush1.bf16.msra.mxu0 0
  %524 = vmatprep.subr.bf16.mxu0 0
  %525 = vmatpush1.bf16.msra.mxu0 0
  %526 = vmatprep.subr.bf16.mxu0 0
  %527 = vmatpush1.bf16.msra.mxu0 0
  %528 = vmatprep.subr.bf16.mxu0 %v402
  %529 = vmatpush1.bf16.msra.mxu0 %v401
  %530 = vmatprep.subr.bf16.mxu0 %v392
  %531 = vmatpush1.bf16.msra.mxu0 %v391
  %532 = vmatprep.subr.bf16.mxu0 0
  %533 = vmatpush2.bf16.msra.mxu0 0
  %534 = vmatprep.subr.bf16.mxu0 0
  %535 = vmatpush2.bf16.msra.mxu0 0
  %536 = vmatprep.subr.bf16.mxu0 0
  %537 = vmatpush2.bf16.msra.mxu0 0
  %538 = vmatprep.subr.bf16.mxu0 0
  %539 = vmatpush2.bf16.msra.mxu0 0
  %540 = vmatprep.subr.bf16.mxu0 0
  %541 = vmatpush2.bf16.msra.mxu0 0
  %542 = vmatprep.subr.bf16.mxu0 0
  %543 = vmatpush2.bf16.msra.mxu0 0
  %544 = vmatprep.subr.bf16.mxu0 0
  %545 = vmatpush2.bf16.msra.mxu0 0
  %546 = vmatprep.subr.bf16.mxu0 0
  %547 = vmatpush2.bf16.msra.mxu0 0
  %548 = vmatprep.mubr.bf16.mxu0 0
  %549 = vmatmul.mubr.bf16.gmra.mxu0 %v428
  %v550 = vpop.f32.mrf.mxu0
  %v551 = vadd.f32 %v306, %v550
  %v552 = vpop.f32.mrf.mxu0
  %v553 = vadd.f32 %v310, %v552
  %v554 = vpop.f32.mrf.mxu0
  %v555 = vadd.f32 %v306, %v554
  %v556 = vpop.f32.mrf.mxu0
  %v557 = vadd.f32 %v310, %v556
  %558 = vdwg.mxu0
  %559 = vmatprep.subr.bf16.mxu0 0
  %560 = vmatpush1.bf16.msra.mxu0 0
  %561 = vmatprep.subr.bf16.mxu0 0
  %562 = vmatpush1.bf16.msra.mxu0 0
  %563 = vmatprep.subr.bf16.mxu0 0
  %564 = vmatpush1.bf16.msra.mxu0 0
  %565 = vmatprep.subr.bf16.mxu0 0
  %566 = vmatpush1.bf16.msra.mxu0 0
  %567 = vmatprep.subr.bf16.mxu0 0
  %568 = vmatpush1.bf16.msra.mxu0 0
  %569 = vmatprep.subr.bf16.mxu0 0
  %570 = vmatpush1.bf16.msra.mxu0 0
  %571 = vmatprep.subr.bf16.mxu0 %v404
  %572 = vmatpush1.bf16.msra.mxu0 %v403
  %573 = vmatprep.subr.bf16.mxu0 %v394
  %574 = vmatpush1.bf16.msra.mxu0 %v393
  %575 = vmatprep.subr.bf16.mxu0 0
  %576 = vmatpush2.bf16.msra.mxu0 0
  %577 = vmatprep.subr.bf16.mxu0 0
  %578 = vmatpush2.bf16.msra.mxu0 0
  %579 = vmatprep.subr.bf16.mxu0 0
  %580 = vmatpush2.bf16.msra.mxu0 0
  %581 = vmatprep.subr.bf16.mxu0 0
  %582 = vmatpush2.bf16.msra.mxu0 0
  %583 = vmatprep.subr.bf16.mxu0 0
  %584 = vmatpush2.bf16.msra.mxu0 0
  %585 = vmatprep.subr.bf16.mxu0 0
  %586 = vmatpush2.bf16.msra.mxu0 0
  %587 = vmatprep.subr.bf16.mxu0 0
  %588 = vmatpush2.bf16.msra.mxu0 0
  %589 = vmatprep.subr.bf16.mxu0 0
  %590 = vmatpush2.bf16.msra.mxu0 0
  %591 = vmatprep.mubr.bf16.mxu0 0
  %592 = vmatmul.mubr.bf16.gmra.mxu0 %v428
  %v593 = vpop.f32.mrf.mxu0
  %v594 = vadd.f32 %v314, %v593
  %v595 = vpop.f32.mrf.mxu0
  %v596 = vadd.f32 %v318, %v595
  %v597 = vpop.f32.mrf.mxu0
  %v598 = vadd.f32 %v314, %v597
  %v599 = vpop.f32.mrf.mxu0
  %v600 = vadd.f32 %v318, %v599
  %601 = vdwg.mxu0
  %602 = vmatprep.subr.bf16.mxu0 0
  %603 = vmatpush1.bf16.msra.mxu0 0
  %604 = vmatprep.subr.bf16.mxu0 0
  %605 = vmatpush1.bf16.msra.mxu0 0
  %606 = vmatprep.subr.bf16.mxu0 0
  %607 = vmatpush1.bf16.msra.mxu0 0
  %608 = vmatprep.subr.bf16.mxu0 0
  %609 = vmatpush1.bf16.msra.mxu0 0
  %610 = vmatprep.subr.bf16.mxu0 0
  %611 = vmatpush1.bf16.msra.mxu0 0
  %612 = vmatprep.subr.bf16.mxu0 0
  %613 = vmatpush1.bf16.msra.mxu0 0
  %614 = vmatprep.subr.bf16.mxu0 %v406
  %615 = vmatpush1.bf16.msra.mxu0 %v405
  %616 = vmatprep.subr.bf16.mxu0 %v396
  %617 = vmatpush1.bf16.msra.mxu0 %v395
  %618 = vmatprep.subr.bf16.mxu0 0
  %619 = vmatpush2.bf16.msra.mxu0 0
  %620 = vmatprep.subr.bf16.mxu0 0
  %621 = vmatpush2.bf16.msra.mxu0 0
  %622 = vmatprep.subr.bf16.mxu0 0
  %623 = vmatpush2.bf16.msra.mxu0 0
  %624 = vmatprep.subr.bf16.mxu0 0
  %625 = vmatpush2.bf16.msra.mxu0 0
  %626 = vmatprep.subr.bf16.mxu0 0
  %627 = vmatpush2.bf16.msra.mxu0 0
  %628 = vmatprep.subr.bf16.mxu0 0
  %629 = vmatpush2.bf16.msra.mxu0 0
  %630 = vmatprep.subr.bf16.mxu0 0
  %631 = vmatpush2.bf16.msra.mxu0 0
  %632 = vmatprep.subr.bf16.mxu0 0
  %633 = vmatpush2.bf16.msra.mxu0 0
  %634 = vmatprep.mubr.bf16.mxu0 0
  %635 = vmatmul.mubr.bf16.gmra.mxu0 %v428
  %v636 = vpop.f32.mrf.mxu0
  %v637 = vadd.f32 %v322, %v636
  %v638 = vpop.f32.mrf.mxu0
  %v639 = vadd.f32 %v326, %v638
  %v640 = vpop.f32.mrf.mxu0
  %v641 = vadd.f32 %v322, %v640
  %v642 = vpop.f32.mrf.mxu0
  %v643 = vadd.f32 %v326, %v642
  %644 = vdwg.mxu0
  %v645 = vpack.c.bf16 %v469, %v465
  %v646 = vpack.c.bf16 %v471, %v467
  %v647 = vpack.c.bf16 %v512, %v508
  %v648 = vpack.c.bf16 %v514, %v510
  %v649 = vpack.c.bf16 %v555, %v551
  %v650 = vpack.c.bf16 %v557, %v553
  %v651 = vpack.c.bf16 %v598, %v594
  %v652 = vpack.c.bf16 %v600, %v596
  %v653 = vpack.c.bf16 %v641, %v637
  %655 = vrot.lane.b32.xlu0 %v645, 96
  %v656 = vpop.permute.xlu0 %655
  %657 = vrot.lane.b32.xlu0 %v645, 64
  %v658 = vpop.permute.xlu0 %657
  %659 = vrot.lane.b32.xlu0 %v645, 32
  %v660 = vpop.permute.xlu0 %659
  %662 = vrot.lane.b32.xlu0 %v646, 96
  %v663 = vpop.permute.xlu0 %662
  %664 = vrot.lane.b32.xlu0 %v646, 64
  %v665 = vpop.permute.xlu0 %664
  %666 = vrot.lane.b32.xlu0 %v646, 32
  %v667 = vpop.permute.xlu0 %666
  %669 = vrot.lane.b32.xlu0 %v647, 96
  %v670 = vpop.permute.xlu0 %669
  %671 = vrot.lane.b32.xlu0 %v647, 64
  %v672 = vpop.permute.xlu0 %671
  %673 = vrot.lane.b32.xlu0 %v647, 32
  %v674 = vpop.permute.xlu0 %673
  %676 = vrot.lane.b32.xlu0 %v648, 96
  %v677 = vpop.permute.xlu0 %676
  %678 = vrot.lane.b32.xlu0 %v648, 64
  %v679 = vpop.permute.xlu0 %678
  %680 = vrot.lane.b32.xlu0 %v648, 32
  %v681 = vpop.permute.xlu0 %680
  %683 = vrot.lane.b32.xlu0 %v649, 96
  %v684 = vpop.permute.xlu0 %683
  %685 = vrot.lane.b32.xlu0 %v649, 64
  %v686 = vpop.permute.xlu0 %685
  %687 = vrot.lane.b32.xlu0 %v649, 32
  %v688 = vpop.permute.xlu0 %687
  %690 = vrot.lane.b32.xlu0 %v650, 96
  %v691 = vpop.permute.xlu0 %690
  %692 = vrot.lane.b32.xlu0 %v650, 64
  %v693 = vpop.permute.xlu0 %692
  %694 = vrot.lane.b32.xlu0 %v650, 32
  %v695 = vpop.permute.xlu0 %694
  %697 = vrot.lane.b32.xlu0 %v651, 96
  %v698 = vpop.permute.xlu0 %697
  %700 = vrot.lane.b32.xlu0 %v651, 64
  %v701 = vpop.permute.xlu0 %700
  %703 = vrot.lane.b32.xlu0 %v651, 32
  %v704 = vpop.permute.xlu0 %703
  %707 = vrot.lane.b32.xlu0 %v652, 96
  %v708 = vpop.permute.xlu0 %707
  %710 = vrot.lane.b32.xlu0 %v652, 64
  %v711 = vpop.permute.xlu0 %710
  %713 = vrot.lane.b32.xlu0 %v652, 32
  %v714 = vpop.permute.xlu0 %713
  %717 = vrot.lane.b32.xlu0 %v653, 96
  %v718 = vpop.permute.xlu0 %717
  %720 = vrot.lane.b32.xlu0 %v653, 64
  %v721 = vpop.permute.xlu0 %720
  %723 = vrot.lane.b32.xlu0 %v653, 32
  %v724 = vpop.permute.xlu0 %723
  %v727 = vsel %vm180, %v645, 0
  %v730 = vsel %vm180, %v648, 0
  %732 = vmatprep.subr.bf16.mxu0 0
  %733 = vmatpush1.bf16.xpose.msra.mxu0 0
  %734 = vmatprep.subr.bf16.mxu0 0
  %735 = vmatpush1.bf16.xpose.msra.mxu0 0
  %736 = vmatprep.subr.bf16.mxu0 0
  %737 = vmatpush1.bf16.xpose.msra.mxu0 0
  %738 = vmatprep.subr.bf16.mxu0 0
  %739 = vmatpush1.bf16.xpose.msra.mxu0 0
  %740 = vmatprep.subr.bf16.mxu0 0
  %741 = vmatpush1.bf16.xpose.msra.mxu0 0
  %742 = vmatprep.subr.bf16.mxu0 0
  %743 = vmatpush1.bf16.xpose.msra.mxu0 0
  %744 = vmatprep.subr.bf16.mxu0 0
  %745 = vmatpush1.bf16.xpose.msra.mxu0 0
  %746 = vmatprep.subr.bf16.mxu0 0
  %747 = vmatpush1.bf16.xpose.msra.mxu0 %v730
  %748 = vmatprep.subr.bf16.mxu0 0
  %749 = vmatpush2.bf16.xpose.msra.mxu0 0
  %750 = vmatprep.subr.bf16.mxu0 0
  %751 = vmatpush2.bf16.xpose.msra.mxu0 0
  %752 = vmatprep.subr.bf16.mxu0 0
  %753 = vmatpush2.bf16.xpose.msra.mxu0 0
  %754 = vmatprep.subr.bf16.mxu0 0
  %755 = vmatpush2.bf16.xpose.msra.mxu0 0
  %756 = vmatprep.subr.bf16.mxu0 0
  %757 = vmatpush2.bf16.xpose.msra.mxu0 0
  %758 = vmatprep.subr.bf16.mxu0 0
  %759 = vmatpush2.bf16.xpose.msra.mxu0 0
  %760 = vmatprep.subr.bf16.mxu0 0
  %761 = vmatpush2.bf16.xpose.msra.mxu0 0
  %762 = vmatprep.subr.bf16.mxu0 0
  %763 = vmatpush2.bf16.xpose.msra.mxu0 0
  %764 = vmatprep.mubr.bf16.mxu0 0
  %765 = vmatmul.mubr.bf16.gmra.mxu0 %v727
  %v766 = vpop.f32.mrf.mxu0
  %v767 = vadd.f32 %v241, %v766
  %v768 = vpop.f32.mrf.mxu0
  %v769 = vpop.f32.mrf.mxu0
  %v770 = vadd.f32 %v242, %v769
  %v771 = vpop.f32.mrf.mxu0
  %772 = vdwg.mxu0
  %v774 = vsel %vm180, %v656, 0
  %v777 = vsel %vm180, %v677, 0
  %779 = vmatprep.subr.bf16.mxu0 0
  %780 = vmatpush1.bf16.xpose.msra.mxu0 0
  %781 = vmatprep.subr.bf16.mxu0 0
  %782 = vmatpush1.bf16.xpose.msra.mxu0 0
  %783 = vmatprep.subr.bf16.mxu0 0
  %784 = vmatpush1.bf16.xpose.msra.mxu0 0
  %785 = vmatprep.subr.bf16.mxu0 0
  %786 = vmatpush1.bf16.xpose.msra.mxu0 0
  %787 = vmatprep.subr.bf16.mxu0 0
  %788 = vmatpush1.bf16.xpose.msra.mxu0 0
  %789 = vmatprep.subr.bf16.mxu0 0
  %790 = vmatpush1.bf16.xpose.msra.mxu0 0
  %791 = vmatprep.subr.bf16.mxu0 0
  %792 = vmatpush1.bf16.xpose.msra.mxu0 0
  %793 = vmatprep.subr.bf16.mxu0 0
  %794 = vmatpush1.bf16.xpose.msra.mxu0 %v777
  %795 = vmatprep.subr.bf16.mxu0 0
  %796 = vmatpush2.bf16.xpose.msra.mxu0 0
  %797 = vmatprep.subr.bf16.mxu0 0
  %798 = vmatpush2.bf16.xpose.msra.mxu0 0
  %799 = vmatprep.subr.bf16.mxu0 0
  %800 = vmatpush2.bf16.xpose.msra.mxu0 0
  %801 = vmatprep.subr.bf16.mxu0 0
  %802 = vmatpush2.bf16.xpose.msra.mxu0 0
  %803 = vmatprep.subr.bf16.mxu0 0
  %804 = vmatpush2.bf16.xpose.msra.mxu0 0
  %805 = vmatprep.subr.bf16.mxu0 0
  %806 = vmatpush2.bf16.xpose.msra.mxu0 0
  %807 = vmatprep.subr.bf16.mxu0 0
  %808 = vmatpush2.bf16.xpose.msra.mxu0 0
  %809 = vmatprep.subr.bf16.mxu0 0
  %810 = vmatpush2.bf16.xpose.msra.mxu0 0
  %811 = vmatprep.mubr.bf16.mxu0 0
  %812 = vmatmul.mubr.bf16.gmra.mxu0 %v774
  %v813 = vpop.f32.mrf.mxu0
  %v814 = vadd.f32 %v241, %v813
  %v815 = vpop.f32.mrf.mxu0
  %v816 = vpop.f32.mrf.mxu0
  %v817 = vadd.f32 %v242, %v816
  %v818 = vpop.f32.mrf.mxu0
  %819 = vdwg.mxu0
  %v821 = vsel %vm180, %v658, 0
  %v824 = vsel %vm180, %v679, 0
  %826 = vmatprep.subr.bf16.mxu0 0
  %827 = vmatpush1.bf16.xpose.msra.mxu0 0
  %828 = vmatprep.subr.bf16.mxu0 0
  %829 = vmatpush1.bf16.xpose.msra.mxu0 0
  %830 = vmatprep.subr.bf16.mxu0 0
  %831 = vmatpush1.bf16.xpose.msra.mxu0 0
  %832 = vmatprep.subr.bf16.mxu0 0
  %833 = vmatpush1.bf16.xpose.msra.mxu0 0
  %834 = vmatprep.subr.bf16.mxu0 0
  %835 = vmatpush1.bf16.xpose.msra.mxu0 0
  %836 = vmatprep.subr.bf16.mxu0 0
  %837 = vmatpush1.bf16.xpose.msra.mxu0 0
  %838 = vmatprep.subr.bf16.mxu0 0
  %839 = vmatpush1.bf16.xpose.msra.mxu0 0
  %840 = vmatprep.subr.bf16.mxu0 0
  %841 = vmatpush1.bf16.xpose.msra.mxu0 %v824
  %842 = vmatprep.subr.bf16.mxu0 0
  %843 = vmatpush2.bf16.xpose.msra.mxu0 0
  %844 = vmatprep.subr.bf16.mxu0 0
  %845 = vmatpush2.bf16.xpose.msra.mxu0 0
  %846 = vmatprep.subr.bf16.mxu0 0
  %847 = vmatpush2.bf16.xpose.msra.mxu0 0
  %848 = vmatprep.subr.bf16.mxu0 0
  %849 = vmatpush2.bf16.xpose.msra.mxu0 0
  %850 = vmatprep.subr.bf16.mxu0 0
  %851 = vmatpush2.bf16.xpose.msra.mxu0 0
  %852 = vmatprep.subr.bf16.mxu0 0
  %853 = vmatpush2.bf16.xpose.msra.mxu0 0
  %854 = vmatprep.subr.bf16.mxu0 0
  %855 = vmatpush2.bf16.xpose.msra.mxu0 0
  %856 = vmatprep.subr.bf16.mxu0 0
  %857 = vmatpush2.bf16.xpose.msra.mxu0 0
  %858 = vmatprep.mubr.bf16.mxu0 0
  %859 = vmatmul.mubr.bf16.gmra.mxu0 %v821
  %v860 = vpop.f32.mrf.mxu0
  %v861 = vadd.f32 %v241, %v860
  %v862 = vpop.f32.mrf.mxu0
  %v863 = vpop.f32.mrf.mxu0
  %v864 = vadd.f32 %v242, %v863
  %v865 = vpop.f32.mrf.mxu0
  %866 = vdwg.mxu0
  %v868 = vsel %vm180, %v660, 0
  %v871 = vsel %vm180, %v681, 0
  %873 = vmatprep.subr.bf16.mxu0 0
  %874 = vmatpush1.bf16.xpose.msra.mxu0 0
  %875 = vmatprep.subr.bf16.mxu0 0
  %876 = vmatpush1.bf16.xpose.msra.mxu0 0
  %877 = vmatprep.subr.bf16.mxu0 0
  %878 = vmatpush1.bf16.xpose.msra.mxu0 0
  %879 = vmatprep.subr.bf16.mxu0 0
  %880 = vmatpush1.bf16.xpose.msra.mxu0 0
  %881 = vmatprep.subr.bf16.mxu0 0
  %882 = vmatpush1.bf16.xpose.msra.mxu0 0
  %883 = vmatprep.subr.bf16.mxu0 0
  %884 = vmatpush1.bf16.xpose.msra.mxu0 0
  %885 = vmatprep.subr.bf16.mxu0 0
  %886 = vmatpush1.bf16.xpose.msra.mxu0 0
  %887 = vmatprep.subr.bf16.mxu0 0
  %888 = vmatpush1.bf16.xpose.msra.mxu0 %v871
  %889 = vmatprep.subr.bf16.mxu0 0
  %890 = vmatpush2.bf16.xpose.msra.mxu0 0
  %891 = vmatprep.subr.bf16.mxu0 0
  %892 = vmatpush2.bf16.xpose.msra.mxu0 0
  %893 = vmatprep.subr.bf16.mxu0 0
  %894 = vmatpush2.bf16.xpose.msra.mxu0 0
  %895 = vmatprep.subr.bf16.mxu0 0
  %896 = vmatpush2.bf16.xpose.msra.mxu0 0
  %897 = vmatprep.subr.bf16.mxu0 0
  %898 = vmatpush2.bf16.xpose.msra.mxu0 0
  %899 = vmatprep.subr.bf16.mxu0 0
  %900 = vmatpush2.bf16.xpose.msra.mxu0 0
  %901 = vmatprep.subr.bf16.mxu0 0
  %902 = vmatpush2.bf16.xpose.msra.mxu0 0
  %903 = vmatprep.subr.bf16.mxu0 0
  %904 = vmatpush2.bf16.xpose.msra.mxu0 0
  %905 = vmatprep.mubr.bf16.mxu0 0
  %906 = vmatmul.mubr.bf16.gmra.mxu0 %v868
  %v907 = vpop.f32.mrf.mxu0
  %v908 = vadd.f32 %v241, %v907
  %v909 = vpop.f32.mrf.mxu0
  %v910 = vpop.f32.mrf.mxu0
  %v911 = vadd.f32 %v242, %v910
  %v912 = vpop.f32.mrf.mxu0
  %913 = vdwg.mxu0
  %v915 = vsel %vm180, %v646, 0
  %v918 = vsel %vm180, %v649, 0
  %920 = vmatprep.subr.bf16.mxu0 0
  %921 = vmatpush1.bf16.xpose.msra.mxu0 0
  %922 = vmatprep.subr.bf16.mxu0 0
  %923 = vmatpush1.bf16.xpose.msra.mxu0 0
  %924 = vmatprep.subr.bf16.mxu0 0
  %925 = vmatpush1.bf16.xpose.msra.mxu0 0
  %926 = vmatprep.subr.bf16.mxu0 0
  %927 = vmatpush1.bf16.xpose.msra.mxu0 0
  %928 = vmatprep.subr.bf16.mxu0 0
  %929 = vmatpush1.bf16.xpose.msra.mxu0 0
  %930 = vmatprep.subr.bf16.mxu0 0
  %931 = vmatpush1.bf16.xpose.msra.mxu0 0
  %932 = vmatprep.subr.bf16.mxu0 0
  %933 = vmatpush1.bf16.xpose.msra.mxu0 0
  %934 = vmatprep.subr.bf16.mxu0 0
  %935 = vmatpush1.bf16.xpose.msra.mxu0 %v918
  %936 = vmatprep.subr.bf16.mxu0 0
  %937 = vmatpush2.bf16.xpose.msra.mxu0 0
  %938 = vmatprep.subr.bf16.mxu0 0
  %939 = vmatpush2.bf16.xpose.msra.mxu0 0
  %940 = vmatprep.subr.bf16.mxu0 0
  %941 = vmatpush2.bf16.xpose.msra.mxu0 0
  %942 = vmatprep.subr.bf16.mxu0 0
  %943 = vmatpush2.bf16.xpose.msra.mxu0 0
  %944 = vmatprep.subr.bf16.mxu0 0
  %945 = vmatpush2.bf16.xpose.msra.mxu0 0
  %946 = vmatprep.subr.bf16.mxu0 0
  %947 = vmatpush2.bf16.xpose.msra.mxu0 0
  %948 = vmatprep.subr.bf16.mxu0 0
  %949 = vmatpush2.bf16.xpose.msra.mxu0 0
  %950 = vmatprep.subr.bf16.mxu0 0
  %951 = vmatpush2.bf16.xpose.msra.mxu0 0
  %952 = vmatprep.mubr.bf16.mxu0 0
  %953 = vmatmul.mubr.bf16.gmra.mxu0 %v915
  %v954 = vpop.f32.mrf.mxu0
  %v955 = vadd.f32 %v245, %v954
  %v956 = vpop.f32.mrf.mxu0
  %v957 = vpop.f32.mrf.mxu0
  %v958 = vadd.f32 %v246, %v957
  %v959 = vpop.f32.mrf.mxu0
  %960 = vdwg.mxu0
  %v962 = vsel %vm180, %v663, 0
  %v965 = vsel %vm180, %v684, 0
  %967 = vmatprep.subr.bf16.mxu0 0
  %968 = vmatpush1.bf16.xpose.msra.mxu0 0
  %969 = vmatprep.subr.bf16.mxu0 0
  %970 = vmatpush1.bf16.xpose.msra.mxu0 0
  %971 = vmatprep.subr.bf16.mxu0 0
  %972 = vmatpush1.bf16.xpose.msra.mxu0 0
  %973 = vmatprep.subr.bf16.mxu0 0
  %974 = vmatpush1.bf16.xpose.msra.mxu0 0
  %975 = vmatprep.subr.bf16.mxu0 0
  %976 = vmatpush1.bf16.xpose.msra.mxu0 0
  %977 = vmatprep.subr.bf16.mxu0 0
  %978 = vmatpush1.bf16.xpose.msra.mxu0 0
  %979 = vmatprep.subr.bf16.mxu0 0
  %980 = vmatpush1.bf16.xpose.msra.mxu0 0
  %981 = vmatprep.subr.bf16.mxu0 0
  %982 = vmatpush1.bf16.xpose.msra.mxu0 %v965
  %983 = vmatprep.subr.bf16.mxu0 0
  %984 = vmatpush2.bf16.xpose.msra.mxu0 0
  %985 = vmatprep.subr.bf16.mxu0 0
  %986 = vmatpush2.bf16.xpose.msra.mxu0 0
  %987 = vmatprep.subr.bf16.mxu0 0
  %988 = vmatpush2.bf16.xpose.msra.mxu0 0
  %989 = vmatprep.subr.bf16.mxu0 0
  %990 = vmatpush2.bf16.xpose.msra.mxu0 0
  %991 = vmatprep.subr.bf16.mxu0 0
  %992 = vmatpush2.bf16.xpose.msra.mxu0 0
  %993 = vmatprep.subr.bf16.mxu0 0
  %994 = vmatpush2.bf16.xpose.msra.mxu0 0
  %995 = vmatprep.subr.bf16.mxu0 0
  %996 = vmatpush2.bf16.xpose.msra.mxu0 0
  %997 = vmatprep.subr.bf16.mxu0 0
  %998 = vmatpush2.bf16.xpose.msra.mxu0 0
  %999 = vmatprep.mubr.bf16.mxu0 0
  %1000 = vmatmul.mubr.bf16.gmra.mxu0 %v962
  %v1001 = vpop.f32.mrf.mxu0
  %v1002 = vadd.f32 %v245, %v1001
  %v1003 = vpop.f32.mrf.mxu0
  %v1004 = vpop.f32.mrf.mxu0
  %v1005 = vadd.f32 %v246, %v1004
  %v1006 = vpop.f32.mrf.mxu0
  %1007 = vdwg.mxu0
  %v1009 = vsel %vm180, %v665, 0
  %v1012 = vsel %vm180, %v686, 0
  %1014 = vmatprep.subr.bf16.mxu0 0
  %1015 = vmatpush1.bf16.xpose.msra.mxu0 0
  %1016 = vmatprep.subr.bf16.mxu0 0
  %1017 = vmatpush1.bf16.xpose.msra.mxu0 0
  %1018 = vmatprep.subr.bf16.mxu0 0
  %1019 = vmatpush1.bf16.xpose.msra.mxu0 0
  %1020 = vmatprep.subr.bf16.mxu0 0
  %1021 = vmatpush1.bf16.xpose.msra.mxu0 0
  %1022 = vmatprep.subr.bf16.mxu0 0
  %1023 = vmatpush1.bf16.xpose.msra.mxu0 0
  %1024 = vmatprep.subr.bf16.mxu0 0
  %1025 = vmatpush1.bf16.xpose.msra.mxu0 0
  %1026 = vmatprep.subr.bf16.mxu0 0
  %1027 = vmatpush1.bf16.xpose.msra.mxu0 0
  %1028 = vmatprep.subr.bf16.mxu0 0
  %1029 = vmatpush1.bf16.xpose.msra.mxu0 %v1012
  %1030 = vmatprep.subr.bf16.mxu0 0
  %1031 = vmatpush2.bf16.xpose.msra.mxu0 0
  %1032 = vmatprep.subr.bf16.mxu0 0
  %1033 = vmatpush2.bf16.xpose.msra.mxu0 0
  %1034 = vmatprep.subr.bf16.mxu0 0
  %1035 = vmatpush2.bf16.xpose.msra.mxu0 0
  %1036 = vmatprep.subr.bf16.mxu0 0
  %1037 = vmatpush2.bf16.xpose.msra.mxu0 0
  %1038 = vmatprep.subr.bf16.mxu0 0
  %1039 = vmatpush2.bf16.xpose.msra.mxu0 0
  %1040 = vmatprep.subr.bf16.mxu0 0
  %1041 = vmatpush2.bf16.xpose.msra.mxu0 0
  %1042 = vmatprep.subr.bf16.mxu0 0
  %1043 = vmatpush2.bf16.xpose.msra.mxu0 0
  %1044 = vmatprep.subr.bf16.mxu0 0
  %1045 = vmatpush2.bf16.xpose.msra.mxu0 0
  %1046 = vmatprep.mubr.bf16.mxu0 0
  %1047 = vmatmul.mubr.bf16.gmra.mxu0 %v1009
  %v1048 = vpop.f32.mrf.mxu0
  %v1049 = vadd.f32 %v245, %v1048
  %v1050 = vpop.f32.mrf.mxu0
  %v1051 = vpop.f32.mrf.mxu0
  %v1052 = vadd.f32 %v246, %v1051
  %v1053 = vpop.f32.mrf.mxu0
  %1054 = vdwg.mxu0
  %v1056 = vsel %vm180, %v667, 0
  %v1059 = vsel %vm180, %v688, 0
  %1061 = vmatprep.subr.bf16.mxu0 0
  %1062 = vmatpush1.bf16.xpose.msra.mxu0 0
  %1063 = vmatprep.subr.bf16.mxu0 0
  %1064 = vmatpush1.bf16.xpose.msra.mxu0 0
  %1065 = vmatprep.subr.bf16.mxu0 0
  %1066 = vmatpush1.bf16.xpose.msra.mxu0 0
  %1067 = vmatprep.subr.bf16.mxu0 0
  %1068 = vmatpush1.bf16.xpose.msra.mxu0 0
  %1069 = vmatprep.subr.bf16.mxu0 0
  %1070 = vmatpush1.bf16.xpose.msra.mxu0 0
  %1071 = vmatprep.subr.bf16.mxu0 0
  %1072 = vmatpush1.bf16.xpose.msra.mxu0 0
  %1073 = vmatprep.subr.bf16.mxu0 0
  %1074 = vmatpush1.bf16.xpose.msra.mxu0 0
  %1075 = vmatprep.subr.bf16.mxu0 0
  %1076 = vmatpush1.bf16.xpose.msra.mxu0 %v1059
  %1077 = vmatprep.subr.bf16.mxu0 0
  %1078 = vmatpush2.bf16.xpose.msra.mxu0 0
  %1079 = vmatprep.subr.bf16.mxu0 0
  %1080 = vmatpush2.bf16.xpose.msra.mxu0 0
  %1081 = vmatprep.subr.bf16.mxu0 0
  %1082 = vmatpush2.bf16.xpose.msra.mxu0 0
  %1083 = vmatprep.subr.bf16.mxu0 0
  %1084 = vmatpush2.bf16.xpose.msra.mxu0 0
  %1085 = vmatprep.subr.bf16.mxu0 0
  %1086 = vmatpush2.bf16.xpose.msra.mxu0 0
  %1087 = vmatprep.subr.bf16.mxu0 0
  %1088 = vmatpush2.bf16.xpose.msra.mxu0 0
  %1089 = vmatprep.subr.bf16.mxu0 0
  %1090 = vmatpush2.bf16.xpose.msra.mxu0 0
  %1091 = vmatprep.subr.bf16.mxu0 0
  %1092 = vmatpush2.bf16.xpose.msra.mxu0 0
  %1093 = vmatprep.mubr.bf16.mxu0 0
  %1094 = vmatmul.mubr.bf16.gmra.mxu0 %v1056
  %v1095 = vpop.f32.mrf.mxu0
  %v1096 = vadd.f32 %v245, %v1095
  %v1097 = vpop.f32.mrf.mxu0
  %v1098 = vpop.f32.mrf.mxu0
  %v1099 = vadd.f32 %v246, %v1098
  %v1100 = vpop.f32.mrf.mxu0
  %1101 = vdwg.mxu0
  %v1103 = vsel %vm180, %v647, 0
  %v1106 = vsel %vm180, %v650, 0
  %1108 = vmatprep.subr.bf16.mxu0 0
  %1109 = vmatpush1.bf16.xpose.msra.mxu0 0
  %1110 = vmatprep.subr.bf16.mxu0 0
  %1111 = vmatpush1.bf16.xpose.msra.mxu0 0
  %1112 = vmatprep.subr.bf16.mxu0 0
  %1113 = vmatpush1.bf16.xpose.msra.mxu0 0
  %1114 = vmatprep.subr.bf16.mxu0 0
  %1115 = vmatpush1.bf16.xpose.msra.mxu0 0
  %1116 = vmatprep.subr.bf16.mxu0 0
  %1117 = vmatpush1.bf16.xpose.msra.mxu0 0
  %1118 = vmatprep.subr.bf16.mxu0 0
  %1119 = vmatpush1.bf16.xpose.msra.mxu0 0
  %1120 = vmatprep.subr.bf16.mxu0 0
  %1121 = vmatpush1.bf16.xpose.msra.mxu0 0
  %1122 = vmatprep.subr.bf16.mxu0 0
  %1123 = vmatpush1.bf16.xpose.msra.mxu0 %v1106
  %1124 = vmatprep.subr.bf16.mxu0 0
  %1125 = vmatpush2.bf16.xpose.msra.mxu0 0
  %1126 = vmatprep.subr.bf16.mxu0 0
  %1127 = vmatpush2.bf16.xpose.msra.mxu0 0
  %1128 = vmatprep.subr.bf16.mxu0 0
  %1129 = vmatpush2.bf16.xpose.msra.mxu0 0
  %1130 = vmatprep.subr.bf16.mxu0 0
  %1131 = vmatpush2.bf16.xpose.msra.mxu0 0
  %1132 = vmatprep.subr.bf16.mxu0 0
  %1133 = vmatpush2.bf16.xpose.msra.mxu0 0
  %1134 = vmatprep.subr.bf16.mxu0 0
  %1135 = vmatpush2.bf16.xpose.msra.mxu0 0
  %1136 = vmatprep.subr.bf16.mxu0 0
  %1137 = vmatpush2.bf16.xpose.msra.mxu0 0
  %1138 = vmatprep.subr.bf16.mxu0 0
  %1139 = vmatpush2.bf16.xpose.msra.mxu0 0
  %1140 = vmatprep.mubr.bf16.mxu0 0
  %1141 = vmatmul.mubr.bf16.gmra.mxu0 %v1103
  %v1142 = vpop.f32.mrf.mxu0
  %v1143 = vadd.f32 %v249, %v1142
  %v1144 = vpop.f32.mrf.mxu0
  %v1145 = vpop.f32.mrf.mxu0
  %v1146 = vadd.f32 %v250, %v1145
  %v1147 = vpop.f32.mrf.mxu0
  %1148 = vdwg.mxu0
  %v1150 = vsel %vm180, %v670, 0
  %v1153 = vsel %vm180, %v691, 0
  %1155 = vmatprep.subr.bf16.mxu0 0
  %1156 = vmatpush1.bf16.xpose.msra.mxu0 0
  %1157 = vmatprep.subr.bf16.mxu0 0
  %1158 = vmatpush1.bf16.xpose.msra.mxu0 0
  %1159 = vmatprep.subr.bf16.mxu0 0
  %1160 = vmatpush1.bf16.xpose.msra.mxu0 0
  %1161 = vmatprep.subr.bf16.mxu0 0
  %1162 = vmatpush1.bf16.xpose.msra.mxu0 0
  %1163 = vmatprep.subr.bf16.mxu0 0
  %1164 = vmatpush1.bf16.xpose.msra.mxu0 0
  %1165 = vmatprep.subr.bf16.mxu0 0
  %1166 = vmatpush1.bf16.xpose.msra.mxu0 0
  %1167 = vmatprep.subr.bf16.mxu0 0
  %1168 = vmatpush1.bf16.xpose.msra.mxu0 0
  %1169 = vmatprep.subr.bf16.mxu0 0
  %1170 = vmatpush1.bf16.xpose.msra.mxu0 %v1153
  %1171 = vmatprep.subr.bf16.mxu0 0
  %1172 = vmatpush2.bf16.xpose.msra.mxu0 0
  %1173 = vmatprep.subr.bf16.mxu0 0
  %1174 = vmatpush2.bf16.xpose.msra.mxu0 0
  %1175 = vmatprep.subr.bf16.mxu0 0
  %1176 = vmatpush2.bf16.xpose.msra.mxu0 0
  %1177 = vmatprep.subr.bf16.mxu0 0
  %1178 = vmatpush2.bf16.xpose.msra.mxu0 0
  %1179 = vmatprep.subr.bf16.mxu0 0
  %1180 = vmatpush2.bf16.xpose.msra.mxu0 0
  %1181 = vmatprep.subr.bf16.mxu0 0
  %1182 = vmatpush2.bf16.xpose.msra.mxu0 0
  %1183 = vmatprep.subr.bf16.mxu0 0
  %1184 = vmatpush2.bf16.xpose.msra.mxu0 0
  %1185 = vmatprep.subr.bf16.mxu0 0
  %1186 = vmatpush2.bf16.xpose.msra.mxu0 0
  %1187 = vmatprep.mubr.bf16.mxu0 0
  %1188 = vmatmul.mubr.bf16.gmra.mxu0 %v1150
  %v1189 = vpop.f32.mrf.mxu0
  %v1190 = vadd.f32 %v249, %v1189
  %v1191 = vpop.f32.mrf.mxu0
  %v1192 = vpop.f32.mrf.mxu0
  %v1193 = vadd.f32 %v250, %v1192
  %v1194 = vpop.f32.mrf.mxu0
  %1195 = vdwg.mxu0
  %v1197 = vsel %vm180, %v672, 0
  %v1200 = vsel %vm180, %v693, 0
  %1202 = vmatprep.subr.bf16.mxu0 0
  %1203 = vmatpush1.bf16.xpose.msra.mxu0 0
  %1204 = vmatprep.subr.bf16.mxu0 0
  %1205 = vmatpush1.bf16.xpose.msra.mxu0 0
  %1206 = vmatprep.subr.bf16.mxu0 0
  %1207 = vmatpush1.bf16.xpose.msra.mxu0 0
  %1208 = vmatprep.subr.bf16.mxu0 0
  %1209 = vmatpush1.bf16.xpose.msra.mxu0 0
  %1210 = vmatprep.subr.bf16.mxu0 0
  %1211 = vmatpush1.bf16.xpose.msra.mxu0 0
  %1212 = vmatprep.subr.bf16.mxu0 0
  %1213 = vmatpush1.bf16.xpose.msra.mxu0 0
  %1214 = vmatprep.subr.bf16.mxu0 0
  %1215 = vmatpush1.bf16.xpose.msra.mxu0 0
  %1216 = vmatprep.subr.bf16.mxu0 0
  %1217 = vmatpush1.bf16.xpose.msra.mxu0 %v1200
  %1218 = vmatprep.subr.bf16.mxu0 0
  %1219 = vmatpush2.bf16.xpose.msra.mxu0 0
  %1220 = vmatprep.subr.bf16.mxu0 0
  %1221 = vmatpush2.bf16.xpose.msra.mxu0 0
  %1222 = vmatprep.subr.bf16.mxu0 0
  %1223 = vmatpush2.bf16.xpose.msra.mxu0 0
  %1224 = vmatprep.subr.bf16.mxu0 0
  %1225 = vmatpush2.bf16.xpose.msra.mxu0 0
  %1226 = vmatprep.subr.bf16.mxu0 0
  %1227 = vmatpush2.bf16.xpose.msra.mxu0 0
  %1228 = vmatprep.subr.bf16.mxu0 0
  %1229 = vmatpush2.bf16.xpose.msra.mxu0 0
  %1230 = vmatprep.subr.bf16.mxu0 0
  %1231 = vmatpush2.bf16.xpose.msra.mxu0 0
  %1232 = vmatprep.subr.bf16.mxu0 0
  %1233 = vmatpush2.bf16.xpose.msra.mxu0 0
  %1234 = vmatprep.mubr.bf16.mxu0 0
  %1235 = vmatmul.mubr.bf16.gmra.mxu0 %v1197
  %v1236 = vpop.f32.mrf.mxu0
  %v1237 = vadd.f32 %v249, %v1236
  %v1238 = vpop.f32.mrf.mxu0
  %v1239 = vpop.f32.mrf.mxu0
  %v1240 = vadd.f32 %v250, %v1239
  %v1241 = vpop.f32.mrf.mxu0
  %1242 = vdwg.mxu0
  %v1244 = vsel %vm180, %v674, 0
  %v1247 = vsel %vm180, %v695, 0
  %1249 = vmatprep.subr.bf16.mxu0 0
  %1250 = vmatpush1.bf16.xpose.msra.mxu0 0
  %1251 = vmatprep.subr.bf16.mxu0 0
  %1252 = vmatpush1.bf16.xpose.msra.mxu0 0
  %1253 = vmatprep.subr.bf16.mxu0 0
  %1254 = vmatpush1.bf16.xpose.msra.mxu0 0
  %1255 = vmatprep.subr.bf16.mxu0 0
  %1256 = vmatpush1.bf16.xpose.msra.mxu0 0
  %1257 = vmatprep.subr.bf16.mxu0 0
  %1258 = vmatpush1.bf16.xpose.msra.mxu0 0
  %1259 = vmatprep.subr.bf16.mxu0 0
  %1260 = vmatpush1.bf16.xpose.msra.mxu0 0
  %1261 = vmatprep.subr.bf16.mxu0 0
  %1262 = vmatpush1.bf16.xpose.msra.mxu0 0
  %1263 = vmatprep.subr.bf16.mxu0 0
  %1264 = vmatpush1.bf16.xpose.msra.mxu0 %v1247
  %1265 = vmatprep.subr.bf16.mxu0 0
  %1266 = vmatpush2.bf16.xpose.msra.mxu0 0
  %1267 = vmatprep.subr.bf16.mxu0 0
  %1268 = vmatpush2.bf16.xpose.msra.mxu0 0
  %1269 = vmatprep.subr.bf16.mxu0 0
  %1270 = vmatpush2.bf16.xpose.msra.mxu0 0
  %1271 = vmatprep.subr.bf16.mxu0 0
  %1272 = vmatpush2.bf16.xpose.msra.mxu0 0
  %1273 = vmatprep.subr.bf16.mxu0 0
  %1274 = vmatpush2.bf16.xpose.msra.mxu0 0
  %1275 = vmatprep.subr.bf16.mxu0 0
  %1276 = vmatpush2.bf16.xpose.msra.mxu0 0
  %1277 = vmatprep.subr.bf16.mxu0 0
  %1278 = vmatpush2.bf16.xpose.msra.mxu0 0
  %1279 = vmatprep.subr.bf16.mxu0 0
  %1280 = vmatpush2.bf16.xpose.msra.mxu0 0
  %1281 = vmatprep.mubr.bf16.mxu0 0
  %1282 = vmatmul.mubr.bf16.gmra.mxu0 %v1244
  %v1283 = vpop.f32.mrf.mxu0
  %v1284 = vadd.f32 %v249, %v1283
  %v1285 = vpop.f32.mrf.mxu0
  %v1286 = vpop.f32.mrf.mxu0
  %v1287 = vadd.f32 %v250, %v1286
  %v1288 = vpop.f32.mrf.mxu0
  %1289 = vdwg.mxu0
  %vm1290 = vcmask 130048
  %v1291 = vsel %vm1290, %v767, -inf
  %1292 = vmax.xlane.f32.xlu0 %v1291
  %v1293 = vpop.xlane.xlu0 %1292
  %v1294 = vsel %vm1290, %v770, -inf
  %1295 = vmax.xlane.f32.xlu0 %v1294
  %v1296 = vpop.xlane.xlu0 %1295
  %v1297 = vsel %vm1290, %v814, -inf
  %1298 = vmax.xlane.f32.xlu0 %v1297
  %v1299 = vpop.xlane.xlu0 %1298
  %v1300 = vsel %vm1290, %v817, -inf
  %1301 = vmax.xlane.f32.xlu0 %v1300
  %v1302 = vpop.xlane.xlu0 %1301
  %v1303 = vsel %vm1290, %v861, -inf
  %1304 = vmax.xlane.f32.xlu0 %v1303
  %v1305 = vpop.xlane.xlu0 %1304
  %v1306 = vsel %vm1290, %v864, -inf
  %1307 = vmax.xlane.f32.xlu0 %v1306
  %v1308 = vpop.xlane.xlu0 %1307
  %v1309 = vsel %vm1290, %v908, -inf
  %1310 = vmax.xlane.f32.xlu0 %v1309
  %v1311 = vpop.xlane.xlu0 %1310
  %v1312 = vsel %vm1290, %v911, -inf
  %1313 = vmax.xlane.f32.xlu0 %v1312
  %v1314 = vpop.xlane.xlu0 %1313
  %v1315 = vsel %vm1290, %v955, -inf
  %1316 = vmax.xlane.f32.xlu0 %v1315
  %v1317 = vpop.xlane.xlu0 %1316
  %v1318 = vsel %vm1290, %v958, -inf
  %1319 = vmax.xlane.f32.xlu0 %v1318
  %v1320 = vpop.xlane.xlu0 %1319
  %v1321 = vsel %vm1290, %v1002, -inf
  %1322 = vmax.xlane.f32.xlu0 %v1321
  %v1323 = vpop.xlane.xlu0 %1322
  %v1324 = vsel %vm1290, %v1005, -inf
  %1325 = vmax.xlane.f32.xlu0 %v1324
  %v1326 = vpop.xlane.xlu0 %1325
  %v1327 = vsel %vm1290, %v1049, -inf
  %1328 = vmax.xlane.f32.xlu0 %v1327
  %v1329 = vpop.xlane.xlu0 %1328
  %v1330 = vsel %vm1290, %v1052, -inf
  %1331 = vmax.xlane.f32.xlu0 %v1330
  %v1332 = vpop.xlane.xlu0 %1331
  %v1333 = vsel %vm1290, %v1096, -inf
  %1334 = vmax.xlane.f32.xlu0 %v1333
  %v1335 = vpop.xlane.xlu0 %1334
  %v1336 = vsel %vm1290, %v1099, -inf
  %1337 = vmax.xlane.f32.xlu0 %v1336
  %v1338 = vpop.xlane.xlu0 %1337
  %v1339 = vsel %vm1290, %v1143, -inf
  %1340 = vmax.xlane.f32.xlu0 %v1339
  %v1341 = vpop.xlane.xlu0 %1340
  %v1342 = vsel %vm1290, %v1146, -inf
  %1343 = vmax.xlane.f32.xlu0 %v1342
  %v1344 = vpop.xlane.xlu0 %1343
  %v1345 = vsel %vm1290, %v1190, -inf
  %1346 = vmax.xlane.f32.xlu0 %v1345
  %v1347 = vpop.xlane.xlu0 %1346
  %v1348 = vsel %vm1290, %v1193, -inf
  %1349 = vmax.xlane.f32.xlu0 %v1348
  %v1350 = vpop.xlane.xlu0 %1349
  %v1351 = vsel %vm1290, %v1237, -inf
  %1352 = vmax.xlane.f32.xlu0 %v1351
  %v1353 = vpop.xlane.xlu0 %1352
  %v1354 = vsel %vm1290, %v1240, -inf
  %1355 = vmax.xlane.f32.xlu0 %v1354
  %v1356 = vpop.xlane.xlu0 %1355
  %v1357 = vsel %vm1290, %v1284, -inf
  %1358 = vmax.xlane.f32.xlu0 %v1357
  %v1359 = vpop.xlane.xlu0 %1358
  %v1360 = vsel %vm1290, %v1287, -inf
  %1361 = vmax.xlane.f32.xlu0 %v1360
  %v1362 = vpop.xlane.xlu0 %1361
  %v1363 = vsub.f32 %v767, %v1293
  %v1364 = vsub.f32 %v770, %v1296
  %v1365 = vsub.f32 %v814, %v1299
  %v1366 = vsub.f32 %v817, %v1302
  %v1367 = vsub.f32 %v861, %v1305
  %v1368 = vsub.f32 %v864, %v1308
  %v1369 = vsub.f32 %v908, %v1311
  %v1370 = vsub.f32 %v911, %v1314
  %v1371 = vsub.f32 %v955, %v1317
  %v1372 = vsub.f32 %v958, %v1320
  %v1373 = vsub.f32 %v1002, %v1323
  %v1374 = vsub.f32 %v1005, %v1326
  %v1375 = vsub.f32 %v1049, %v1329
  %v1376 = vsub.f32 %v1052, %v1332
  %v1377 = vsub.f32 %v1096, %v1335
  %v1378 = vsub.f32 %v1099, %v1338
  %v1379 = vsub.f32 %v1143, %v1341
  %v1380 = vsub.f32 %v1146, %v1344
  %v1381 = vsub.f32 %v1190, %v1347
  %v1382 = vsub.f32 %v1193, %v1350
  %v1383 = vsub.f32 %v1237, %v1353
  %v1384 = vsub.f32 %v1240, %v1356
  %v1385 = vsub.f32 %v1284, %v1359
  %v1386 = vsub.f32 %v1287, %v1362
  %v1387 = vmul.f32 %v1363, 1.442695
  %v1388 = vpow.pop %v1387
  %v1389 = vmul.f32 %v1364, 1.442695
  %v1390 = vpow.pop %v1389
  %v1391 = vmul.f32 %v1365, 1.442695
  %v1392 = vpow.pop %v1391
  %v1393 = vmul.f32 %v1366, 1.442695
  %v1394 = vpow.pop %v1393
  %v1395 = vmul.f32 %v1367, 1.442695
  %v1396 = vpow.pop %v1395
  %v1397 = vmul.f32 %v1368, 1.442695
  %v1398 = vpow.pop %v1397
  %v1399 = vmul.f32 %v1369, 1.442695
  %v1400 = vpow.pop %v1399
  %v1401 = vmul.f32 %v1370, 1.442695
  %v1402 = vpow.pop %v1401
  %v1403 = vmul.f32 %v1371, 1.442695
  %v1404 = vpow.pop %v1403
  %v1405 = vmul.f32 %v1372, 1.442695
  %v1406 = vpow.pop %v1405
  %v1407 = vmul.f32 %v1373, 1.442695
  %v1408 = vpow.pop %v1407
  %v1409 = vmul.f32 %v1374, 1.442695
  %v1410 = vpow.pop %v1409
  %v1411 = vmul.f32 %v1375, 1.442695
  %v1412 = vpow.pop %v1411
  %v1413 = vmul.f32 %v1376, 1.442695
  %v1414 = vpow.pop %v1413
  %v1415 = vmul.f32 %v1377, 1.442695
  %v1416 = vpow.pop %v1415
  %v1417 = vmul.f32 %v1378, 1.442695
  %v1418 = vpow.pop %v1417
  %v1419 = vmul.f32 %v1379, 1.442695
  %v1420 = vpow.pop %v1419
  %v1421 = vmul.f32 %v1380, 1.442695
  %v1422 = vpow.pop %v1421
  %v1423 = vmul.f32 %v1381, 1.442695
  %v1424 = vpow.pop %v1423
  %v1425 = vmul.f32 %v1382, 1.442695
  %v1426 = vpow.pop %v1425
  %v1427 = vmul.f32 %v1383, 1.442695
  %v1428 = vpow.pop %v1427
  %v1429 = vmul.f32 %v1384, 1.442695
  %v1430 = vpow.pop %v1429
  %v1431 = vmul.f32 %v1385, 1.442695
  %v1432 = vpow.pop %v1431
  %v1433 = vmul.f32 %v1386, 1.442695
  %v1434 = vpow.pop %v1433
  %v1435 = vmul.f32 %v1388, %v231
  %v1436 = vmul.f32 %v1390, %v232
  %v1437 = vmul.f32 %v1392, %v231
  %v1438 = vmul.f32 %v1394, %v232
  %v1439 = vmul.f32 %v1396, %v231
  %v1440 = vmul.f32 %v1398, %v232
  %v1441 = vmul.f32 %v1400, %v231
  %v1442 = vmul.f32 %v1402, %v232
  %v1443 = vmul.f32 %v1404, %v234
  %v1444 = vmul.f32 %v1406, %v235
  %v1445 = vmul.f32 %v1408, %v234
  %v1446 = vmul.f32 %v1410, %v235
  %v1447 = vmul.f32 %v1412, %v234
  %v1448 = vmul.f32 %v1414, %v235
  %v1449 = vmul.f32 %v1416, %v234
  %v1450 = vmul.f32 %v1418, %v235
  %v1451 = vmul.f32 %v1420, %v237
  %v1452 = vmul.f32 %v1422, %v238
  %v1453 = vmul.f32 %v1424, %v237
  %v1454 = vmul.f32 %v1426, %v238
  %v1455 = vmul.f32 %v1428, %v237
  %v1456 = vmul.f32 %v1430, %v238
  %v1457 = vmul.f32 %v1432, %v237
  %v1458 = vmul.f32 %v1434, %v238
  %v1459 = vsel %vm1290, %v1435, 0.0
  %1460 = vadd.xlane.f32.xlu0 %v1459
  %v1461 = vpop.xlane.xlu0 %1460
  %v1462 = vsel %vm1290, %v1436, 0.0
  %1463 = vadd.xlane.f32.xlu0 %v1462
  %v1464 = vpop.xlane.xlu0 %1463
  %v1465 = vsel %vm1290, %v1437, 0.0
  %1466 = vadd.xlane.f32.xlu0 %v1465
  %v1467 = vpop.xlane.xlu0 %1466
  %v1468 = vsel %vm1290, %v1438, 0.0
  %1469 = vadd.xlane.f32.xlu0 %v1468
  %v1470 = vpop.xlane.xlu0 %1469
  %v1471 = vsel %vm1290, %v1439, 0.0
  %1472 = vadd.xlane.f32.xlu0 %v1471
  %v1473 = vpop.xlane.xlu0 %1472
  %v1474 = vsel %vm1290, %v1440, 0.0
  %1475 = vadd.xlane.f32.xlu0 %v1474
  %v1476 = vpop.xlane.xlu0 %1475
  %v1477 = vsel %vm1290, %v1441, 0.0
  %1478 = vadd.xlane.f32.xlu0 %v1477
  %v1479 = vpop.xlane.xlu0 %1478
  %v1480 = vsel %vm1290, %v1442, 0.0
  %1481 = vadd.xlane.f32.xlu0 %v1480
  %v1482 = vpop.xlane.xlu0 %1481
  %v1483 = vsel %vm1290, %v1443, 0.0
  %1484 = vadd.xlane.f32.xlu0 %v1483
  %v1485 = vpop.xlane.xlu0 %1484
  %v1486 = vsel %vm1290, %v1444, 0.0
  %1487 = vadd.xlane.f32.xlu0 %v1486
  %v1488 = vpop.xlane.xlu0 %1487
  %v1489 = vsel %vm1290, %v1445, 0.0
  %1490 = vadd.xlane.f32.xlu0 %v1489
  %v1491 = vpop.xlane.xlu0 %1490
  %v1492 = vsel %vm1290, %v1446, 0.0
  %1493 = vadd.xlane.f32.xlu0 %v1492
  %v1494 = vpop.xlane.xlu0 %1493
  %v1495 = vsel %vm1290, %v1447, 0.0
  %1496 = vadd.xlane.f32.xlu0 %v1495
  %v1497 = vpop.xlane.xlu0 %1496
  %v1498 = vsel %vm1290, %v1448, 0.0
  %1499 = vadd.xlane.f32.xlu0 %v1498
  %v1500 = vpop.xlane.xlu0 %1499
  %v1501 = vsel %vm1290, %v1449, 0.0
  %1502 = vadd.xlane.f32.xlu0 %v1501
  %v1503 = vpop.xlane.xlu0 %1502
  %v1504 = vsel %vm1290, %v1450, 0.0
  %1505 = vadd.xlane.f32.xlu0 %v1504
  %v1506 = vpop.xlane.xlu0 %1505
  %v1507 = vsel %vm1290, %v1451, 0.0
  %1508 = vadd.xlane.f32.xlu0 %v1507
  %v1509 = vpop.xlane.xlu0 %1508
  %v1510 = vsel %vm1290, %v1452, 0.0
  %1511 = vadd.xlane.f32.xlu0 %v1510
  %v1512 = vpop.xlane.xlu0 %1511
  %v1513 = vsel %vm1290, %v1453, 0.0
  %1514 = vadd.xlane.f32.xlu0 %v1513
  %v1515 = vpop.xlane.xlu0 %1514
  %v1516 = vsel %vm1290, %v1454, 0.0
  %1517 = vadd.xlane.f32.xlu0 %v1516
  %v1518 = vpop.xlane.xlu0 %1517
  %v1519 = vsel %vm1290, %v1455, 0.0
  %1520 = vadd.xlane.f32.xlu0 %v1519
  %v1521 = vpop.xlane.xlu0 %1520
  %v1522 = vsel %vm1290, %v1456, 0.0
  %1523 = vadd.xlane.f32.xlu0 %v1522
  %v1524 = vpop.xlane.xlu0 %1523
  %v1525 = vsel %vm1290, %v1457, 0.0
  %1526 = vadd.xlane.f32.xlu0 %v1525
  %v1527 = vpop.xlane.xlu0 %1526
  %v1528 = vsel %vm1290, %v1458, 0.0
  %1529 = vadd.xlane.f32.xlu0 %v1528
  %v1530 = vpop.xlane.xlu0 %1529
  %v1531 = vmax.f32 %v1461, 1e-20
  %v1532 = vmax.f32 %v1464, 1e-20
  %v1533 = vmax.f32 %v1467, 1e-20
  %v1534 = vmax.f32 %v1470, 1e-20
  %v1535 = vmax.f32 %v1473, 1e-20
  %v1536 = vmax.f32 %v1476, 1e-20
  %v1537 = vmax.f32 %v1479, 1e-20
  %v1538 = vmax.f32 %v1482, 1e-20
  %v1539 = vmax.f32 %v1485, 1e-20
  %v1540 = vmax.f32 %v1488, 1e-20
  %v1541 = vmax.f32 %v1491, 1e-20
  %v1542 = vmax.f32 %v1494, 1e-20
  %v1543 = vmax.f32 %v1497, 1e-20
  %v1544 = vmax.f32 %v1500, 1e-20
  %v1545 = vmax.f32 %v1503, 1e-20
  %v1546 = vmax.f32 %v1506, 1e-20
  %v1547 = vmax.f32 %v1509, 1e-20
  %v1548 = vmax.f32 %v1512, 1e-20
  %v1549 = vmax.f32 %v1515, 1e-20
  %v1550 = vmax.f32 %v1518, 1e-20
  %v1551 = vmax.f32 %v1521, 1e-20
  %v1552 = vmax.f32 %v1524, 1e-20
  %v1553 = vmax.f32 %v1527, 1e-20
  %v1554 = vmax.f32 %v1530, 1e-20
  %v1555 = vrcp.pop %v1531
  %v1556 = vmul.f32 %v1435, %v1555
  %v1557 = vrcp.pop %v1532
  %v1558 = vmul.f32 %v1436, %v1557
  %v1559 = vrcp.pop %v1533
  %v1560 = vmul.f32 %v1437, %v1559
  %v1561 = vrcp.pop %v1534
  %v1562 = vmul.f32 %v1438, %v1561
  %v1563 = vrcp.pop %v1535
  %v1564 = vmul.f32 %v1439, %v1563
  %v1565 = vrcp.pop %v1536
  %v1566 = vmul.f32 %v1440, %v1565
  %v1567 = vrcp.pop %v1537
  %v1568 = vmul.f32 %v1441, %v1567
  %v1569 = vrcp.pop %v1538
  %v1570 = vmul.f32 %v1442, %v1569
  %v1571 = vrcp.pop %v1539
  %v1572 = vmul.f32 %v1443, %v1571
  %v1573 = vrcp.pop %v1540
  %v1574 = vmul.f32 %v1444, %v1573
  %v1575 = vrcp.pop %v1541
  %v1576 = vmul.f32 %v1445, %v1575
  %v1577 = vrcp.pop %v1542
  %v1578 = vmul.f32 %v1446, %v1577
  %v1579 = vrcp.pop %v1543
  %v1580 = vmul.f32 %v1447, %v1579
  %v1581 = vrcp.pop %v1544
  %v1582 = vmul.f32 %v1448, %v1581
  %v1583 = vrcp.pop %v1545
  %v1584 = vmul.f32 %v1449, %v1583
  %v1585 = vrcp.pop %v1546
  %v1586 = vmul.f32 %v1450, %v1585
  %v1587 = vrcp.pop %v1547
  %v1588 = vmul.f32 %v1451, %v1587
  %v1589 = vrcp.pop %v1548
  %v1590 = vmul.f32 %v1452, %v1589
  %v1591 = vrcp.pop %v1549
  %v1592 = vmul.f32 %v1453, %v1591
  %v1593 = vrcp.pop %v1550
  %v1594 = vmul.f32 %v1454, %v1593
  %v1595 = vrcp.pop %v1551
  %v1596 = vmul.f32 %v1455, %v1595
  %v1597 = vrcp.pop %v1552
  %v1598 = vmul.f32 %v1456, %v1597
  %v1599 = vrcp.pop %v1553
  %v1600 = vmul.f32 %v1457, %v1599
  %v1601 = vrcp.pop %v1554
  %v1602 = vmul.f32 %v1458, %v1601
  %v1603 = vpack.c.bf16 %v1558, %v1556
  %v1604 = vpack.c.bf16 %v1562, %v1560
  %v1605 = vpack.c.bf16 %v1566, %v1564
  %v1606 = vpack.c.bf16 %v1570, %v1568
  %v1607 = vpack.c.bf16 %v1574, %v1572
  %v1608 = vpack.c.bf16 %v1578, %v1576
  %v1609 = vpack.c.bf16 %v1582, %v1580
  %v1610 = vpack.c.bf16 %v1586, %v1584
  %v1611 = vpack.c.bf16 %v1590, %v1588
  %v1612 = vpack.c.bf16 %v1594, %v1592
  %v1613 = vpack.c.bf16 %v1598, %v1596
  %v1614 = vpack.c.bf16 %v1602, %v1600
  %v1616 = vsel %vm1290, %v1603, 0
  %1618 = vmatprep.subr.bf16.mxu0 0
  %1619 = vmatpush1.bf16.msra.mxu0 0
  %1620 = vmatprep.subr.bf16.mxu0 0
  %1621 = vmatpush1.bf16.msra.mxu0 0
  %1622 = vmatprep.subr.bf16.mxu0 0
  %1623 = vmatpush1.bf16.msra.mxu0 0
  %1624 = vmatprep.subr.bf16.mxu0 0
  %1625 = vmatpush1.bf16.msra.mxu0 0
  %1626 = vmatprep.subr.bf16.mxu0 0
  %1627 = vmatpush1.bf16.msra.mxu0 0
  %1628 = vmatprep.subr.bf16.mxu0 0
  %1629 = vmatpush1.bf16.msra.mxu0 0
  %1630 = vmatprep.subr.bf16.mxu0 0
  %1631 = vmatpush1.bf16.msra.mxu0 0
  %1632 = vmatprep.subr.bf16.mxu0 0
  %1633 = vmatpush1.bf16.msra.mxu0 %v651
  %1634 = vmatprep.subr.bf16.mxu0 0
  %1635 = vmatpush2.bf16.msra.mxu0 0
  %1636 = vmatprep.subr.bf16.mxu0 0
  %1637 = vmatpush2.bf16.msra.mxu0 0
  %1638 = vmatprep.subr.bf16.mxu0 0
  %1639 = vmatpush2.bf16.msra.mxu0 0
  %1640 = vmatprep.subr.bf16.mxu0 0
  %1641 = vmatpush2.bf16.msra.mxu0 0
  %1642 = vmatprep.subr.bf16.mxu0 0
  %1643 = vmatpush2.bf16.msra.mxu0 0
  %1644 = vmatprep.subr.bf16.mxu0 0
  %1645 = vmatpush2.bf16.msra.mxu0 0
  %1646 = vmatprep.subr.bf16.mxu0 0
  %1647 = vmatpush2.bf16.msra.mxu0 0
  %1648 = vmatprep.subr.bf16.mxu0 0
  %1649 = vmatpush2.bf16.msra.mxu0 0
  %1650 = vmatprep.mubr.bf16.mxu0 0
  %1651 = vmatmul.mubr.bf16.gmra.mxu0 %v1616
  %v1652 = vpop.f32.mrf.mxu0
  %v1653 = vadd.f32 0.0, %v1652
  %v1654 = vpop.f32.mrf.mxu0
  %v1655 = vpop.f32.mrf.mxu0
  %v1656 = vadd.f32 0.0, %v1655
  %v1657 = vpop.f32.mrf.mxu0
  %1658 = vdwg.mxu0
  %v1660 = vsel %vm1290, %v1604, 0
  %1662 = vmatprep.subr.bf16.mxu0 0
  %1663 = vmatpush1.bf16.msra.mxu0 0
  %1664 = vmatprep.subr.bf16.mxu0 0
  %1665 = vmatpush1.bf16.msra.mxu0 0
  %1666 = vmatprep.subr.bf16.mxu0 0
  %1667 = vmatpush1.bf16.msra.mxu0 0
  %1668 = vmatprep.subr.bf16.mxu0 0
  %1669 = vmatpush1.bf16.msra.mxu0 0
  %1670 = vmatprep.subr.bf16.mxu0 0
  %1671 = vmatpush1.bf16.msra.mxu0 0
  %1672 = vmatprep.subr.bf16.mxu0 0
  %1673 = vmatpush1.bf16.msra.mxu0 0
  %1674 = vmatprep.subr.bf16.mxu0 0
  %1675 = vmatpush1.bf16.msra.mxu0 0
  %1676 = vmatprep.subr.bf16.mxu0 0
  %1677 = vmatpush1.bf16.msra.mxu0 %v698
  %1678 = vmatprep.subr.bf16.mxu0 0
  %1679 = vmatpush2.bf16.msra.mxu0 0
  %1680 = vmatprep.subr.bf16.mxu0 0
  %1681 = vmatpush2.bf16.msra.mxu0 0
  %1682 = vmatprep.subr.bf16.mxu0 0
  %1683 = vmatpush2.bf16.msra.mxu0 0
  %1684 = vmatprep.subr.bf16.mxu0 0
  %1685 = vmatpush2.bf16.msra.mxu0 0
  %1686 = vmatprep.subr.bf16.mxu0 0
  %1687 = vmatpush2.bf16.msra.mxu0 0
  %1688 = vmatprep.subr.bf16.mxu0 0
  %1689 = vmatpush2.bf16.msra.mxu0 0
  %1690 = vmatprep.subr.bf16.mxu0 0
  %1691 = vmatpush2.bf16.msra.mxu0 0
  %1692 = vmatprep.subr.bf16.mxu0 0
  %1693 = vmatpush2.bf16.msra.mxu0 0
  %1694 = vmatprep.mubr.bf16.mxu0 0
  %1695 = vmatmul.mubr.bf16.gmra.mxu0 %v1660
  %v1696 = vpop.f32.mrf.mxu0
  %v1697 = vadd.f32 0.0, %v1696
  %v1698 = vpop.f32.mrf.mxu0
  %v1699 = vpop.f32.mrf.mxu0
  %v1700 = vadd.f32 0.0, %v1699
  %v1701 = vpop.f32.mrf.mxu0
  %1702 = vdwg.mxu0
  %v1704 = vsel %vm1290, %v1605, 0
  %1706 = vmatprep.subr.bf16.mxu0 0
  %1707 = vmatpush1.bf16.msra.mxu0 0
  %1708 = vmatprep.subr.bf16.mxu0 0
  %1709 = vmatpush1.bf16.msra.mxu0 0
  %1710 = vmatprep.subr.bf16.mxu0 0
  %1711 = vmatpush1.bf16.msra.mxu0 0
  %1712 = vmatprep.subr.bf16.mxu0 0
  %1713 = vmatpush1.bf16.msra.mxu0 0
  %1714 = vmatprep.subr.bf16.mxu0 0
  %1715 = vmatpush1.bf16.msra.mxu0 0
  %1716 = vmatprep.subr.bf16.mxu0 0
  %1717 = vmatpush1.bf16.msra.mxu0 0
  %1718 = vmatprep.subr.bf16.mxu0 0
  %1719 = vmatpush1.bf16.msra.mxu0 0
  %1720 = vmatprep.subr.bf16.mxu0 0
  %1721 = vmatpush1.bf16.msra.mxu0 %v701
  %1722 = vmatprep.subr.bf16.mxu0 0
  %1723 = vmatpush2.bf16.msra.mxu0 0
  %1724 = vmatprep.subr.bf16.mxu0 0
  %1725 = vmatpush2.bf16.msra.mxu0 0
  %1726 = vmatprep.subr.bf16.mxu0 0
  %1727 = vmatpush2.bf16.msra.mxu0 0
  %1728 = vmatprep.subr.bf16.mxu0 0
  %1729 = vmatpush2.bf16.msra.mxu0 0
  %1730 = vmatprep.subr.bf16.mxu0 0
  %1731 = vmatpush2.bf16.msra.mxu0 0
  %1732 = vmatprep.subr.bf16.mxu0 0
  %1733 = vmatpush2.bf16.msra.mxu0 0
  %1734 = vmatprep.subr.bf16.mxu0 0
  %1735 = vmatpush2.bf16.msra.mxu0 0
  %1736 = vmatprep.subr.bf16.mxu0 0
  %1737 = vmatpush2.bf16.msra.mxu0 0
  %1738 = vmatprep.mubr.bf16.mxu0 0
  %1739 = vmatmul.mubr.bf16.gmra.mxu0 %v1704
  %v1740 = vpop.f32.mrf.mxu0
  %v1741 = vadd.f32 0.0, %v1740
  %v1742 = vpop.f32.mrf.mxu0
  %v1743 = vpop.f32.mrf.mxu0
  %v1744 = vadd.f32 0.0, %v1743
  %v1745 = vpop.f32.mrf.mxu0
  %1746 = vdwg.mxu0
  %v1748 = vsel %vm1290, %v1606, 0
  %1750 = vmatprep.subr.bf16.mxu0 0
  %1751 = vmatpush1.bf16.msra.mxu0 0
  %1752 = vmatprep.subr.bf16.mxu0 0
  %1753 = vmatpush1.bf16.msra.mxu0 0
  %1754 = vmatprep.subr.bf16.mxu0 0
  %1755 = vmatpush1.bf16.msra.mxu0 0
  %1756 = vmatprep.subr.bf16.mxu0 0
  %1757 = vmatpush1.bf16.msra.mxu0 0
  %1758 = vmatprep.subr.bf16.mxu0 0
  %1759 = vmatpush1.bf16.msra.mxu0 0
  %1760 = vmatprep.subr.bf16.mxu0 0
  %1761 = vmatpush1.bf16.msra.mxu0 0
  %1762 = vmatprep.subr.bf16.mxu0 0
  %1763 = vmatpush1.bf16.msra.mxu0 0
  %1764 = vmatprep.subr.bf16.mxu0 0
  %1765 = vmatpush1.bf16.msra.mxu0 %v704
  %1766 = vmatprep.subr.bf16.mxu0 0
  %1767 = vmatpush2.bf16.msra.mxu0 0
  %1768 = vmatprep.subr.bf16.mxu0 0
  %1769 = vmatpush2.bf16.msra.mxu0 0
  %1770 = vmatprep.subr.bf16.mxu0 0
  %1771 = vmatpush2.bf16.msra.mxu0 0
  %1772 = vmatprep.subr.bf16.mxu0 0
  %1773 = vmatpush2.bf16.msra.mxu0 0
  %1774 = vmatprep.subr.bf16.mxu0 0
  %1775 = vmatpush2.bf16.msra.mxu0 0
  %1776 = vmatprep.subr.bf16.mxu0 0
  %1777 = vmatpush2.bf16.msra.mxu0 0
  %1778 = vmatprep.subr.bf16.mxu0 0
  %1779 = vmatpush2.bf16.msra.mxu0 0
  %1780 = vmatprep.subr.bf16.mxu0 0
  %1781 = vmatpush2.bf16.msra.mxu0 0
  %1782 = vmatprep.mubr.bf16.mxu0 0
  %1783 = vmatmul.mubr.bf16.gmra.mxu0 %v1748
  %v1784 = vpop.f32.mrf.mxu0
  %v1785 = vadd.f32 0.0, %v1784
  %v1786 = vpop.f32.mrf.mxu0
  %v1787 = vpop.f32.mrf.mxu0
  %v1788 = vadd.f32 0.0, %v1787
  %v1789 = vpop.f32.mrf.mxu0
  %1790 = vdwg.mxu0
  %v1792 = vsel %vm1290, %v1607, 0
  %1794 = vmatprep.subr.bf16.mxu0 0
  %1795 = vmatpush1.bf16.msra.mxu0 0
  %1796 = vmatprep.subr.bf16.mxu0 0
  %1797 = vmatpush1.bf16.msra.mxu0 0
  %1798 = vmatprep.subr.bf16.mxu0 0
  %1799 = vmatpush1.bf16.msra.mxu0 0
  %1800 = vmatprep.subr.bf16.mxu0 0
  %1801 = vmatpush1.bf16.msra.mxu0 0
  %1802 = vmatprep.subr.bf16.mxu0 0
  %1803 = vmatpush1.bf16.msra.mxu0 0
  %1804 = vmatprep.subr.bf16.mxu0 0
  %1805 = vmatpush1.bf16.msra.mxu0 0
  %1806 = vmatprep.subr.bf16.mxu0 0
  %1807 = vmatpush1.bf16.msra.mxu0 0
  %1808 = vmatprep.subr.bf16.mxu0 0
  %1809 = vmatpush1.bf16.msra.mxu0 %v652
  %1810 = vmatprep.subr.bf16.mxu0 0
  %1811 = vmatpush2.bf16.msra.mxu0 0
  %1812 = vmatprep.subr.bf16.mxu0 0
  %1813 = vmatpush2.bf16.msra.mxu0 0
  %1814 = vmatprep.subr.bf16.mxu0 0
  %1815 = vmatpush2.bf16.msra.mxu0 0
  %1816 = vmatprep.subr.bf16.mxu0 0
  %1817 = vmatpush2.bf16.msra.mxu0 0
  %1818 = vmatprep.subr.bf16.mxu0 0
  %1819 = vmatpush2.bf16.msra.mxu0 0
  %1820 = vmatprep.subr.bf16.mxu0 0
  %1821 = vmatpush2.bf16.msra.mxu0 0
  %1822 = vmatprep.subr.bf16.mxu0 0
  %1823 = vmatpush2.bf16.msra.mxu0 0
  %1824 = vmatprep.subr.bf16.mxu0 0
  %1825 = vmatpush2.bf16.msra.mxu0 0
  %1826 = vmatprep.mubr.bf16.mxu0 0
  %1827 = vmatmul.mubr.bf16.gmra.mxu0 %v1792
  %v1828 = vpop.f32.mrf.mxu0
  %v1829 = vadd.f32 0.0, %v1828
  %v1830 = vpop.f32.mrf.mxu0
  %v1831 = vpop.f32.mrf.mxu0
  %v1832 = vadd.f32 0.0, %v1831
  %v1833 = vpop.f32.mrf.mxu0
  %1834 = vdwg.mxu0
  %v1836 = vsel %vm1290, %v1608, 0
  %1838 = vmatprep.subr.bf16.mxu0 0
  %1839 = vmatpush1.bf16.msra.mxu0 0
  %1840 = vmatprep.subr.bf16.mxu0 0
  %1841 = vmatpush1.bf16.msra.mxu0 0
  %1842 = vmatprep.subr.bf16.mxu0 0
  %1843 = vmatpush1.bf16.msra.mxu0 0
  %1844 = vmatprep.subr.bf16.mxu0 0
  %1845 = vmatpush1.bf16.msra.mxu0 0
  %1846 = vmatprep.subr.bf16.mxu0 0
  %1847 = vmatpush1.bf16.msra.mxu0 0
  %1848 = vmatprep.subr.bf16.mxu0 0
  %1849 = vmatpush1.bf16.msra.mxu0 0
  %1850 = vmatprep.subr.bf16.mxu0 0
  %1851 = vmatpush1.bf16.msra.mxu0 0
  %1852 = vmatprep.subr.bf16.mxu0 0
  %1853 = vmatpush1.bf16.msra.mxu0 %v708
  %1854 = vmatprep.subr.bf16.mxu0 0
  %1855 = vmatpush2.bf16.msra.mxu0 0
  %1856 = vmatprep.subr.bf16.mxu0 0
  %1857 = vmatpush2.bf16.msra.mxu0 0
  %1858 = vmatprep.subr.bf16.mxu0 0
  %1859 = vmatpush2.bf16.msra.mxu0 0
  %1860 = vmatprep.subr.bf16.mxu0 0
  %1861 = vmatpush2.bf16.msra.mxu0 0
  %1862 = vmatprep.subr.bf16.mxu0 0
  %1863 = vmatpush2.bf16.msra.mxu0 0
  %1864 = vmatprep.subr.bf16.mxu0 0
  %1865 = vmatpush2.bf16.msra.mxu0 0
  %1866 = vmatprep.subr.bf16.mxu0 0
  %1867 = vmatpush2.bf16.msra.mxu0 0
  %1868 = vmatprep.subr.bf16.mxu0 0
  %1869 = vmatpush2.bf16.msra.mxu0 0
  %1870 = vmatprep.mubr.bf16.mxu0 0
  %1871 = vmatmul.mubr.bf16.gmra.mxu0 %v1836
  %v1872 = vpop.f32.mrf.mxu0
  %v1873 = vadd.f32 0.0, %v1872
  %v1874 = vpop.f32.mrf.mxu0
  %v1875 = vpop.f32.mrf.mxu0
  %v1876 = vadd.f32 0.0, %v1875
  %v1877 = vpop.f32.mrf.mxu0
  %1878 = vdwg.mxu0
  %v1880 = vsel %vm1290, %v1609, 0
  %1882 = vmatprep.subr.bf16.mxu0 0
  %1883 = vmatpush1.bf16.msra.mxu0 0
  %1884 = vmatprep.subr.bf16.mxu0 0
  %1885 = vmatpush1.bf16.msra.mxu0 0
  %1886 = vmatprep.subr.bf16.mxu0 0
  %1887 = vmatpush1.bf16.msra.mxu0 0
  %1888 = vmatprep.subr.bf16.mxu0 0
  %1889 = vmatpush1.bf16.msra.mxu0 0
  %1890 = vmatprep.subr.bf16.mxu0 0
  %1891 = vmatpush1.bf16.msra.mxu0 0
  %1892 = vmatprep.subr.bf16.mxu0 0
  %1893 = vmatpush1.bf16.msra.mxu0 0
  %1894 = vmatprep.subr.bf16.mxu0 0
  %1895 = vmatpush1.bf16.msra.mxu0 0
  %1896 = vmatprep.subr.bf16.mxu0 0
  %1897 = vmatpush1.bf16.msra.mxu0 %v711
  %1898 = vmatprep.subr.bf16.mxu0 0
  %1899 = vmatpush2.bf16.msra.mxu0 0
  %1900 = vmatprep.subr.bf16.mxu0 0
  %1901 = vmatpush2.bf16.msra.mxu0 0
  %1902 = vmatprep.subr.bf16.mxu0 0
  %1903 = vmatpush2.bf16.msra.mxu0 0
  %1904 = vmatprep.subr.bf16.mxu0 0
  %1905 = vmatpush2.bf16.msra.mxu0 0
  %1906 = vmatprep.subr.bf16.mxu0 0
  %1907 = vmatpush2.bf16.msra.mxu0 0
  %1908 = vmatprep.subr.bf16.mxu0 0
  %1909 = vmatpush2.bf16.msra.mxu0 0
  %1910 = vmatprep.subr.bf16.mxu0 0
  %1911 = vmatpush2.bf16.msra.mxu0 0
  %1912 = vmatprep.subr.bf16.mxu0 0
  %1913 = vmatpush2.bf16.msra.mxu0 0
  %1914 = vmatprep.mubr.bf16.mxu0 0
  %1915 = vmatmul.mubr.bf16.gmra.mxu0 %v1880
  %v1916 = vpop.f32.mrf.mxu0
  %v1917 = vadd.f32 0.0, %v1916
  %v1918 = vpop.f32.mrf.mxu0
  %v1919 = vpop.f32.mrf.mxu0
  %v1920 = vadd.f32 0.0, %v1919
  %v1921 = vpop.f32.mrf.mxu0
  %1922 = vdwg.mxu0
  %v1924 = vsel %vm1290, %v1610, 0
  %1926 = vmatprep.subr.bf16.mxu0 0
  %1927 = vmatpush1.bf16.msra.mxu0 0
  %1928 = vmatprep.subr.bf16.mxu0 0
  %1929 = vmatpush1.bf16.msra.mxu0 0
  %1930 = vmatprep.subr.bf16.mxu0 0
  %1931 = vmatpush1.bf16.msra.mxu0 0
  %1932 = vmatprep.subr.bf16.mxu0 0
  %1933 = vmatpush1.bf16.msra.mxu0 0
  %1934 = vmatprep.subr.bf16.mxu0 0
  %1935 = vmatpush1.bf16.msra.mxu0 0
  %1936 = vmatprep.subr.bf16.mxu0 0
  %1937 = vmatpush1.bf16.msra.mxu0 0
  %1938 = vmatprep.subr.bf16.mxu0 0
  %1939 = vmatpush1.bf16.msra.mxu0 0
  %1940 = vmatprep.subr.bf16.mxu0 0
  %1941 = vmatpush1.bf16.msra.mxu0 %v714
  %1942 = vmatprep.subr.bf16.mxu0 0
  %1943 = vmatpush2.bf16.msra.mxu0 0
  %1944 = vmatprep.subr.bf16.mxu0 0
  %1945 = vmatpush2.bf16.msra.mxu0 0
  %1946 = vmatprep.subr.bf16.mxu0 0
  %1947 = vmatpush2.bf16.msra.mxu0 0
  %1948 = vmatprep.subr.bf16.mxu0 0
  %1949 = vmatpush2.bf16.msra.mxu0 0
  %1950 = vmatprep.subr.bf16.mxu0 0
  %1951 = vmatpush2.bf16.msra.mxu0 0
  %1952 = vmatprep.subr.bf16.mxu0 0
  %1953 = vmatpush2.bf16.msra.mxu0 0
  %1954 = vmatprep.subr.bf16.mxu0 0
  %1955 = vmatpush2.bf16.msra.mxu0 0
  %1956 = vmatprep.subr.bf16.mxu0 0
  %1957 = vmatpush2.bf16.msra.mxu0 0
  %1958 = vmatprep.mubr.bf16.mxu0 0
  %1959 = vmatmul.mubr.bf16.gmra.mxu0 %v1924
  %v1960 = vpop.f32.mrf.mxu0
  %v1961 = vadd.f32 0.0, %v1960
  %v1962 = vpop.f32.mrf.mxu0
  %v1963 = vpop.f32.mrf.mxu0
  %v1964 = vadd.f32 0.0, %v1963
  %v1965 = vpop.f32.mrf.mxu0
  %1966 = vdwg.mxu0
  %v1968 = vsel %vm1290, %v1611, 0
  %1970 = vmatprep.subr.bf16.mxu0 0
  %1971 = vmatpush1.bf16.msra.mxu0 0
  %1972 = vmatprep.subr.bf16.mxu0 0
  %1973 = vmatpush1.bf16.msra.mxu0 0
  %1974 = vmatprep.subr.bf16.mxu0 0
  %1975 = vmatpush1.bf16.msra.mxu0 0
  %1976 = vmatprep.subr.bf16.mxu0 0
  %1977 = vmatpush1.bf16.msra.mxu0 0
  %1978 = vmatprep.subr.bf16.mxu0 0
  %1979 = vmatpush1.bf16.msra.mxu0 0
  %1980 = vmatprep.subr.bf16.mxu0 0
  %1981 = vmatpush1.bf16.msra.mxu0 0
  %1982 = vmatprep.subr.bf16.mxu0 0
  %1983 = vmatpush1.bf16.msra.mxu0 0
  %1984 = vmatprep.subr.bf16.mxu0 0
  %1985 = vmatpush1.bf16.msra.mxu0 %v653
  %1986 = vmatprep.subr.bf16.mxu0 0
  %1987 = vmatpush2.bf16.msra.mxu0 0
  %1988 = vmatprep.subr.bf16.mxu0 0
  %1989 = vmatpush2.bf16.msra.mxu0 0
  %1990 = vmatprep.subr.bf16.mxu0 0
  %1991 = vmatpush2.bf16.msra.mxu0 0
  %1992 = vmatprep.subr.bf16.mxu0 0
  %1993 = vmatpush2.bf16.msra.mxu0 0
  %1994 = vmatprep.subr.bf16.mxu0 0
  %1995 = vmatpush2.bf16.msra.mxu0 0
  %1996 = vmatprep.subr.bf16.mxu0 0
  %1997 = vmatpush2.bf16.msra.mxu0 0
  %1998 = vmatprep.subr.bf16.mxu0 0
  %1999 = vmatpush2.bf16.msra.mxu0 0
  %2000 = vmatprep.subr.bf16.mxu0 0
  %2001 = vmatpush2.bf16.msra.mxu0 0
  %2002 = vmatprep.mubr.bf16.mxu0 0
  %2003 = vmatmul.mubr.bf16.gmra.mxu0 %v1968
  %v2004 = vpop.f32.mrf.mxu0
  %v2005 = vadd.f32 0.0, %v2004
  %v2006 = vpop.f32.mrf.mxu0
  %v2007 = vpop.f32.mrf.mxu0
  %v2008 = vadd.f32 0.0, %v2007
  %v2009 = vpop.f32.mrf.mxu0
  %2010 = vdwg.mxu0
  %v2012 = vsel %vm1290, %v1612, 0
  %2014 = vmatprep.subr.bf16.mxu0 0
  %2015 = vmatpush1.bf16.msra.mxu0 0
  %2016 = vmatprep.subr.bf16.mxu0 0
  %2017 = vmatpush1.bf16.msra.mxu0 0
  %2018 = vmatprep.subr.bf16.mxu0 0
  %2019 = vmatpush1.bf16.msra.mxu0 0
  %2020 = vmatprep.subr.bf16.mxu0 0
  %2021 = vmatpush1.bf16.msra.mxu0 0
  %2022 = vmatprep.subr.bf16.mxu0 0
  %2023 = vmatpush1.bf16.msra.mxu0 0
  %2024 = vmatprep.subr.bf16.mxu0 0
  %2025 = vmatpush1.bf16.msra.mxu0 0
  %2026 = vmatprep.subr.bf16.mxu0 0
  %2027 = vmatpush1.bf16.msra.mxu0 0
  %2028 = vmatprep.subr.bf16.mxu0 0
  %2029 = vmatpush1.bf16.msra.mxu0 %v718
  %2030 = vmatprep.subr.bf16.mxu0 0
  %2031 = vmatpush2.bf16.msra.mxu0 0
  %2032 = vmatprep.subr.bf16.mxu0 0
  %2033 = vmatpush2.bf16.msra.mxu0 0
  %2034 = vmatprep.subr.bf16.mxu0 0
  %2035 = vmatpush2.bf16.msra.mxu0 0
  %2036 = vmatprep.subr.bf16.mxu0 0
  %2037 = vmatpush2.bf16.msra.mxu0 0
  %2038 = vmatprep.subr.bf16.mxu0 0
  %2039 = vmatpush2.bf16.msra.mxu0 0
  %2040 = vmatprep.subr.bf16.mxu0 0
  %2041 = vmatpush2.bf16.msra.mxu0 0
  %2042 = vmatprep.subr.bf16.mxu0 0
  %2043 = vmatpush2.bf16.msra.mxu0 0
  %2044 = vmatprep.subr.bf16.mxu0 0
  %2045 = vmatpush2.bf16.msra.mxu0 0
  %2046 = vmatprep.mubr.bf16.mxu0 0
  %2047 = vmatmul.mubr.bf16.gmra.mxu0 %v2012
  %v2048 = vpop.f32.mrf.mxu0
  %v2049 = vadd.f32 0.0, %v2048
  %v2050 = vpop.f32.mrf.mxu0
  %v2051 = vpop.f32.mrf.mxu0
  %v2052 = vadd.f32 0.0, %v2051
  %v2053 = vpop.f32.mrf.mxu0
  %2054 = vdwg.mxu0
  %v2056 = vsel %vm1290, %v1613, 0
  %2058 = vmatprep.subr.bf16.mxu0 0
  %2059 = vmatpush1.bf16.msra.mxu0 0
  %2060 = vmatprep.subr.bf16.mxu0 0
  %2061 = vmatpush1.bf16.msra.mxu0 0
  %2062 = vmatprep.subr.bf16.mxu0 0
  %2063 = vmatpush1.bf16.msra.mxu0 0
  %2064 = vmatprep.subr.bf16.mxu0 0
  %2065 = vmatpush1.bf16.msra.mxu0 0
  %2066 = vmatprep.subr.bf16.mxu0 0
  %2067 = vmatpush1.bf16.msra.mxu0 0
  %2068 = vmatprep.subr.bf16.mxu0 0
  %2069 = vmatpush1.bf16.msra.mxu0 0
  %2070 = vmatprep.subr.bf16.mxu0 0
  %2071 = vmatpush1.bf16.msra.mxu0 0
  %2072 = vmatprep.subr.bf16.mxu0 0
  %2073 = vmatpush1.bf16.msra.mxu0 %v721
  %2074 = vmatprep.subr.bf16.mxu0 0
  %2075 = vmatpush2.bf16.msra.mxu0 0
  %2076 = vmatprep.subr.bf16.mxu0 0
  %2077 = vmatpush2.bf16.msra.mxu0 0
  %2078 = vmatprep.subr.bf16.mxu0 0
  %2079 = vmatpush2.bf16.msra.mxu0 0
  %2080 = vmatprep.subr.bf16.mxu0 0
  %2081 = vmatpush2.bf16.msra.mxu0 0
  %2082 = vmatprep.subr.bf16.mxu0 0
  %2083 = vmatpush2.bf16.msra.mxu0 0
  %2084 = vmatprep.subr.bf16.mxu0 0
  %2085 = vmatpush2.bf16.msra.mxu0 0
  %2086 = vmatprep.subr.bf16.mxu0 0
  %2087 = vmatpush2.bf16.msra.mxu0 0
  %2088 = vmatprep.subr.bf16.mxu0 0
  %2089 = vmatpush2.bf16.msra.mxu0 0
  %2090 = vmatprep.mubr.bf16.mxu0 0
  %2091 = vmatmul.mubr.bf16.gmra.mxu0 %v2056
  %v2092 = vpop.f32.mrf.mxu0
  %v2093 = vadd.f32 0.0, %v2092
  %v2094 = vpop.f32.mrf.mxu0
  %v2095 = vpop.f32.mrf.mxu0
  %v2096 = vadd.f32 0.0, %v2095
  %v2097 = vpop.f32.mrf.mxu0
  %2098 = vdwg.mxu0
  %v2100 = vsel %vm1290, %v1614, 0
  %2102 = vmatprep.subr.bf16.mxu0 0
  %2103 = vmatpush1.bf16.msra.mxu0 0
  %2104 = vmatprep.subr.bf16.mxu0 0
  %2105 = vmatpush1.bf16.msra.mxu0 0
  %2106 = vmatprep.subr.bf16.mxu0 0
  %2107 = vmatpush1.bf16.msra.mxu0 0
  %2108 = vmatprep.subr.bf16.mxu0 0
  %2109 = vmatpush1.bf16.msra.mxu0 0
  %2110 = vmatprep.subr.bf16.mxu0 0
  %2111 = vmatpush1.bf16.msra.mxu0 0
  %2112 = vmatprep.subr.bf16.mxu0 0
  %2113 = vmatpush1.bf16.msra.mxu0 0
  %2114 = vmatprep.subr.bf16.mxu0 0
  %2115 = vmatpush1.bf16.msra.mxu0 0
  %2116 = vmatprep.subr.bf16.mxu0 0
  %2117 = vmatpush1.bf16.msra.mxu0 %v724
  %2118 = vmatprep.subr.bf16.mxu0 0
  %2119 = vmatpush2.bf16.msra.mxu0 0
  %2120 = vmatprep.subr.bf16.mxu0 0
  %2121 = vmatpush2.bf16.msra.mxu0 0
  %2122 = vmatprep.subr.bf16.mxu0 0
  %2123 = vmatpush2.bf16.msra.mxu0 0
  %2124 = vmatprep.subr.bf16.mxu0 0
  %2125 = vmatpush2.bf16.msra.mxu0 0
  %2126 = vmatprep.subr.bf16.mxu0 0
  %2127 = vmatpush2.bf16.msra.mxu0 0
  %2128 = vmatprep.subr.bf16.mxu0 0
  %2129 = vmatpush2.bf16.msra.mxu0 0
  %2130 = vmatprep.subr.bf16.mxu0 0
  %2131 = vmatpush2.bf16.msra.mxu0 0
  %2132 = vmatprep.subr.bf16.mxu0 0
  %2133 = vmatpush2.bf16.msra.mxu0 0
  %2134 = vmatprep.mubr.bf16.mxu0 0
  %2135 = vmatmul.mubr.bf16.gmra.mxu0 %v2100
  %v2136 = vpop.f32.mrf.mxu0
  %v2137 = vadd.f32 0.0, %v2136
  %v2138 = vpop.f32.mrf.mxu0
  %v2139 = vpop.f32.mrf.mxu0
  %v2140 = vadd.f32 0.0, %v2139
  %v2141 = vpop.f32.mrf.mxu0
  %2142 = vdwg.mxu0
  %v2143 = vadd.f32 %v1653, %v1697
  %v2144 = vadd.f32 %v1656, %v1700
  %v2145 = vadd.f32 %v2143, %v1741
  %v2146 = vadd.f32 %v2144, %v1744
  %v2147 = vadd.f32 %v2145, %v1785
  %v2148 = vadd.f32 %v2146, %v1788
  %v2149 = vmul.f32 %v2147, 0.25
  %v2150 = vmul.f32 %v2148, 0.25
  %v2151 = vadd.f32 %v2149, %v639
  %v2152 = vadd.f32 %v2150, %v643
  %v2153 = vadd.f32 %v1829, %v1873
  %v2154 = vadd.f32 %v1832, %v1876
  %v2155 = vadd.f32 %v2153, %v1917
  %v2156 = vadd.f32 %v2154, %v1920
  %v2157 = vadd.f32 %v2155, %v1961
  %v2158 = vadd.f32 %v2156, %v1964
  %v2159 = vmul.f32 %v2157, 0.25
  %v2160 = vmul.f32 %v2158, 0.25
  %2163 = vrot.lane.b32.xlu0 %v639, 96
  %v2164 = vpop.permute.xlu0 %2163
  %2165 = vrot.lane.b32.xlu0 %v643, 96
  %v2166 = vpop.permute.xlu0 %2165
  %v2169 = vadd.f32 %v2159, %v2164
  %v2170 = vadd.f32 %v2160, %v2166
  %v2171 = vadd.f32 %v2005, %v2049
  %v2172 = vadd.f32 %v2008, %v2052
  %v2173 = vadd.f32 %v2171, %v2093
  %v2174 = vadd.f32 %v2172, %v2096
  %v2175 = vadd.f32 %v2173, %v2137
  %v2176 = vadd.f32 %v2174, %v2140
  %v2177 = vmul.f32 %v2175, 0.25
  %v2178 = vmul.f32 %v2176, 0.25
  %2179 = vrot.lane.b32.xlu0 %v639, 64
  %v2180 = vpop.permute.xlu0 %2179
  %2181 = vrot.lane.b32.xlu0 %v643, 64
  %v2182 = vpop.permute.xlu0 %2181
  %v2185 = vadd.f32 %v2177, %v2180
  %v2186 = vadd.f32 %v2178, %v2182
  %v2187 = vpack.c.bf16 %v2152, %v2151
  %v2188 = vpack.c.bf16 %v2170, %v2169
  %v2189 = vpack.c.bf16 %v2186, %v2185
  %v2194 = vunpack.c.l.b16 %v29
  %v2195 = vunpack.c.l.b16 %v30
  %v2196 = vunpack.c.l.b16 %v31
  %v2197 = vunpack.c.l.b16 %v32
  %v2198 = vpack.c.b16 %v2194, %v153
  %v2199 = vpack.c.b16 %v2196, %v2195
  %v2200 = vpack.c.b16 %v2197, %v2197
  %vm2201 = vcmask 1046528
  %v2202 = vrot.slane %v2198, 1
  %v2203 = vrot.slane %v2199, 1
  %v2204 = vsel %vm2201, %v2202, %v2203
  %v2205 = vrot.slane %v2200, 1
  %v2206 = vsel %vm2201, %v2203, %v2205
  %2209 = vrot.lane.b32.xlu0 %v639, 32
  %v2210 = vpop.permute.xlu0 %2209
  %2211 = vrot.lane.b32.xlu0 %v643, 32
  %v2212 = vpop.permute.xlu0 %2211
  %v2216 = vsel %vm180, %v2187, 0
  %v2219 = vsel %vm180, %v2188, 0
  %v2222 = vsel %vm180, %v2189, 0
  %2224 = vmatprep.subr.bf16.mxu0 0
  %2225 = vmatpush1.bf16.msra.mxu0 0
  %2226 = vmatprep.subr.bf16.mxu0 0
  %2227 = vmatpush1.bf16.msra.mxu0 0
  %2228 = vmatprep.subr.bf16.mxu0 0
  %2229 = vmatpush1.bf16.msra.mxu0 0
  %2230 = vmatprep.subr.bf16.mxu0 0
  %2231 = vmatpush1.bf16.msra.mxu0 0
  %2232 = vmatprep.subr.bf16.mxu0 0
  %2233 = vmatpush1.bf16.msra.mxu0 0
  %2234 = vmatprep.subr.bf16.mxu0 0
  %2235 = vmatpush1.bf16.msra.mxu0 0
  %2236 = vmatprep.subr.bf16.mxu0 0
  %2237 = vmatpush1.bf16.msra.mxu0 %v2206
  %2238 = vmatprep.subr.bf16.mxu0 0
  %2239 = vmatpush1.bf16.msra.mxu0 %v2204
  %2240 = vmatprep.subr.bf16.mxu0 0
  %2241 = vmatpush2.bf16.msra.mxu0 0
  %2242 = vmatprep.subr.bf16.mxu0 0
  %2243 = vmatpush2.bf16.msra.mxu0 0
  %2244 = vmatprep.subr.bf16.mxu0 0
  %2245 = vmatpush2.bf16.msra.mxu0 0
  %2246 = vmatprep.subr.bf16.mxu0 0
  %2247 = vmatpush2.bf16.msra.mxu0 0
  %2248 = vmatprep.subr.bf16.mxu0 0
  %2249 = vmatpush2.bf16.msra.mxu0 0
  %2250 = vmatprep.subr.bf16.mxu0 0
  %2251 = vmatpush2.bf16.msra.mxu0 0
  %2252 = vmatprep.subr.bf16.mxu0 0
  %2253 = vmatpush2.bf16.msra.mxu0 0
  %2254 = vmatprep.subr.bf16.mxu0 0
  %2255 = vmatpush2.bf16.msra.mxu0 0
  %2256 = vmatprep.mubr.bf16.mxu0 0
  %2257 = vmatmul.mubr.bf16.gmra.mxu0 %v2216
  %v2258 = vpop.f32.mrf.mxu0
  %v2259 = vadd.f32 %v2210, %v2258
  %v2260 = vpop.f32.mrf.mxu0
  %v2261 = vpop.f32.mrf.mxu0
  %v2262 = vadd.f32 %v2212, %v2261
  %v2263 = vpop.f32.mrf.mxu0
  %2264 = vmatprep.mubr.bf16.mxu0 0
  %2265 = vmatmul.mubr.bf16.gmra.mxu0 %v2219
  %v2266 = vpop.f32.mrf.mxu0
  %v2267 = vadd.f32 %v2210, %v2266
  %v2268 = vpop.f32.mrf.mxu0
  %v2269 = vpop.f32.mrf.mxu0
  %v2270 = vadd.f32 %v2212, %v2269
  %v2271 = vpop.f32.mrf.mxu0
  %2272 = vmatprep.mubr.bf16.mxu0 0
  %2273 = vmatmul.mubr.bf16.gmra.mxu0 %v2222
  %v2274 = vpop.f32.mrf.mxu0
  %v2275 = vadd.f32 %v2210, %v2274
  %v2276 = vpop.f32.mrf.mxu0
  %v2277 = vpop.f32.mrf.mxu0
  %v2278 = vadd.f32 %v2212, %v2277
  %v2279 = vpop.f32.mrf.mxu0
  %2280 = vdwg.mxu0
  %v2281 = vxor.u32 %v2259, 2147483648
  %v2282 = vxor.u32 %v2262, 2147483648
  %v2283 = vxor.u32 %v2267, 2147483648
  %v2284 = vxor.u32 %v2270, 2147483648
  %v2285 = vxor.u32 %v2275, 2147483648
  %v2286 = vxor.u32 %v2278, 2147483648
  %v2287 = vmul.f32 %v2281, 1.442695
  %v2288 = vpow.pop %v2287
  %v2289 = vmul.f32 %v2282, 1.442695
  %v2290 = vpow.pop %v2289
  %v2291 = vmul.f32 %v2283, 1.442695
  %v2292 = vpow.pop %v2291
  %v2293 = vmul.f32 %v2284, 1.442695
  %v2294 = vpow.pop %v2293
  %v2295 = vmul.f32 %v2285, 1.442695
  %v2296 = vpow.pop %v2295
  %v2297 = vmul.f32 %v2286, 1.442695
  %v2298 = vpow.pop %v2297
  %v2299 = vadd.f32 %v2288, 1.0
  %v2300 = vadd.f32 %v2290, 1.0
  %v2301 = vadd.f32 %v2292, 1.0
  %v2302 = vadd.f32 %v2294, 1.0
  %v2303 = vadd.f32 %v2296, 1.0
  %v2304 = vadd.f32 %v2298, 1.0
  %v2305 = vrcp.pop %v2299
  %v2306 = vmul.f32 1.0, %v2305
  %v2307 = vrcp.pop %v2300
  %v2308 = vmul.f32 1.0, %v2307
  %v2309 = vrcp.pop %v2301
  %v2310 = vmul.f32 1.0, %v2309
  %v2311 = vrcp.pop %v2302
  %v2312 = vmul.f32 1.0, %v2311
  %v2313 = vrcp.pop %v2303
  %v2314 = vmul.f32 1.0, %v2313
  %v2315 = vrcp.pop %v2304
  %v2316 = vmul.f32 1.0, %v2315
  %v2317 = vtanh.pop %v2151
  %v2318 = vtanh.pop %v2152
  %v2319 = vtanh.pop %v2169
  %v2320 = vtanh.pop %v2170
  %v2321 = vtanh.pop %v2185
  %v2322 = vtanh.pop %v2186
  %v2323 = vmul.f32 %v2317, %v2306
  %v2324 = vmul.f32 %v2318, %v2308
  %v2325 = vmul.f32 %v2319, %v2310
  %v2326 = vmul.f32 %v2320, %v2312
  %v2327 = vmul.f32 %v2321, %v2314
  %v2328 = vmul.f32 %v2322, %v2316
  %v2329 = vsub.f32 1.0, %v2306
  %v2330 = vsub.f32 1.0, %v2308
  %v2331 = vsub.f32 1.0, %v2310
  %v2332 = vsub.f32 1.0, %v2312
  %v2333 = vsub.f32 1.0, %v2314
  %v2334 = vsub.f32 1.0, %v2316
  %v2335 = vmul.f32 %v229, %v2329
  %v2336 = vmul.f32 %v230, %v2330
  %v2337 = vmul.f32 %v229, %v2331
  %v2338 = vmul.f32 %v230, %v2332
  %v2339 = vmul.f32 %v229, %v2333
  %v2340 = vmul.f32 %v230, %v2334
  %v2341 = vadd.f32 %v2323, %v2335
  %v2342 = vadd.f32 %v2324, %v2336
  %v2343 = vadd.f32 %v2325, %v2337
  %v2344 = vadd.f32 %v2326, %v2338
  %v2345 = vadd.f32 %v2327, %v2339
  %v2346 = vadd.f32 %v2328, %v2340
  %v2347 = vpack.c.bf16 %v2342, %v2341
  %v2348 = vpack.c.bf16 %v2344, %v2343
  %v2349 = vpack.c.bf16 %v2346, %v2345
  %v2350 = vunpack.c.l.bf16 %v36
  %v2351 = vlaneseq
  %v2352 = vshrl.u32 %v2351, 7
  %v2353 = vsub.s32 2, %v2352
  %v2354 = vrot.slane %v2350, %v2353
  %v2359 = vunpack.c.l.b16 %v33
  %v2360 = vunpack.c.l.b16 %v34
  %v2361 = vunpack.c.l.b16 %v35
  %v2362 = vunpack.c.l.b16 %v36
  %v2363 = vpack.c.b16 %v2359, %v2197
  %v2364 = vpack.c.b16 %v2361, %v2360
  %v2365 = vpack.c.b16 %v2362, %v2362
  %v2366 = vrot.slane %v2363, 1
  %v2367 = vrot.slane %v2364, 1
  %v2368 = vsel %vm2201, %v2366, %v2367
  %v2369 = vrot.slane %v2365, 1
  %v2370 = vsel %vm2201, %v2367, %v2369
  %v2374 = vsel %vm180, %v2347, 0
  %v2377 = vsel %vm180, %v2348, 0
  %v2380 = vsel %vm180, %v2349, 0
  %2382 = vmatprep.subr.bf16.mxu0 0
  %2383 = vmatpush1.bf16.msra.mxu0 0
  %2384 = vmatprep.subr.bf16.mxu0 0
  %2385 = vmatpush1.bf16.msra.mxu0 0
  %2386 = vmatprep.subr.bf16.mxu0 0
  %2387 = vmatpush1.bf16.msra.mxu0 0
  %2388 = vmatprep.subr.bf16.mxu0 0
  %2389 = vmatpush1.bf16.msra.mxu0 0
  %2390 = vmatprep.subr.bf16.mxu0 0
  %2391 = vmatpush1.bf16.msra.mxu0 0
  %2392 = vmatprep.subr.bf16.mxu0 0
  %2393 = vmatpush1.bf16.msra.mxu0 0
  %2394 = vmatprep.subr.bf16.mxu0 0
  %2395 = vmatpush1.bf16.msra.mxu0 %v2370
  %2396 = vmatprep.subr.bf16.mxu0 0
  %2397 = vmatpush1.bf16.msra.mxu0 %v2368
  %2398 = vmatprep.subr.bf16.mxu0 0
  %2399 = vmatpush2.bf16.msra.mxu0 0
  %2400 = vmatprep.subr.bf16.mxu0 0
  %2401 = vmatpush2.bf16.msra.mxu0 0
  %2402 = vmatprep.subr.bf16.mxu0 0
  %2403 = vmatpush2.bf16.msra.mxu0 0
  %2404 = vmatprep.subr.bf16.mxu0 0
  %2405 = vmatpush2.bf16.msra.mxu0 0
  %2406 = vmatprep.subr.bf16.mxu0 0
  %2407 = vmatpush2.bf16.msra.mxu0 0
  %2408 = vmatprep.subr.bf16.mxu0 0
  %2409 = vmatpush2.bf16.msra.mxu0 0
  %2410 = vmatprep.subr.bf16.mxu0 0
  %2411 = vmatpush2.bf16.msra.mxu0 0
  %2412 = vmatprep.subr.bf16.mxu0 0
  %2413 = vmatpush2.bf16.msra.mxu0 0
  %2414 = vmatprep.mubr.bf16.mxu0 0
  %2415 = vmatmul.mubr.bf16.gmra.mxu0 %v2374
  %v2416 = vpop.f32.mrf.mxu0
  %v2417 = vadd.f32 %v2354, %v2416
  %v2418 = vpop.f32.mrf.mxu0
  %v2419 = vpop.f32.mrf.mxu0
  %v2420 = vadd.f32 %v2354, %v2419
  %v2421 = vpop.f32.mrf.mxu0
  %2422 = vmatprep.mubr.bf16.mxu0 0
  %2423 = vmatmul.mubr.bf16.gmra.mxu0 %v2377
  %v2424 = vpop.f32.mrf.mxu0
  %v2425 = vadd.f32 %v2354, %v2424
  %v2426 = vpop.f32.mrf.mxu0
  %v2427 = vpop.f32.mrf.mxu0
  %v2428 = vadd.f32 %v2354, %v2427
  %v2429 = vpop.f32.mrf.mxu0
  %2430 = vmatprep.mubr.bf16.mxu0 0
  %2431 = vmatmul.mubr.bf16.gmra.mxu0 %v2380
  %v2432 = vpop.f32.mrf.mxu0
  %v2433 = vadd.f32 %v2354, %v2432
  %v2434 = vpop.f32.mrf.mxu0
  %v2435 = vpop.f32.mrf.mxu0
  %v2436 = vadd.f32 %v2354, %v2435
  %v2437 = vpop.f32.mrf.mxu0
  %2438 = vdwg.mxu0
  %v2439 = vtanh.pop %v2417
  %v2440 = vtanh.pop %v2420
  %v2441 = vtanh.pop %v2425
  %v2442 = vtanh.pop %v2428
  %v2443 = vtanh.pop %v2433
  %v2444 = vtanh.pop %v2436
  %v2445 = vpack.c.bf16 %v2440, %v2439
  %v2446 = vpack.c.bf16 %v2442, %v2441
  %v2447 = vpack.c.bf16 %v2444, %v2443
  %v2452 = vunpack.c.l.b16 %v37
  %v2453 = vunpack.c.l.b16 %v38
  %v2454 = vunpack.c.l.b16 %v39
  %v2455 = vunpack.c.l.b16 %v40
  %v2456 = vpack.c.b16 %v2452, %v2362
  %v2457 = vpack.c.b16 %v2454, %v2453
  %v2458 = vpack.c.b16 %v2455, %v2455
  %vm2459 = vsmask.f32 6400
  %v2461 = vshrl.u32 %v2456, 16
  %v2463 = vrot.slane %v2461, 1
  %v2464 = vshll.u32 %v2456, 16
  %v2466 = vrot.slane %v2464, 2
  %v2467 = vor.u32 %v2463, %v2466
  %v2469 = vshrl.u32 %v2457, 16
  %v2471 = vrot.slane %v2469, 1
  %v2472 = vshll.u32 %v2457, 16
  %v2474 = vrot.slane %v2472, 2
  %v2475 = vor.u32 %v2471, %v2474
  %v2476 = vsel %vm2459, %v2467, %v2475
  %v2478 = vshrl.u32 %v2458, 16
  %v2480 = vrot.slane %v2478, 1
  %v2481 = vshll.u32 %v2458, 16
  %v2483 = vrot.slane %v2481, 2
  %v2484 = vor.u32 %v2480, %v2483
  %v2485 = vsel %vm2459, %v2475, %v2484
  %v2489 = vsel %vm180, %v2445, 0
  %v2492 = vsel %vm180, %v2446, 0
  %v2495 = vsel %vm180, %v2447, 0
  %2497 = vmatprep.subr.bf16.mxu0 0
  %2498 = vmatpush1.bf16.msra.mxu0 0
  %2499 = vmatprep.subr.bf16.mxu0 0
  %2500 = vmatpush1.bf16.msra.mxu0 0
  %2501 = vmatprep.subr.bf16.mxu0 0
  %2502 = vmatpush1.bf16.msra.mxu0 0
  %2503 = vmatprep.subr.bf16.mxu0 0
  %2504 = vmatpush1.bf16.msra.mxu0 0
  %2505 = vmatprep.subr.bf16.mxu0 0
  %2506 = vmatpush1.bf16.msra.mxu0 0
  %2507 = vmatprep.subr.bf16.mxu0 0
  %2508 = vmatpush1.bf16.msra.mxu0 0
  %2509 = vmatprep.subr.bf16.mxu0 0
  %2510 = vmatpush1.bf16.msra.mxu0 %v2485
  %2511 = vmatprep.subr.bf16.mxu0 0
  %2512 = vmatpush1.bf16.msra.mxu0 %v2476
  %2513 = vmatprep.subr.bf16.mxu0 0
  %2514 = vmatpush2.bf16.msra.mxu0 0
  %2515 = vmatprep.subr.bf16.mxu0 0
  %2516 = vmatpush2.bf16.msra.mxu0 0
  %2517 = vmatprep.subr.bf16.mxu0 0
  %2518 = vmatpush2.bf16.msra.mxu0 0
  %2519 = vmatprep.subr.bf16.mxu0 0
  %2520 = vmatpush2.bf16.msra.mxu0 0
  %2521 = vmatprep.subr.bf16.mxu0 0
  %2522 = vmatpush2.bf16.msra.mxu0 0
  %2523 = vmatprep.subr.bf16.mxu0 0
  %2524 = vmatpush2.bf16.msra.mxu0 0
  %2525 = vmatprep.subr.bf16.mxu0 0
  %2526 = vmatpush2.bf16.msra.mxu0 0
  %2527 = vmatprep.subr.bf16.mxu0 0
  %2528 = vmatpush2.bf16.msra.mxu0 0
  %2529 = vmatprep.mubr.bf16.mxu0 0
  %2530 = vmatmul.mubr.bf16.gmra.mxu0 %v2489
  %v2531 = vpop.f32.mrf.mxu0
  %v2532 = vadd.f32 0.0, %v2531
  %v2533 = vpop.f32.mrf.mxu0
  %v2534 = vpop.f32.mrf.mxu0
  %v2535 = vadd.f32 0.0, %v2534
  %v2536 = vpop.f32.mrf.mxu0
  %2537 = vmatprep.mubr.bf16.mxu0 0
  %2538 = vmatmul.mubr.bf16.gmra.mxu0 %v2492
  %v2539 = vpop.f32.mrf.mxu0
  %v2540 = vadd.f32 0.0, %v2539
  %v2541 = vpop.f32.mrf.mxu0
  %v2542 = vpop.f32.mrf.mxu0
  %v2543 = vadd.f32 0.0, %v2542
  %v2544 = vpop.f32.mrf.mxu0
  %2545 = vmatprep.mubr.bf16.mxu0 0
  %2546 = vmatmul.mubr.bf16.gmra.mxu0 %v2495
  %v2547 = vpop.f32.mrf.mxu0
  %v2548 = vadd.f32 0.0, %v2547
  %v2549 = vpop.f32.mrf.mxu0
  %v2550 = vpop.f32.mrf.mxu0
  %v2551 = vadd.f32 0.0, %v2550
  %v2552 = vpop.f32.mrf.mxu0
  %2553 = vdwg.mxu0
  %v2554 = vsel %vm180, %v2532, 0.0
  %v2555 = vsel %vm180, %v2535, 0.0
  %v2556 = vadd.f32 %v2554, %v2555
  %v2557 = vrot.slane %v2556, 4
  %v2558 = vadd.f32 %v2556, %v2557
  %v2559 = vrot.slane %v2558, 2
  %v2560 = vadd.f32 %v2558, %v2559
  %v2561 = vrot.slane %v2560, 1
  %v2562 = vadd.f32 %v2560, %v2561
  %v2563 = vrcp.pop 16.0
  %v2564 = vmul.f32 %v2562, %v2563
  %v2565 = vsel %vm180, %v2540, 0.0
  %v2566 = vsel %vm180, %v2543, 0.0
  %v2567 = vadd.f32 %v2565, %v2566
  %v2568 = vrot.slane %v2567, 4
  %v2569 = vadd.f32 %v2567, %v2568
  %v2570 = vrot.slane %v2569, 2
  %v2571 = vadd.f32 %v2569, %v2570
  %v2572 = vrot.slane %v2571, 1
  %v2573 = vadd.f32 %v2571, %v2572
  %v2574 = vmul.f32 %v2573, %v2563
  %v2575 = vsel %vm180, %v2548, 0.0
  %v2576 = vsel %vm180, %v2551, 0.0
  %v2577 = vadd.f32 %v2575, %v2576
  %v2578 = vrot.slane %v2577, 4
  %v2579 = vadd.f32 %v2577, %v2578
  %v2580 = vrot.slane %v2579, 2
  %v2581 = vadd.f32 %v2579, %v2580
  %v2582 = vrot.slane %v2581, 1
  %v2583 = vadd.f32 %v2581, %v2582
  %v2584 = vmul.f32 %v2583, %v2563
  %v2585 = vmax.f32 %v2564, %v2574
  %v2586 = vmax.f32 %v2585, %v2584
  %v2587 = vsub.f32 %v2564, %v2586
  %v2588 = vmul.f32 %v2587, 1.442695
  %v2589 = vpow.pop %v2588
  %v2590 = vsub.f32 %v2574, %v2586
  %v2591 = vmul.f32 %v2590, 1.442695
  %v2592 = vpow.pop %v2591
  %v2593 = vsub.f32 %v2584, %v2586
  %v2594 = vmul.f32 %v2593, 1.442695
  %v2595 = vpow.pop %v2594
  %v2596 = vadd.f32 %v2589, %v2592
  %v2597 = vadd.f32 %v2596, %v2595
  %v2598 = vrcp.pop %v2597
  %v2599 = vmul.f32 %v2589, %v2598
  %vm2600 = vcmask 15360
  %v2601 = vsel %vm2600, %v2599, 0.0
  %2602 = vadd.xlane.f32.xlu0 %v2601
  %v2603 = vpop.xlane.xlu0 %2602
  %v2604 = vmul.f32 %v2341, %v2603
  %v2605 = vmul.f32 %v2342, %v2603
  %v2606 = vadd.f32 %v2604, 0.0
  %v2607 = vadd.f32 %v2605, 0.0
  %v2608 = vmul.f32 %v2592, %v2598
  %v2609 = vsel %vm2600, %v2608, 0.0
  %2610 = vadd.xlane.f32.xlu0 %v2609
  %v2611 = vpop.xlane.xlu0 %2610
  %v2612 = vmul.f32 %v2343, %v2611
  %v2613 = vmul.f32 %v2344, %v2611
  %v2614 = vadd.f32 %v2606, %v2612
  %v2615 = vadd.f32 %v2607, %v2613
  %v2616 = vmul.f32 %v2595, %v2598
  %v2617 = vsel %vm2600, %v2616, 0.0
  %2618 = vadd.xlane.f32.xlu0 %v2617
  %v2619 = vpop.xlane.xlu0 %2618
  %v2620 = vmul.f32 %v2345, %v2619
  %v2621 = vmul.f32 %v2346, %v2619
  %v2622 = vadd.f32 %v2614, %v2620
  %v2623 = vadd.f32 %v2615, %v2621
  %v2624 = vmul.f32 %v2622, 0.5
  %v2625 = vmul.f32 %v2623, 0.5
  %vm2626 = vcmp.ge.f32.partialorder %v2624, 0.0
  %vm2627 = vcmp.ge.f32.partialorder %v2625, 0.0
  %v2628 = vmul.f32 %v2624, 0.01
  %v2629 = vmul.f32 %v2625, 0.01
  %v2630 = vsel %vm2626, %v2624, %v2628
  %v2631 = vsel %vm2627, %v2625, %v2629
  %v2632 = vld [vmem:[%s3 + $0xa0] sm:$0xff]
  %v2633 = vld [vmem:[%s3 + $0xa8] sm:$0xff]
  %v2634 = vld [vmem:[%s3 + $0xb0] sm:$0xff]
  %v2635 = vld [vmem:[%s3 + $0xb8] sm:$0xff]
  %v2636 = vld [vmem:[%s3 + $0xc0] sm:$0xff]
  %v2637 = vld [vmem:[%s3 + $0xc8] sm:$0xff]
  %v2638 = vld [vmem:[%s3 + $0xd0] sm:$0xff]
  %v2639 = vld [vmem:[%s3 + $0xd8] sm:$0xff]
  %v2640 = vld [vmem:[%s3 + $0xe0] sm:$0xff]
  %v2641 = vld [vmem:[%s3 + $0xe8] sm:$0xff]
  %v2642 = vld [vmem:[%s3 + $0xf0] sm:$0xff]
  %v2643 = vld [vmem:[%s3 + $0xf8] sm:$0xff]
  %v2644 = vld [vmem:[%s3 + $0x100] sm:$0xff]
  %v2645 = vld [vmem:[%s3 + $0x108] sm:$0xff]
  %v2646 = vld [vmem:[%s3 + $0x110] sm:$0xff]
  %v2647 = vld [vmem:[%s3 + $0x118] sm:$0xff]
  %v2648 = vld [vmem:[%s3 + $0x120] sm:$0xff]
  %v2649 = vld [vmem:[%s3 + $0x128] sm:$0xff]
  %v2650 = vld [vmem:[%s3 + $0x130] sm:$0xff]
  %v2651 = vld [vmem:[%s3 + $0x138] sm:$0xff]
  %v2652 = vld [vmem:[%s3 + $0x140] sm:$0x11]
  %v2653 = vld [vmem:[%s3 + $0x148] sm:$0x11]
  %v2654 = vld [vmem:[%s3 + $0x150] sm:$0x11]
  %v2655 = vld [vmem:[%s3 + $0x158] sm:$0x11]
  %v2656 = vld [vmem:[%s3 + $0x160] sm:$0x11]
  %v2657 = vpack.c.bf16 %v2631, %v2630
  %v2658 = vunpack.c.l.bf16 %v2652
  %v2659 = vunpack.c.h.bf16 %v2652
  %v2660 = vunpack.c.l.bf16 %v2653
  %v2661 = vunpack.c.h.bf16 %v2653
  %v2662 = vunpack.c.l.bf16 %v2654
  %v2663 = vunpack.c.h.bf16 %v2654
  %v2664 = vunpack.c.l.bf16 %v2655
  %v2665 = vunpack.c.h.bf16 %v2655
  %v2666 = vunpack.c.l.bf16 %v2656
  %v2667 = vunpack.c.h.bf16 %v2656
  %v2668 = vlaneseq
  %v2669 = vshrl.u32 %v2668, 7
  %v2670 = vsub.s32 1, %v2669
  %v2671 = vrot.slane %v2658, %v2670
  %v2672 = vlaneseq
  %v2673 = vshrl.u32 %v2672, 7
  %v2674 = vsub.s32 1, %v2673
  %v2675 = vrot.slane %v2659, %v2674
  %v2676 = vlaneseq
  %v2677 = vshrl.u32 %v2676, 7
  %v2678 = vsub.s32 1, %v2677
  %v2679 = vrot.slane %v2660, %v2678
  %v2680 = vlaneseq
  %v2681 = vshrl.u32 %v2680, 7
  %v2682 = vsub.s32 1, %v2681
  %v2683 = vrot.slane %v2661, %v2682
  %v2684 = vlaneseq
  %v2685 = vshrl.u32 %v2684, 7
  %v2686 = vsub.s32 1, %v2685
  %v2687 = vrot.slane %v2662, %v2686
  %v2688 = vlaneseq
  %v2689 = vshrl.u32 %v2688, 7
  %v2690 = vsub.s32 1, %v2689
  %v2691 = vrot.slane %v2663, %v2690
  %v2692 = vlaneseq
  %v2693 = vshrl.u32 %v2692, 7
  %v2694 = vsub.s32 1, %v2693
  %v2695 = vrot.slane %v2664, %v2694
  %v2696 = vlaneseq
  %v2697 = vshrl.u32 %v2696, 7
  %v2698 = vsub.s32 1, %v2697
  %v2699 = vrot.slane %v2665, %v2698
  %v2700 = vlaneseq
  %v2701 = vshrl.u32 %v2700, 7
  %v2702 = vsub.s32 1, %v2701
  %v2703 = vrot.slane %v2666, %v2702
  %v2704 = vlaneseq
  %v2705 = vshrl.u32 %v2704, 7
  %v2706 = vsub.s32 1, %v2705
  %v2707 = vrot.slane %v2667, %v2706
  %v2733 = vunpack.c.l.b16 %v2632
  %v2734 = vunpack.c.h.b16 %v2632
  %v2735 = vunpack.c.l.b16 %v2633
  %v2736 = vunpack.c.h.b16 %v2633
  %v2737 = vunpack.c.l.b16 %v2634
  %v2738 = vunpack.c.h.b16 %v2634
  %v2739 = vunpack.c.l.b16 %v2635
  %v2740 = vunpack.c.h.b16 %v2635
  %v2741 = vunpack.c.l.b16 %v2636
  %v2742 = vunpack.c.h.b16 %v2636
  %v2743 = vunpack.c.l.b16 %v2637
  %v2744 = vunpack.c.h.b16 %v2637
  %v2745 = vunpack.c.l.b16 %v2638
  %v2746 = vunpack.c.h.b16 %v2638
  %v2747 = vunpack.c.l.b16 %v2639
  %v2748 = vunpack.c.h.b16 %v2639
  %v2749 = vunpack.c.l.b16 %v2640
  %v2750 = vunpack.c.h.b16 %v2640
  %v2751 = vunpack.c.l.b16 %v2641
  %v2752 = vunpack.c.h.b16 %v2641
  %v2753 = vunpack.c.l.b16 %v2642
  %v2754 = vunpack.c.h.b16 %v2642
  %v2755 = vunpack.c.l.b16 %v2643
  %v2756 = vunpack.c.h.b16 %v2643
  %v2757 = vunpack.c.l.b16 %v2644
  %v2758 = vunpack.c.h.b16 %v2644
  %v2759 = vunpack.c.l.b16 %v2645
  %v2760 = vunpack.c.h.b16 %v2645
  %v2761 = vunpack.c.l.b16 %v2646
  %v2762 = vunpack.c.h.b16 %v2646
  %v2763 = vunpack.c.l.b16 %v2647
  %v2764 = vunpack.c.h.b16 %v2647
  %v2765 = vunpack.c.l.b16 %v2648
  %v2766 = vunpack.c.h.b16 %v2648
  %v2767 = vunpack.c.l.b16 %v2649
  %v2768 = vunpack.c.h.b16 %v2649
  %v2769 = vunpack.c.l.b16 %v2650
  %v2770 = vunpack.c.h.b16 %v2650
  %v2771 = vunpack.c.l.b16 %v2651
  %v2772 = vunpack.c.h.b16 %v2651
  %v2773 = vunpack.c.l.b16 %v2652
  %v2774 = vunpack.c.h.b16 %v2652
  %v2775 = vunpack.c.l.b16 %v2653
  %v2776 = vunpack.c.h.b16 %v2653
  %v2777 = vunpack.c.l.b16 %v2654
  %v2778 = vunpack.c.h.b16 %v2654
  %v2779 = vunpack.c.l.b16 %v2655
  %v2780 = vunpack.c.h.b16 %v2655
  %v2781 = vunpack.c.l.b16 %v2656
  %v2782 = vunpack.c.h.b16 %v2656
  %v2783 = vpack.c.b16 %v2743, %v2733
  %v2784 = vpack.c.b16 %v2744, %v2734
  %v2785 = vpack.c.b16 %v2745, %v2735
  %v2786 = vpack.c.b16 %v2746, %v2736
  %v2787 = vpack.c.b16 %v2747, %v2737
  %v2788 = vpack.c.b16 %v2748, %v2738
  %v2789 = vpack.c.b16 %v2749, %v2739
  %v2790 = vpack.c.b16 %v2750, %v2740
  %v2791 = vpack.c.b16 %v2751, %v2741
  %v2792 = vpack.c.b16 %v2752, %v2742
  %v2793 = vpack.c.b16 %v2763, %v2753
  %v2794 = vpack.c.b16 %v2764, %v2754
  %v2795 = vpack.c.b16 %v2765, %v2755
  %v2796 = vpack.c.b16 %v2766, %v2756
  %v2797 = vpack.c.b16 %v2767, %v2757
  %v2798 = vpack.c.b16 %v2768, %v2758
  %v2799 = vpack.c.b16 %v2769, %v2759
  %v2800 = vpack.c.b16 %v2770, %v2760
  %v2801 = vpack.c.b16 %v2771, %v2761
  %v2802 = vpack.c.b16 %v2772, %v2762
  %v2803 = vpack.c.b16 %v2773, %v2773
  %v2804 = vpack.c.b16 %v2774, %v2774
  %v2805 = vpack.c.b16 %v2775, %v2775
  %v2806 = vpack.c.b16 %v2776, %v2776
  %v2807 = vpack.c.b16 %v2777, %v2777
  %v2808 = vpack.c.b16 %v2778, %v2778
  %v2809 = vpack.c.b16 %v2779, %v2779
  %v2810 = vpack.c.b16 %v2780, %v2780
  %v2811 = vpack.c.b16 %v2781, %v2781
  %v2812 = vpack.c.b16 %v2782, %v2782
  %v2814 = vshrl.u32 %v2783, 16
  %v2816 = vshll.u32 %v2783, 16
  %v2818 = vrot.slane %v2816, 1
  %v2819 = vor.u32 %v2814, %v2818
  %v2821 = vshll.u32 %v2793, 16
  %v2823 = vrot.slane %v2821, 1
  %v2824 = vsel %vm157, %v2819, %v2823
  %v2826 = vshrl.u32 %v2784, 16
  %v2828 = vshll.u32 %v2784, 16
  %v2830 = vrot.slane %v2828, 1
  %v2831 = vor.u32 %v2826, %v2830
  %v2833 = vshll.u32 %v2794, 16
  %v2835 = vrot.slane %v2833, 1
  %v2836 = vsel %vm157, %v2831, %v2835
  %v2838 = vshrl.u32 %v2785, 16
  %v2840 = vshll.u32 %v2785, 16
  %v2842 = vrot.slane %v2840, 1
  %v2843 = vor.u32 %v2838, %v2842
  %v2845 = vshll.u32 %v2795, 16
  %v2847 = vrot.slane %v2845, 1
  %v2848 = vsel %vm157, %v2843, %v2847
  %v2850 = vshrl.u32 %v2786, 16
  %v2852 = vshll.u32 %v2786, 16
  %v2854 = vrot.slane %v2852, 1
  %v2855 = vor.u32 %v2850, %v2854
  %v2857 = vshll.u32 %v2796, 16
  %v2859 = vrot.slane %v2857, 1
  %v2860 = vsel %vm157, %v2855, %v2859
  %v2862 = vshrl.u32 %v2787, 16
  %v2864 = vshll.u32 %v2787, 16
  %v2866 = vrot.slane %v2864, 1
  %v2867 = vor.u32 %v2862, %v2866
  %v2869 = vshll.u32 %v2797, 16
  %v2871 = vrot.slane %v2869, 1
  %v2872 = vsel %vm157, %v2867, %v2871
  %v2874 = vshrl.u32 %v2788, 16
  %v2876 = vshll.u32 %v2788, 16
  %v2878 = vrot.slane %v2876, 1
  %v2879 = vor.u32 %v2874, %v2878
  %v2881 = vshll.u32 %v2798, 16
  %v2883 = vrot.slane %v2881, 1
  %v2884 = vsel %vm157, %v2879, %v2883
  %v2886 = vshrl.u32 %v2789, 16
  %v2888 = vshll.u32 %v2789, 16
  %v2890 = vrot.slane %v2888, 1
  %v2891 = vor.u32 %v2886, %v2890
  %v2893 = vshll.u32 %v2799, 16
  %v2895 = vrot.slane %v2893, 1
  %v2896 = vsel %vm157, %v2891, %v2895
  %v2898 = vshrl.u32 %v2790, 16
  %v2900 = vshll.u32 %v2790, 16
  %v2902 = vrot.slane %v2900, 1
  %v2903 = vor.u32 %v2898, %v2902
  %v2905 = vshll.u32 %v2800, 16
  %v2907 = vrot.slane %v2905, 1
  %v2908 = vsel %vm157, %v2903, %v2907
  %v2910 = vshrl.u32 %v2791, 16
  %v2912 = vshll.u32 %v2791, 16
  %v2914 = vrot.slane %v2912, 1
  %v2915 = vor.u32 %v2910, %v2914
  %v2917 = vshll.u32 %v2801, 16
  %v2919 = vrot.slane %v2917, 1
  %v2920 = vsel %vm157, %v2915, %v2919
  %v2922 = vshrl.u32 %v2792, 16
  %v2924 = vshll.u32 %v2792, 16
  %v2926 = vrot.slane %v2924, 1
  %v2927 = vor.u32 %v2922, %v2926
  %v2929 = vshll.u32 %v2802, 16
  %v2931 = vrot.slane %v2929, 1
  %v2932 = vsel %vm157, %v2927, %v2931
  %v2933 = vshrl.u32 %v2793, 16
  %v2935 = vor.u32 %v2933, %v2823
  %v2937 = vshll.u32 %v2803, 16
  %v2939 = vrot.slane %v2937, 1
  %v2940 = vsel %vm157, %v2935, %v2939
  %v2941 = vshrl.u32 %v2794, 16
  %v2943 = vor.u32 %v2941, %v2835
  %v2945 = vshll.u32 %v2804, 16
  %v2947 = vrot.slane %v2945, 1
  %v2948 = vsel %vm157, %v2943, %v2947
  %v2949 = vshrl.u32 %v2795, 16
  %v2951 = vor.u32 %v2949, %v2847
  %v2953 = vshll.u32 %v2805, 16
  %v2955 = vrot.slane %v2953, 1
  %v2956 = vsel %vm157, %v2951, %v2955
  %v2957 = vshrl.u32 %v2796, 16
  %v2959 = vor.u32 %v2957, %v2859
  %v2961 = vshll.u32 %v2806, 16
  %v2963 = vrot.slane %v2961, 1
  %v2964 = vsel %vm157, %v2959, %v2963
  %v2965 = vshrl.u32 %v2797, 16
  %v2967 = vor.u32 %v2965, %v2871
  %v2969 = vshll.u32 %v2807, 16
  %v2971 = vrot.slane %v2969, 1
  %v2972 = vsel %vm157, %v2967, %v2971
  %v2973 = vshrl.u32 %v2798, 16
  %v2975 = vor.u32 %v2973, %v2883
  %v2977 = vshll.u32 %v2808, 16
  %v2979 = vrot.slane %v2977, 1
  %v2980 = vsel %vm157, %v2975, %v2979
  %v2981 = vshrl.u32 %v2799, 16
  %v2983 = vor.u32 %v2981, %v2895
  %v2985 = vshll.u32 %v2809, 16
  %v2987 = vrot.slane %v2985, 1
  %v2988 = vsel %vm157, %v2983, %v2987
  %v2989 = vshrl.u32 %v2800, 16
  %v2991 = vor.u32 %v2989, %v2907
  %v2993 = vshll.u32 %v2810, 16
  %v2995 = vrot.slane %v2993, 1
  %v2996 = vsel %vm157, %v2991, %v2995
  %v2997 = vshrl.u32 %v2801, 16
  %v2999 = vor.u32 %v2997, %v2919
  %v3001 = vshll.u32 %v2811, 16
  %v3003 = vrot.slane %v3001, 1
  %v3004 = vsel %vm157, %v2999, %v3003
  %v3005 = vshrl.u32 %v2802, 16
  %v3007 = vor.u32 %v3005, %v2931
  %v3009 = vshll.u32 %v2812, 16
  %v3011 = vrot.slane %v3009, 1
  %v3012 = vsel %vm157, %v3007, %v3011
  %v3034 = vsel %vm180, %v2657, 0
  %3036 = vmatprep.subr.bf16.mxu0 0
  %3037 = vmatpush1.bf16.msra.mxu0 0
  %3038 = vmatprep.subr.bf16.mxu0 0
  %3039 = vmatpush1.bf16.msra.mxu0 0
  %3040 = vmatprep.subr.bf16.mxu0 0
  %3041 = vmatpush1.bf16.msra.mxu0 0
  %3042 = vmatprep.subr.bf16.mxu0 0
  %3043 = vmatpush1.bf16.msra.mxu0 0
  %3044 = vmatprep.subr.bf16.mxu0 0
  %3045 = vmatpush1.bf16.msra.mxu0 0
  %3046 = vmatprep.subr.bf16.mxu0 0
  %3047 = vmatpush1.bf16.msra.mxu0 0
  %3048 = vmatprep.subr.bf16.mxu0 %v2948
  %3049 = vmatpush1.bf16.msra.mxu0 %v2940
  %3050 = vmatprep.subr.bf16.mxu0 %v2836
  %3051 = vmatpush1.bf16.msra.mxu0 %v2824
  %3052 = vmatprep.subr.bf16.mxu0 0
  %3053 = vmatpush2.bf16.msra.mxu0 0
  %3054 = vmatprep.subr.bf16.mxu0 0
  %3055 = vmatpush2.bf16.msra.mxu0 0
  %3056 = vmatprep.subr.bf16.mxu0 0
  %3057 = vmatpush2.bf16.msra.mxu0 0
  %3058 = vmatprep.subr.bf16.mxu0 0
  %3059 = vmatpush2.bf16.msra.mxu0 0
  %3060 = vmatprep.subr.bf16.mxu0 0
  %3061 = vmatpush2.bf16.msra.mxu0 0
  %3062 = vmatprep.subr.bf16.mxu0 0
  %3063 = vmatpush2.bf16.msra.mxu0 0
  %3064 = vmatprep.subr.bf16.mxu0 0
  %3065 = vmatpush2.bf16.msra.mxu0 0
  %3066 = vmatprep.subr.bf16.mxu0 0
  %3067 = vmatpush2.bf16.msra.mxu0 0
  %3068 = vmatprep.mubr.bf16.mxu0 0
  %3069 = vmatmul.mubr.bf16.gmra.mxu0 %v3034
  %v3070 = vpop.f32.mrf.mxu0
  %v3071 = vadd.f32 %v2671, %v3070
  %v3072 = vpop.f32.mrf.mxu0
  %v3073 = vadd.f32 %v2675, %v3072
  %v3074 = vpop.f32.mrf.mxu0
  %v3075 = vadd.f32 %v2671, %v3074
  %v3076 = vpop.f32.mrf.mxu0
  %v3077 = vadd.f32 %v2675, %v3076
  %3078 = vdwg.mxu0
  %3079 = vmatprep.subr.bf16.mxu0 0
  %3080 = vmatpush1.bf16.msra.mxu0 0
  %3081 = vmatprep.subr.bf16.mxu0 0
  %3082 = vmatpush1.bf16.msra.mxu0 0
  %3083 = vmatprep.subr.bf16.mxu0 0
  %3084 = vmatpush1.bf16.msra.mxu0 0
  %3085 = vmatprep.subr.bf16.mxu0 0
  %3086 = vmatpush1.bf16.msra.mxu0 0
  %3087 = vmatprep.subr.bf16.mxu0 0
  %3088 = vmatpush1.bf16.msra.mxu0 0
  %3089 = vmatprep.subr.bf16.mxu0 0
  %3090 = vmatpush1.bf16.msra.mxu0 0
  %3091 = vmatprep.subr.bf16.mxu0 %v2964
  %3092 = vmatpush1.bf16.msra.mxu0 %v2956
  %3093 = vmatprep.subr.bf16.mxu0 %v2860
  %3094 = vmatpush1.bf16.msra.mxu0 %v2848
  %3095 = vmatprep.subr.bf16.mxu0 0
  %3096 = vmatpush2.bf16.msra.mxu0 0
  %3097 = vmatprep.subr.bf16.mxu0 0
  %3098 = vmatpush2.bf16.msra.mxu0 0
  %3099 = vmatprep.subr.bf16.mxu0 0
  %3100 = vmatpush2.bf16.msra.mxu0 0
  %3101 = vmatprep.subr.bf16.mxu0 0
  %3102 = vmatpush2.bf16.msra.mxu0 0
  %3103 = vmatprep.subr.bf16.mxu0 0
  %3104 = vmatpush2.bf16.msra.mxu0 0
  %3105 = vmatprep.subr.bf16.mxu0 0
  %3106 = vmatpush2.bf16.msra.mxu0 0
  %3107 = vmatprep.subr.bf16.mxu0 0
  %3108 = vmatpush2.bf16.msra.mxu0 0
  %3109 = vmatprep.subr.bf16.mxu0 0
  %3110 = vmatpush2.bf16.msra.mxu0 0
  %3111 = vmatprep.mubr.bf16.mxu0 0
  %3112 = vmatmul.mubr.bf16.gmra.mxu0 %v3034
  %v3113 = vpop.f32.mrf.mxu0
  %v3114 = vadd.f32 %v2679, %v3113
  %v3115 = vpop.f32.mrf.mxu0
  %v3116 = vadd.f32 %v2683, %v3115
  %v3117 = vpop.f32.mrf.mxu0
  %v3118 = vadd.f32 %v2679, %v3117
  %v3119 = vpop.f32.mrf.mxu0
  %v3120 = vadd.f32 %v2683, %v3119
  %3121 = vdwg.mxu0
  %3122 = vmatprep.subr.bf16.mxu0 0
  %3123 = vmatpush1.bf16.msra.mxu0 0
  %3124 = vmatprep.subr.bf16.mxu0 0
  %3125 = vmatpush1.bf16.msra.mxu0 0
  %3126 = vmatprep.subr.bf16.mxu0 0
  %3127 = vmatpush1.bf16.msra.mxu0 0
  %3128 = vmatprep.subr.bf16.mxu0 0
  %3129 = vmatpush1.bf16.msra.mxu0 0
  %3130 = vmatprep.subr.bf16.mxu0 0
  %3131 = vmatpush1.bf16.msra.mxu0 0
  %3132 = vmatprep.subr.bf16.mxu0 0
  %3133 = vmatpush1.bf16.msra.mxu0 0
  %3134 = vmatprep.subr.bf16.mxu0 %v2980
  %3135 = vmatpush1.bf16.msra.mxu0 %v2972
  %3136 = vmatprep.subr.bf16.mxu0 %v2884
  %3137 = vmatpush1.bf16.msra.mxu0 %v2872
  %3138 = vmatprep.subr.bf16.mxu0 0
  %3139 = vmatpush2.bf16.msra.mxu0 0
  %3140 = vmatprep.subr.bf16.mxu0 0
  %3141 = vmatpush2.bf16.msra.mxu0 0
  %3142 = vmatprep.subr.bf16.mxu0 0
  %3143 = vmatpush2.bf16.msra.mxu0 0
  %3144 = vmatprep.subr.bf16.mxu0 0
  %3145 = vmatpush2.bf16.msra.mxu0 0
  %3146 = vmatprep.subr.bf16.mxu0 0
  %3147 = vmatpush2.bf16.msra.mxu0 0
  %3148 = vmatprep.subr.bf16.mxu0 0
  %3149 = vmatpush2.bf16.msra.mxu0 0
  %3150 = vmatprep.subr.bf16.mxu0 0
  %3151 = vmatpush2.bf16.msra.mxu0 0
  %3152 = vmatprep.subr.bf16.mxu0 0
  %3153 = vmatpush2.bf16.msra.mxu0 0
  %3154 = vmatprep.mubr.bf16.mxu0 0
  %3155 = vmatmul.mubr.bf16.gmra.mxu0 %v3034
  %v3156 = vpop.f32.mrf.mxu0
  %v3157 = vadd.f32 %v2687, %v3156
  %v3158 = vpop.f32.mrf.mxu0
  %v3159 = vadd.f32 %v2691, %v3158
  %v3160 = vpop.f32.mrf.mxu0
  %v3161 = vadd.f32 %v2687, %v3160
  %v3162 = vpop.f32.mrf.mxu0
  %v3163 = vadd.f32 %v2691, %v3162
  %3164 = vdwg.mxu0
  %3165 = vmatprep.subr.bf16.mxu0 0
  %3166 = vmatpush1.bf16.msra.mxu0 0
  %3167 = vmatprep.subr.bf16.mxu0 0
  %3168 = vmatpush1.bf16.msra.mxu0 0
  %3169 = vmatprep.subr.bf16.mxu0 0
  %3170 = vmatpush1.bf16.msra.mxu0 0
  %3171 = vmatprep.subr.bf16.mxu0 0
  %3172 = vmatpush1.bf16.msra.mxu0 0
  %3173 = vmatprep.subr.bf16.mxu0 0
  %3174 = vmatpush1.bf16.msra.mxu0 0
  %3175 = vmatprep.subr.bf16.mxu0 0
  %3176 = vmatpush1.bf16.msra.mxu0 0
  %3177 = vmatprep.subr.bf16.mxu0 %v2996
  %3178 = vmatpush1.bf16.msra.mxu0 %v2988
  %3179 = vmatprep.subr.bf16.mxu0 %v2908
  %3180 = vmatpush1.bf16.msra.mxu0 %v2896
  %3181 = vmatprep.subr.bf16.mxu0 0
  %3182 = vmatpush2.bf16.msra.mxu0 0
  %3183 = vmatprep.subr.bf16.mxu0 0
  %3184 = vmatpush2.bf16.msra.mxu0 0
  %3185 = vmatprep.subr.bf16.mxu0 0
  %3186 = vmatpush2.bf16.msra.mxu0 0
  %3187 = vmatprep.subr.bf16.mxu0 0
  %3188 = vmatpush2.bf16.msra.mxu0 0
  %3189 = vmatprep.subr.bf16.mxu0 0
  %3190 = vmatpush2.bf16.msra.mxu0 0
  %3191 = vmatprep.subr.bf16.mxu0 0
  %3192 = vmatpush2.bf16.msra.mxu0 0
  %3193 = vmatprep.subr.bf16.mxu0 0
  %3194 = vmatpush2.bf16.msra.mxu0 0
  %3195 = vmatprep.subr.bf16.mxu0 0
  %3196 = vmatpush2.bf16.msra.mxu0 0
  %3197 = vmatprep.mubr.bf16.mxu0 0
  %3198 = vmatmul.mubr.bf16.gmra.mxu0 %v3034
  %v3199 = vpop.f32.mrf.mxu0
  %v3200 = vadd.f32 %v2695, %v3199
  %v3201 = vpop.f32.mrf.mxu0
  %v3202 = vadd.f32 %v2699, %v3201
  %v3203 = vpop.f32.mrf.mxu0
  %v3204 = vadd.f32 %v2695, %v3203
  %v3205 = vpop.f32.mrf.mxu0
  %v3206 = vadd.f32 %v2699, %v3205
  %3207 = vdwg.mxu0
  %3208 = vmatprep.subr.bf16.mxu0 0
  %3209 = vmatpush1.bf16.msra.mxu0 0
  %3210 = vmatprep.subr.bf16.mxu0 0
  %3211 = vmatpush1.bf16.msra.mxu0 0
  %3212 = vmatprep.subr.bf16.mxu0 0
  %3213 = vmatpush1.bf16.msra.mxu0 0
  %3214 = vmatprep.subr.bf16.mxu0 0
  %3215 = vmatpush1.bf16.msra.mxu0 0
  %3216 = vmatprep.subr.bf16.mxu0 0
  %3217 = vmatpush1.bf16.msra.mxu0 0
  %3218 = vmatprep.subr.bf16.mxu0 0
  %3219 = vmatpush1.bf16.msra.mxu0 0
  %3220 = vmatprep.subr.bf16.mxu0 %v3012
  %3221 = vmatpush1.bf16.msra.mxu0 %v3004
  %3222 = vmatprep.subr.bf16.mxu0 %v2932
  %3223 = vmatpush1.bf16.msra.mxu0 %v2920
  %3224 = vmatprep.subr.bf16.mxu0 0
  %3225 = vmatpush2.bf16.msra.mxu0 0
  %3226 = vmatprep.subr.bf16.mxu0 0
  %3227 = vmatpush2.bf16.msra.mxu0 0
  %3228 = vmatprep.subr.bf16.mxu0 0
  %3229 = vmatpush2.bf16.msra.mxu0 0
  %3230 = vmatprep.subr.bf16.mxu0 0
  %3231 = vmatpush2.bf16.msra.mxu0 0
  %3232 = vmatprep.subr.bf16.mxu0 0
  %3233 = vmatpush2.bf16.msra.mxu0 0
  %3234 = vmatprep.subr.bf16.mxu0 0
  %3235 = vmatpush2.bf16.msra.mxu0 0
  %3236 = vmatprep.subr.bf16.mxu0 0
  %3237 = vmatpush2.bf16.msra.mxu0 0
  %3238 = vmatprep.subr.bf16.mxu0 0
  %3239 = vmatpush2.bf16.msra.mxu0 0
  %3240 = vmatprep.mubr.bf16.mxu0 0
  %3241 = vmatmul.mubr.bf16.gmra.mxu0 %v3034
  %v3242 = vpop.f32.mrf.mxu0
  %v3243 = vadd.f32 %v2703, %v3242
  %v3244 = vpop.f32.mrf.mxu0
  %v3245 = vadd.f32 %v2707, %v3244
  %v3246 = vpop.f32.mrf.mxu0
  %v3247 = vadd.f32 %v2703, %v3246
  %v3248 = vpop.f32.mrf.mxu0
  %v3249 = vadd.f32 %v2707, %v3248
  %3250 = vdwg.mxu0
  %v3251 = vpack.c.bf16 %v3075, %v3071
  %v3252 = vpack.c.bf16 %v3077, %v3073
  %v3253 = vpack.c.bf16 %v3118, %v3114
  %v3254 = vpack.c.bf16 %v3120, %v3116
  %v3255 = vpack.c.bf16 %v3161, %v3157
  %v3256 = vpack.c.bf16 %v3163, %v3159
  %v3257 = vpack.c.bf16 %v3204, %v3200
  %v3258 = vpack.c.bf16 %v3206, %v3202
  %v3259 = vpack.c.bf16 %v3247, %v3243
  %3261 = vrot.lane.b32.xlu0 %v3251, 96
  %v3262 = vpop.permute.xlu0 %3261
  %3263 = vrot.lane.b32.xlu0 %v3251, 64
  %v3264 = vpop.permute.xlu0 %3263
  %3265 = vrot.lane.b32.xlu0 %v3251, 32
  %v3266 = vpop.permute.xlu0 %3265
  %3268 = vrot.lane.b32.xlu0 %v3252, 96
  %v3269 = vpop.permute.xlu0 %3268
  %3270 = vrot.lane.b32.xlu0 %v3252, 64
  %v3271 = vpop.permute.xlu0 %3270
  %3272 = vrot.lane.b32.xlu0 %v3252, 32
  %v3273 = vpop.permute.xlu0 %3272
  %3275 = vrot.lane.b32.xlu0 %v3253, 96
  %v3276 = vpop.permute.xlu0 %3275
  %3277 = vrot.lane.b32.xlu0 %v3253, 64
  %v3278 = vpop.permute.xlu0 %3277
  %3279 = vrot.lane.b32.xlu0 %v3253, 32
  %v3280 = vpop.permute.xlu0 %3279
  %3282 = vrot.lane.b32.xlu0 %v3254, 96
  %v3283 = vpop.permute.xlu0 %3282
  %3284 = vrot.lane.b32.xlu0 %v3254, 64
  %v3285 = vpop.permute.xlu0 %3284
  %3286 = vrot.lane.b32.xlu0 %v3254, 32
  %v3287 = vpop.permute.xlu0 %3286
  %3289 = vrot.lane.b32.xlu0 %v3255, 96
  %v3290 = vpop.permute.xlu0 %3289
  %3291 = vrot.lane.b32.xlu0 %v3255, 64
  %v3292 = vpop.permute.xlu0 %3291
  %3293 = vrot.lane.b32.xlu0 %v3255, 32
  %v3294 = vpop.permute.xlu0 %3293
  %3296 = vrot.lane.b32.xlu0 %v3256, 96
  %v3297 = vpop.permute.xlu0 %3296
  %3298 = vrot.lane.b32.xlu0 %v3256, 64
  %v3299 = vpop.permute.xlu0 %3298
  %3300 = vrot.lane.b32.xlu0 %v3256, 32
  %v3301 = vpop.permute.xlu0 %3300
  %3303 = vrot.lane.b32.xlu0 %v3257, 96
  %v3304 = vpop.permute.xlu0 %3303
  %3306 = vrot.lane.b32.xlu0 %v3257, 64
  %v3307 = vpop.permute.xlu0 %3306
  %3309 = vrot.lane.b32.xlu0 %v3257, 32
  %v3310 = vpop.permute.xlu0 %3309
  %3313 = vrot.lane.b32.xlu0 %v3258, 96
  %v3314 = vpop.permute.xlu0 %3313
  %3316 = vrot.lane.b32.xlu0 %v3258, 64
  %v3317 = vpop.permute.xlu0 %3316
  %3319 = vrot.lane.b32.xlu0 %v3258, 32
  %v3320 = vpop.permute.xlu0 %3319
  %3323 = vrot.lane.b32.xlu0 %v3259, 96
  %v3324 = vpop.permute.xlu0 %3323
  %3326 = vrot.lane.b32.xlu0 %v3259, 64
  %v3327 = vpop.permute.xlu0 %3326
  %3329 = vrot.lane.b32.xlu0 %v3259, 32
  %v3330 = vpop.permute.xlu0 %3329
  %v3333 = vsel %vm180, %v3251, 0
  %v3336 = vsel %vm180, %v3254, 0
  %3338 = vmatprep.subr.bf16.mxu0 0
  %3339 = vmatpush1.bf16.xpose.msra.mxu0 0
  %3340 = vmatprep.subr.bf16.mxu0 0
  %3341 = vmatpush1.bf16.xpose.msra.mxu0 0
  %3342 = vmatprep.subr.bf16.mxu0 0
  %3343 = vmatpush1.bf16.xpose.msra.mxu0 0
  %3344 = vmatprep.subr.bf16.mxu0 0
  %3345 = vmatpush1.bf16.xpose.msra.mxu0 0
  %3346 = vmatprep.subr.bf16.mxu0 0
  %3347 = vmatpush1.bf16.xpose.msra.mxu0 0
  %3348 = vmatprep.subr.bf16.mxu0 0
  %3349 = vmatpush1.bf16.xpose.msra.mxu0 0
  %3350 = vmatprep.subr.bf16.mxu0 0
  %3351 = vmatpush1.bf16.xpose.msra.mxu0 0
  %3352 = vmatprep.subr.bf16.mxu0 0
  %3353 = vmatpush1.bf16.xpose.msra.mxu0 %v3336
  %3354 = vmatprep.subr.bf16.mxu0 0
  %3355 = vmatpush2.bf16.xpose.msra.mxu0 0
  %3356 = vmatprep.subr.bf16.mxu0 0
  %3357 = vmatpush2.bf16.xpose.msra.mxu0 0
  %3358 = vmatprep.subr.bf16.mxu0 0
  %3359 = vmatpush2.bf16.xpose.msra.mxu0 0
  %3360 = vmatprep.subr.bf16.mxu0 0
  %3361 = vmatpush2.bf16.xpose.msra.mxu0 0
  %3362 = vmatprep.subr.bf16.mxu0 0
  %3363 = vmatpush2.bf16.xpose.msra.mxu0 0
  %3364 = vmatprep.subr.bf16.mxu0 0
  %3365 = vmatpush2.bf16.xpose.msra.mxu0 0
  %3366 = vmatprep.subr.bf16.mxu0 0
  %3367 = vmatpush2.bf16.xpose.msra.mxu0 0
  %3368 = vmatprep.subr.bf16.mxu0 0
  %3369 = vmatpush2.bf16.xpose.msra.mxu0 0
  %3370 = vmatprep.mubr.bf16.mxu0 0
  %3371 = vmatmul.mubr.bf16.gmra.mxu0 %v3333
  %v3372 = vpop.f32.mrf.mxu0
  %v3373 = vadd.f32 %v241, %v3372
  %v3374 = vpop.f32.mrf.mxu0
  %v3375 = vpop.f32.mrf.mxu0
  %v3376 = vadd.f32 %v242, %v3375
  %v3377 = vpop.f32.mrf.mxu0
  %3378 = vdwg.mxu0
  %v3380 = vsel %vm180, %v3262, 0
  %v3383 = vsel %vm180, %v3283, 0
  %3385 = vmatprep.subr.bf16.mxu0 0
  %3386 = vmatpush1.bf16.xpose.msra.mxu0 0
  %3387 = vmatprep.subr.bf16.mxu0 0
  %3388 = vmatpush1.bf16.xpose.msra.mxu0 0
  %3389 = vmatprep.subr.bf16.mxu0 0
  %3390 = vmatpush1.bf16.xpose.msra.mxu0 0
  %3391 = vmatprep.subr.bf16.mxu0 0
  %3392 = vmatpush1.bf16.xpose.msra.mxu0 0
  %3393 = vmatprep.subr.bf16.mxu0 0
  %3394 = vmatpush1.bf16.xpose.msra.mxu0 0
  %3395 = vmatprep.subr.bf16.mxu0 0
  %3396 = vmatpush1.bf16.xpose.msra.mxu0 0
  %3397 = vmatprep.subr.bf16.mxu0 0
  %3398 = vmatpush1.bf16.xpose.msra.mxu0 0
  %3399 = vmatprep.subr.bf16.mxu0 0
  %3400 = vmatpush1.bf16.xpose.msra.mxu0 %v3383
  %3401 = vmatprep.subr.bf16.mxu0 0
  %3402 = vmatpush2.bf16.xpose.msra.mxu0 0
  %3403 = vmatprep.subr.bf16.mxu0 0
  %3404 = vmatpush2.bf16.xpose.msra.mxu0 0
  %3405 = vmatprep.subr.bf16.mxu0 0
  %3406 = vmatpush2.bf16.xpose.msra.mxu0 0
  %3407 = vmatprep.subr.bf16.mxu0 0
  %3408 = vmatpush2.bf16.xpose.msra.mxu0 0
  %3409 = vmatprep.subr.bf16.mxu0 0
  %3410 = vmatpush2.bf16.xpose.msra.mxu0 0
  %3411 = vmatprep.subr.bf16.mxu0 0
  %3412 = vmatpush2.bf16.xpose.msra.mxu0 0
  %3413 = vmatprep.subr.bf16.mxu0 0
  %3414 = vmatpush2.bf16.xpose.msra.mxu0 0
  %3415 = vmatprep.subr.bf16.mxu0 0
  %3416 = vmatpush2.bf16.xpose.msra.mxu0 0
  %3417 = vmatprep.mubr.bf16.mxu0 0
  %3418 = vmatmul.mubr.bf16.gmra.mxu0 %v3380
  %v3419 = vpop.f32.mrf.mxu0
  %v3420 = vadd.f32 %v241, %v3419
  %v3421 = vpop.f32.mrf.mxu0
  %v3422 = vpop.f32.mrf.mxu0
  %v3423 = vadd.f32 %v242, %v3422
  %v3424 = vpop.f32.mrf.mxu0
  %3425 = vdwg.mxu0
  %v3427 = vsel %vm180, %v3264, 0
  %v3430 = vsel %vm180, %v3285, 0
  %3432 = vmatprep.subr.bf16.mxu0 0
  %3433 = vmatpush1.bf16.xpose.msra.mxu0 0
  %3434 = vmatprep.subr.bf16.mxu0 0
  %3435 = vmatpush1.bf16.xpose.msra.mxu0 0
  %3436 = vmatprep.subr.bf16.mxu0 0
  %3437 = vmatpush1.bf16.xpose.msra.mxu0 0
  %3438 = vmatprep.subr.bf16.mxu0 0
  %3439 = vmatpush1.bf16.xpose.msra.mxu0 0
  %3440 = vmatprep.subr.bf16.mxu0 0
  %3441 = vmatpush1.bf16.xpose.msra.mxu0 0
  %3442 = vmatprep.subr.bf16.mxu0 0
  %3443 = vmatpush1.bf16.xpose.msra.mxu0 0
  %3444 = vmatprep.subr.bf16.mxu0 0
  %3445 = vmatpush1.bf16.xpose.msra.mxu0 0
  %3446 = vmatprep.subr.bf16.mxu0 0
  %3447 = vmatpush1.bf16.xpose.msra.mxu0 %v3430
  %3448 = vmatprep.subr.bf16.mxu0 0
  %3449 = vmatpush2.bf16.xpose.msra.mxu0 0
  %3450 = vmatprep.subr.bf16.mxu0 0
  %3451 = vmatpush2.bf16.xpose.msra.mxu0 0
  %3452 = vmatprep.subr.bf16.mxu0 0
  %3453 = vmatpush2.bf16.xpose.msra.mxu0 0
  %3454 = vmatprep.subr.bf16.mxu0 0
  %3455 = vmatpush2.bf16.xpose.msra.mxu0 0
  %3456 = vmatprep.subr.bf16.mxu0 0
  %3457 = vmatpush2.bf16.xpose.msra.mxu0 0
  %3458 = vmatprep.subr.bf16.mxu0 0
  %3459 = vmatpush2.bf16.xpose.msra.mxu0 0
  %3460 = vmatprep.subr.bf16.mxu0 0
  %3461 = vmatpush2.bf16.xpose.msra.mxu0 0
  %3462 = vmatprep.subr.bf16.mxu0 0
  %3463 = vmatpush2.bf16.xpose.msra.mxu0 0
  %3464 = vmatprep.mubr.bf16.mxu0 0
  %3465 = vmatmul.mubr.bf16.gmra.mxu0 %v3427
  %v3466 = vpop.f32.mrf.mxu0
  %v3467 = vadd.f32 %v241, %v3466
  %v3468 = vpop.f32.mrf.mxu0
  %v3469 = vpop.f32.mrf.mxu0
  %v3470 = vadd.f32 %v242, %v3469
  %v3471 = vpop.f32.mrf.mxu0
  %3472 = vdwg.mxu0
  %v3474 = vsel %vm180, %v3266, 0
  %v3477 = vsel %vm180, %v3287, 0
  %3479 = vmatprep.subr.bf16.mxu0 0
  %3480 = vmatpush1.bf16.xpose.msra.mxu0 0
  %3481 = vmatprep.subr.bf16.mxu0 0
  %3482 = vmatpush1.bf16.xpose.msra.mxu0 0
  %3483 = vmatprep.subr.bf16.mxu0 0
  %3484 = vmatpush1.bf16.xpose.msra.mxu0 0
  %3485 = vmatprep.subr.bf16.mxu0 0
  %3486 = vmatpush1.bf16.xpose.msra.mxu0 0
  %3487 = vmatprep.subr.bf16.mxu0 0
  %3488 = vmatpush1.bf16.xpose.msra.mxu0 0
  %3489 = vmatprep.subr.bf16.mxu0 0
  %3490 = vmatpush1.bf16.xpose.msra.mxu0 0
  %3491 = vmatprep.subr.bf16.mxu0 0
  %3492 = vmatpush1.bf16.xpose.msra.mxu0 0
  %3493 = vmatprep.subr.bf16.mxu0 0
  %3494 = vmatpush1.bf16.xpose.msra.mxu0 %v3477
  %3495 = vmatprep.subr.bf16.mxu0 0
  %3496 = vmatpush2.bf16.xpose.msra.mxu0 0
  %3497 = vmatprep.subr.bf16.mxu0 0
  %3498 = vmatpush2.bf16.xpose.msra.mxu0 0
  %3499 = vmatprep.subr.bf16.mxu0 0
  %3500 = vmatpush2.bf16.xpose.msra.mxu0 0
  %3501 = vmatprep.subr.bf16.mxu0 0
  %3502 = vmatpush2.bf16.xpose.msra.mxu0 0
  %3503 = vmatprep.subr.bf16.mxu0 0
  %3504 = vmatpush2.bf16.xpose.msra.mxu0 0
  %3505 = vmatprep.subr.bf16.mxu0 0
  %3506 = vmatpush2.bf16.xpose.msra.mxu0 0
  %3507 = vmatprep.subr.bf16.mxu0 0
  %3508 = vmatpush2.bf16.xpose.msra.mxu0 0
  %3509 = vmatprep.subr.bf16.mxu0 0
  %3510 = vmatpush2.bf16.xpose.msra.mxu0 0
  %3511 = vmatprep.mubr.bf16.mxu0 0
  %3512 = vmatmul.mubr.bf16.gmra.mxu0 %v3474
  %v3513 = vpop.f32.mrf.mxu0
  %v3514 = vadd.f32 %v241, %v3513
  %v3515 = vpop.f32.mrf.mxu0
  %v3516 = vpop.f32.mrf.mxu0
  %v3517 = vadd.f32 %v242, %v3516
  %v3518 = vpop.f32.mrf.mxu0
  %3519 = vdwg.mxu0
  %v3521 = vsel %vm180, %v3252, 0
  %v3524 = vsel %vm180, %v3255, 0
  %3526 = vmatprep.subr.bf16.mxu0 0
  %3527 = vmatpush1.bf16.xpose.msra.mxu0 0
  %3528 = vmatprep.subr.bf16.mxu0 0
  %3529 = vmatpush1.bf16.xpose.msra.mxu0 0
  %3530 = vmatprep.subr.bf16.mxu0 0
  %3531 = vmatpush1.bf16.xpose.msra.mxu0 0
  %3532 = vmatprep.subr.bf16.mxu0 0
  %3533 = vmatpush1.bf16.xpose.msra.mxu0 0
  %3534 = vmatprep.subr.bf16.mxu0 0
  %3535 = vmatpush1.bf16.xpose.msra.mxu0 0
  %3536 = vmatprep.subr.bf16.mxu0 0
  %3537 = vmatpush1.bf16.xpose.msra.mxu0 0
  %3538 = vmatprep.subr.bf16.mxu0 0
  %3539 = vmatpush1.bf16.xpose.msra.mxu0 0
  %3540 = vmatprep.subr.bf16.mxu0 0
  %3541 = vmatpush1.bf16.xpose.msra.mxu0 %v3524
  %3542 = vmatprep.subr.bf16.mxu0 0
  %3543 = vmatpush2.bf16.xpose.msra.mxu0 0
  %3544 = vmatprep.subr.bf16.mxu0 0
  %3545 = vmatpush2.bf16.xpose.msra.mxu0 0
  %3546 = vmatprep.subr.bf16.mxu0 0
  %3547 = vmatpush2.bf16.xpose.msra.mxu0 0
  %3548 = vmatprep.subr.bf16.mxu0 0
  %3549 = vmatpush2.bf16.xpose.msra.mxu0 0
  %3550 = vmatprep.subr.bf16.mxu0 0
  %3551 = vmatpush2.bf16.xpose.msra.mxu0 0
  %3552 = vmatprep.subr.bf16.mxu0 0
  %3553 = vmatpush2.bf16.xpose.msra.mxu0 0
  %3554 = vmatprep.subr.bf16.mxu0 0
  %3555 = vmatpush2.bf16.xpose.msra.mxu0 0
  %3556 = vmatprep.subr.bf16.mxu0 0
  %3557 = vmatpush2.bf16.xpose.msra.mxu0 0
  %3558 = vmatprep.mubr.bf16.mxu0 0
  %3559 = vmatmul.mubr.bf16.gmra.mxu0 %v3521
  %v3560 = vpop.f32.mrf.mxu0
  %v3561 = vadd.f32 %v245, %v3560
  %v3562 = vpop.f32.mrf.mxu0
  %v3563 = vpop.f32.mrf.mxu0
  %v3564 = vadd.f32 %v246, %v3563
  %v3565 = vpop.f32.mrf.mxu0
  %3566 = vdwg.mxu0
  %v3568 = vsel %vm180, %v3269, 0
  %v3571 = vsel %vm180, %v3290, 0
  %3573 = vmatprep.subr.bf16.mxu0 0
  %3574 = vmatpush1.bf16.xpose.msra.mxu0 0
  %3575 = vmatprep.subr.bf16.mxu0 0
  %3576 = vmatpush1.bf16.xpose.msra.mxu0 0
  %3577 = vmatprep.subr.bf16.mxu0 0
  %3578 = vmatpush1.bf16.xpose.msra.mxu0 0
  %3579 = vmatprep.subr.bf16.mxu0 0
  %3580 = vmatpush1.bf16.xpose.msra.mxu0 0
  %3581 = vmatprep.subr.bf16.mxu0 0
  %3582 = vmatpush1.bf16.xpose.msra.mxu0 0
  %3583 = vmatprep.subr.bf16.mxu0 0
  %3584 = vmatpush1.bf16.xpose.msra.mxu0 0
  %3585 = vmatprep.subr.bf16.mxu0 0
  %3586 = vmatpush1.bf16.xpose.msra.mxu0 0
  %3587 = vmatprep.subr.bf16.mxu0 0
  %3588 = vmatpush1.bf16.xpose.msra.mxu0 %v3571
  %3589 = vmatprep.subr.bf16.mxu0 0
  %3590 = vmatpush2.bf16.xpose.msra.mxu0 0
  %3591 = vmatprep.subr.bf16.mxu0 0
  %3592 = vmatpush2.bf16.xpose.msra.mxu0 0
  %3593 = vmatprep.subr.bf16.mxu0 0
  %3594 = vmatpush2.bf16.xpose.msra.mxu0 0
  %3595 = vmatprep.subr.bf16.mxu0 0
  %3596 = vmatpush2.bf16.xpose.msra.mxu0 0
  %3597 = vmatprep.subr.bf16.mxu0 0
  %3598 = vmatpush2.bf16.xpose.msra.mxu0 0
  %3599 = vmatprep.subr.bf16.mxu0 0
  %3600 = vmatpush2.bf16.xpose.msra.mxu0 0
  %3601 = vmatprep.subr.bf16.mxu0 0
  %3602 = vmatpush2.bf16.xpose.msra.mxu0 0
  %3603 = vmatprep.subr.bf16.mxu0 0
  %3604 = vmatpush2.bf16.xpose.msra.mxu0 0
  %3605 = vmatprep.mubr.bf16.mxu0 0
  %3606 = vmatmul.mubr.bf16.gmra.mxu0 %v3568
  %v3607 = vpop.f32.mrf.mxu0
  %v3608 = vadd.f32 %v245, %v3607
  %v3609 = vpop.f32.mrf.mxu0
  %v3610 = vpop.f32.mrf.mxu0
  %v3611 = vadd.f32 %v246, %v3610
  %v3612 = vpop.f32.mrf.mxu0
  %3613 = vdwg.mxu0
  %v3615 = vsel %vm180, %v3271, 0
  %v3618 = vsel %vm180, %v3292, 0
  %3620 = vmatprep.subr.bf16.mxu0 0
  %3621 = vmatpush1.bf16.xpose.msra.mxu0 0
  %3622 = vmatprep.subr.bf16.mxu0 0
  %3623 = vmatpush1.bf16.xpose.msra.mxu0 0
  %3624 = vmatprep.subr.bf16.mxu0 0
  %3625 = vmatpush1.bf16.xpose.msra.mxu0 0
  %3626 = vmatprep.subr.bf16.mxu0 0
  %3627 = vmatpush1.bf16.xpose.msra.mxu0 0
  %3628 = vmatprep.subr.bf16.mxu0 0
  %3629 = vmatpush1.bf16.xpose.msra.mxu0 0
  %3630 = vmatprep.subr.bf16.mxu0 0
  %3631 = vmatpush1.bf16.xpose.msra.mxu0 0
  %3632 = vmatprep.subr.bf16.mxu0 0
  %3633 = vmatpush1.bf16.xpose.msra.mxu0 0
  %3634 = vmatprep.subr.bf16.mxu0 0
  %3635 = vmatpush1.bf16.xpose.msra.mxu0 %v3618
  %3636 = vmatprep.subr.bf16.mxu0 0
  %3637 = vmatpush2.bf16.xpose.msra.mxu0 0
  %3638 = vmatprep.subr.bf16.mxu0 0
  %3639 = vmatpush2.bf16.xpose.msra.mxu0 0
  %3640 = vmatprep.subr.bf16.mxu0 0
  %3641 = vmatpush2.bf16.xpose.msra.mxu0 0
  %3642 = vmatprep.subr.bf16.mxu0 0
  %3643 = vmatpush2.bf16.xpose.msra.mxu0 0
  %3644 = vmatprep.subr.bf16.mxu0 0
  %3645 = vmatpush2.bf16.xpose.msra.mxu0 0
  %3646 = vmatprep.subr.bf16.mxu0 0
  %3647 = vmatpush2.bf16.xpose.msra.mxu0 0
  %3648 = vmatprep.subr.bf16.mxu0 0
  %3649 = vmatpush2.bf16.xpose.msra.mxu0 0
  %3650 = vmatprep.subr.bf16.mxu0 0
  %3651 = vmatpush2.bf16.xpose.msra.mxu0 0
  %3652 = vmatprep.mubr.bf16.mxu0 0
  %3653 = vmatmul.mubr.bf16.gmra.mxu0 %v3615
  %v3654 = vpop.f32.mrf.mxu0
  %v3655 = vadd.f32 %v245, %v3654
  %v3656 = vpop.f32.mrf.mxu0
  %v3657 = vpop.f32.mrf.mxu0
  %v3658 = vadd.f32 %v246, %v3657
  %v3659 = vpop.f32.mrf.mxu0
  %3660 = vdwg.mxu0
  %v3662 = vsel %vm180, %v3273, 0
  %v3665 = vsel %vm180, %v3294, 0
  %3667 = vmatprep.subr.bf16.mxu0 0
  %3668 = vmatpush1.bf16.xpose.msra.mxu0 0
  %3669 = vmatprep.subr.bf16.mxu0 0
  %3670 = vmatpush1.bf16.xpose.msra.mxu0 0
  %3671 = vmatprep.subr.bf16.mxu0 0
  %3672 = vmatpush1.bf16.xpose.msra.mxu0 0
  %3673 = vmatprep.subr.bf16.mxu0 0
  %3674 = vmatpush1.bf16.xpose.msra.mxu0 0
  %3675 = vmatprep.subr.bf16.mxu0 0
  %3676 = vmatpush1.bf16.xpose.msra.mxu0 0
  %3677 = vmatprep.subr.bf16.mxu0 0
  %3678 = vmatpush1.bf16.xpose.msra.mxu0 0
  %3679 = vmatprep.subr.bf16.mxu0 0
  %3680 = vmatpush1.bf16.xpose.msra.mxu0 0
  %3681 = vmatprep.subr.bf16.mxu0 0
  %3682 = vmatpush1.bf16.xpose.msra.mxu0 %v3665
  %3683 = vmatprep.subr.bf16.mxu0 0
  %3684 = vmatpush2.bf16.xpose.msra.mxu0 0
  %3685 = vmatprep.subr.bf16.mxu0 0
  %3686 = vmatpush2.bf16.xpose.msra.mxu0 0
  %3687 = vmatprep.subr.bf16.mxu0 0
  %3688 = vmatpush2.bf16.xpose.msra.mxu0 0
  %3689 = vmatprep.subr.bf16.mxu0 0
  %3690 = vmatpush2.bf16.xpose.msra.mxu0 0
  %3691 = vmatprep.subr.bf16.mxu0 0
  %3692 = vmatpush2.bf16.xpose.msra.mxu0 0
  %3693 = vmatprep.subr.bf16.mxu0 0
  %3694 = vmatpush2.bf16.xpose.msra.mxu0 0
  %3695 = vmatprep.subr.bf16.mxu0 0
  %3696 = vmatpush2.bf16.xpose.msra.mxu0 0
  %3697 = vmatprep.subr.bf16.mxu0 0
  %3698 = vmatpush2.bf16.xpose.msra.mxu0 0
  %3699 = vmatprep.mubr.bf16.mxu0 0
  %3700 = vmatmul.mubr.bf16.gmra.mxu0 %v3662
  %v3701 = vpop.f32.mrf.mxu0
  %v3702 = vadd.f32 %v245, %v3701
  %v3703 = vpop.f32.mrf.mxu0
  %v3704 = vpop.f32.mrf.mxu0
  %v3705 = vadd.f32 %v246, %v3704
  %v3706 = vpop.f32.mrf.mxu0
  %3707 = vdwg.mxu0
  %v3709 = vsel %vm180, %v3253, 0
  %v3712 = vsel %vm180, %v3256, 0
  %3714 = vmatprep.subr.bf16.mxu0 0
  %3715 = vmatpush1.bf16.xpose.msra.mxu0 0
  %3716 = vmatprep.subr.bf16.mxu0 0
  %3717 = vmatpush1.bf16.xpose.msra.mxu0 0
  %3718 = vmatprep.subr.bf16.mxu0 0
  %3719 = vmatpush1.bf16.xpose.msra.mxu0 0
  %3720 = vmatprep.subr.bf16.mxu0 0
  %3721 = vmatpush1.bf16.xpose.msra.mxu0 0
  %3722 = vmatprep.subr.bf16.mxu0 0
  %3723 = vmatpush1.bf16.xpose.msra.mxu0 0
  %3724 = vmatprep.subr.bf16.mxu0 0
  %3725 = vmatpush1.bf16.xpose.msra.mxu0 0
  %3726 = vmatprep.subr.bf16.mxu0 0
  %3727 = vmatpush1.bf16.xpose.msra.mxu0 0
  %3728 = vmatprep.subr.bf16.mxu0 0
  %3729 = vmatpush1.bf16.xpose.msra.mxu0 %v3712
  %3730 = vmatprep.subr.bf16.mxu0 0
  %3731 = vmatpush2.bf16.xpose.msra.mxu0 0
  %3732 = vmatprep.subr.bf16.mxu0 0
  %3733 = vmatpush2.bf16.xpose.msra.mxu0 0
  %3734 = vmatprep.subr.bf16.mxu0 0
  %3735 = vmatpush2.bf16.xpose.msra.mxu0 0
  %3736 = vmatprep.subr.bf16.mxu0 0
  %3737 = vmatpush2.bf16.xpose.msra.mxu0 0
  %3738 = vmatprep.subr.bf16.mxu0 0
  %3739 = vmatpush2.bf16.xpose.msra.mxu0 0
  %3740 = vmatprep.subr.bf16.mxu0 0
  %3741 = vmatpush2.bf16.xpose.msra.mxu0 0
  %3742 = vmatprep.subr.bf16.mxu0 0
  %3743 = vmatpush2.bf16.xpose.msra.mxu0 0
  %3744 = vmatprep.subr.bf16.mxu0 0
  %3745 = vmatpush2.bf16.xpose.msra.mxu0 0
  %3746 = vmatprep.mubr.bf16.mxu0 0
  %3747 = vmatmul.mubr.bf16.gmra.mxu0 %v3709
  %v3748 = vpop.f32.mrf.mxu0
  %v3749 = vadd.f32 %v249, %v3748
  %v3750 = vpop.f32.mrf.mxu0
  %v3751 = vpop.f32.mrf.mxu0
  %v3752 = vadd.f32 %v250, %v3751
  %v3753 = vpop.f32.mrf.mxu0
  %3754 = vdwg.mxu0
  %v3756 = vsel %vm180, %v3276, 0
  %v3759 = vsel %vm180, %v3297, 0
  %3761 = vmatprep.subr.bf16.mxu0 0
  %3762 = vmatpush1.bf16.xpose.msra.mxu0 0
  %3763 = vmatprep.subr.bf16.mxu0 0
  %3764 = vmatpush1.bf16.xpose.msra.mxu0 0
  %3765 = vmatprep.subr.bf16.mxu0 0
  %3766 = vmatpush1.bf16.xpose.msra.mxu0 0
  %3767 = vmatprep.subr.bf16.mxu0 0
  %3768 = vmatpush1.bf16.xpose.msra.mxu0 0
  %3769 = vmatprep.subr.bf16.mxu0 0
  %3770 = vmatpush1.bf16.xpose.msra.mxu0 0
  %3771 = vmatprep.subr.bf16.mxu0 0
  %3772 = vmatpush1.bf16.xpose.msra.mxu0 0
  %3773 = vmatprep.subr.bf16.mxu0 0
  %3774 = vmatpush1.bf16.xpose.msra.mxu0 0
  %3775 = vmatprep.subr.bf16.mxu0 0
  %3776 = vmatpush1.bf16.xpose.msra.mxu0 %v3759
  %3777 = vmatprep.subr.bf16.mxu0 0
  %3778 = vmatpush2.bf16.xpose.msra.mxu0 0
  %3779 = vmatprep.subr.bf16.mxu0 0
  %3780 = vmatpush2.bf16.xpose.msra.mxu0 0
  %3781 = vmatprep.subr.bf16.mxu0 0
  %3782 = vmatpush2.bf16.xpose.msra.mxu0 0
  %3783 = vmatprep.subr.bf16.mxu0 0
  %3784 = vmatpush2.bf16.xpose.msra.mxu0 0
  %3785 = vmatprep.subr.bf16.mxu0 0
  %3786 = vmatpush2.bf16.xpose.msra.mxu0 0
  %3787 = vmatprep.subr.bf16.mxu0 0
  %3788 = vmatpush2.bf16.xpose.msra.mxu0 0
  %3789 = vmatprep.subr.bf16.mxu0 0
  %3790 = vmatpush2.bf16.xpose.msra.mxu0 0
  %3791 = vmatprep.subr.bf16.mxu0 0
  %3792 = vmatpush2.bf16.xpose.msra.mxu0 0
  %3793 = vmatprep.mubr.bf16.mxu0 0
  %3794 = vmatmul.mubr.bf16.gmra.mxu0 %v3756
  %v3795 = vpop.f32.mrf.mxu0
  %v3796 = vadd.f32 %v249, %v3795
  %v3797 = vpop.f32.mrf.mxu0
  %v3798 = vpop.f32.mrf.mxu0
  %v3799 = vadd.f32 %v250, %v3798
  %v3800 = vpop.f32.mrf.mxu0
  %3801 = vdwg.mxu0
  %v3803 = vsel %vm180, %v3278, 0
  %v3806 = vsel %vm180, %v3299, 0
  %3808 = vmatprep.subr.bf16.mxu0 0
  %3809 = vmatpush1.bf16.xpose.msra.mxu0 0
  %3810 = vmatprep.subr.bf16.mxu0 0
  %3811 = vmatpush1.bf16.xpose.msra.mxu0 0
  %3812 = vmatprep.subr.bf16.mxu0 0
  %3813 = vmatpush1.bf16.xpose.msra.mxu0 0
  %3814 = vmatprep.subr.bf16.mxu0 0
  %3815 = vmatpush1.bf16.xpose.msra.mxu0 0
  %3816 = vmatprep.subr.bf16.mxu0 0
  %3817 = vmatpush1.bf16.xpose.msra.mxu0 0
  %3818 = vmatprep.subr.bf16.mxu0 0
  %3819 = vmatpush1.bf16.xpose.msra.mxu0 0
  %3820 = vmatprep.subr.bf16.mxu0 0
  %3821 = vmatpush1.bf16.xpose.msra.mxu0 0
  %3822 = vmatprep.subr.bf16.mxu0 0
  %3823 = vmatpush1.bf16.xpose.msra.mxu0 %v3806
  %3824 = vmatprep.subr.bf16.mxu0 0
  %3825 = vmatpush2.bf16.xpose.msra.mxu0 0
  %3826 = vmatprep.subr.bf16.mxu0 0
  %3827 = vmatpush2.bf16.xpose.msra.mxu0 0
  %3828 = vmatprep.subr.bf16.mxu0 0
  %3829 = vmatpush2.bf16.xpose.msra.mxu0 0
  %3830 = vmatprep.subr.bf16.mxu0 0
  %3831 = vmatpush2.bf16.xpose.msra.mxu0 0
  %3832 = vmatprep.subr.bf16.mxu0 0
  %3833 = vmatpush2.bf16.xpose.msra.mxu0 0
  %3834 = vmatprep.subr.bf16.mxu0 0
  %3835 = vmatpush2.bf16.xpose.msra.mxu0 0
  %3836 = vmatprep.subr.bf16.mxu0 0
  %3837 = vmatpush2.bf16.xpose.msra.mxu0 0
  %3838 = vmatprep.subr.bf16.mxu0 0
  %3839 = vmatpush2.bf16.xpose.msra.mxu0 0
  %3840 = vmatprep.mubr.bf16.mxu0 0
  %3841 = vmatmul.mubr.bf16.gmra.mxu0 %v3803
  %v3842 = vpop.f32.mrf.mxu0
  %v3843 = vadd.f32 %v249, %v3842
  %v3844 = vpop.f32.mrf.mxu0
  %v3845 = vpop.f32.mrf.mxu0
  %v3846 = vadd.f32 %v250, %v3845
  %v3847 = vpop.f32.mrf.mxu0
  %3848 = vdwg.mxu0
  %v3850 = vsel %vm180, %v3280, 0
  %v3853 = vsel %vm180, %v3301, 0
  %3855 = vmatprep.subr.bf16.mxu0 0
  %3856 = vmatpush1.bf16.xpose.msra.mxu0 0
  %3857 = vmatprep.subr.bf16.mxu0 0
  %3858 = vmatpush1.bf16.xpose.msra.mxu0 0
  %3859 = vmatprep.subr.bf16.mxu0 0
  %3860 = vmatpush1.bf16.xpose.msra.mxu0 0
  %3861 = vmatprep.subr.bf16.mxu0 0
  %3862 = vmatpush1.bf16.xpose.msra.mxu0 0
  %3863 = vmatprep.subr.bf16.mxu0 0
  %3864 = vmatpush1.bf16.xpose.msra.mxu0 0
  %3865 = vmatprep.subr.bf16.mxu0 0
  %3866 = vmatpush1.bf16.xpose.msra.mxu0 0
  %3867 = vmatprep.subr.bf16.mxu0 0
  %3868 = vmatpush1.bf16.xpose.msra.mxu0 0
  %3869 = vmatprep.subr.bf16.mxu0 0
  %3870 = vmatpush1.bf16.xpose.msra.mxu0 %v3853
  %3871 = vmatprep.subr.bf16.mxu0 0
  %3872 = vmatpush2.bf16.xpose.msra.mxu0 0
  %3873 = vmatprep.subr.bf16.mxu0 0
  %3874 = vmatpush2.bf16.xpose.msra.mxu0 0
  %3875 = vmatprep.subr.bf16.mxu0 0
  %3876 = vmatpush2.bf16.xpose.msra.mxu0 0
  %3877 = vmatprep.subr.bf16.mxu0 0
  %3878 = vmatpush2.bf16.xpose.msra.mxu0 0
  %3879 = vmatprep.subr.bf16.mxu0 0
  %3880 = vmatpush2.bf16.xpose.msra.mxu0 0
  %3881 = vmatprep.subr.bf16.mxu0 0
  %3882 = vmatpush2.bf16.xpose.msra.mxu0 0
  %3883 = vmatprep.subr.bf16.mxu0 0
  %3884 = vmatpush2.bf16.xpose.msra.mxu0 0
  %3885 = vmatprep.subr.bf16.mxu0 0
  %3886 = vmatpush2.bf16.xpose.msra.mxu0 0
  %3887 = vmatprep.mubr.bf16.mxu0 0
  %3888 = vmatmul.mubr.bf16.gmra.mxu0 %v3850
  %v3889 = vpop.f32.mrf.mxu0
  %v3890 = vadd.f32 %v249, %v3889
  %v3891 = vpop.f32.mrf.mxu0
  %v3892 = vpop.f32.mrf.mxu0
  %v3893 = vadd.f32 %v250, %v3892
  %v3894 = vpop.f32.mrf.mxu0
  %3895 = vdwg.mxu0
  %v3896 = vsel %vm1290, %v3373, -inf
  %3897 = vmax.xlane.f32.xlu0 %v3896
  %v3898 = vpop.xlane.xlu0 %3897
  %v3899 = vsel %vm1290, %v3376, -inf
  %3900 = vmax.xlane.f32.xlu0 %v3899
  %v3901 = vpop.xlane.xlu0 %3900
  %v3902 = vsel %vm1290, %v3420, -inf
  %3903 = vmax.xlane.f32.xlu0 %v3902
  %v3904 = vpop.xlane.xlu0 %3903
  %v3905 = vsel %vm1290, %v3423, -inf
  %3906 = vmax.xlane.f32.xlu0 %v3905
  %v3907 = vpop.xlane.xlu0 %3906
  %v3908 = vsel %vm1290, %v3467, -inf
  %3909 = vmax.xlane.f32.xlu0 %v3908
  %v3910 = vpop.xlane.xlu0 %3909
  %v3911 = vsel %vm1290, %v3470, -inf
  %3912 = vmax.xlane.f32.xlu0 %v3911
  %v3913 = vpop.xlane.xlu0 %3912
  %v3914 = vsel %vm1290, %v3514, -inf
  %3915 = vmax.xlane.f32.xlu0 %v3914
  %v3916 = vpop.xlane.xlu0 %3915
  %v3917 = vsel %vm1290, %v3517, -inf
  %3918 = vmax.xlane.f32.xlu0 %v3917
  %v3919 = vpop.xlane.xlu0 %3918
  %v3920 = vsel %vm1290, %v3561, -inf
  %3921 = vmax.xlane.f32.xlu0 %v3920
  %v3922 = vpop.xlane.xlu0 %3921
  %v3923 = vsel %vm1290, %v3564, -inf
  %3924 = vmax.xlane.f32.xlu0 %v3923
  %v3925 = vpop.xlane.xlu0 %3924
  %v3926 = vsel %vm1290, %v3608, -inf
  %3927 = vmax.xlane.f32.xlu0 %v3926
  %v3928 = vpop.xlane.xlu0 %3927
  %v3929 = vsel %vm1290, %v3611, -inf
  %3930 = vmax.xlane.f32.xlu0 %v3929
  %v3931 = vpop.xlane.xlu0 %3930
  %v3932 = vsel %vm1290, %v3655, -inf
  %3933 = vmax.xlane.f32.xlu0 %v3932
  %v3934 = vpop.xlane.xlu0 %3933
  %v3935 = vsel %vm1290, %v3658, -inf
  %3936 = vmax.xlane.f32.xlu0 %v3935
  %v3937 = vpop.xlane.xlu0 %3936
  %v3938 = vsel %vm1290, %v3702, -inf
  %3939 = vmax.xlane.f32.xlu0 %v3938
  %v3940 = vpop.xlane.xlu0 %3939
  %v3941 = vsel %vm1290, %v3705, -inf
  %3942 = vmax.xlane.f32.xlu0 %v3941
  %v3943 = vpop.xlane.xlu0 %3942
  %v3944 = vsel %vm1290, %v3749, -inf
  %3945 = vmax.xlane.f32.xlu0 %v3944
  %v3946 = vpop.xlane.xlu0 %3945
  %v3947 = vsel %vm1290, %v3752, -inf
  %3948 = vmax.xlane.f32.xlu0 %v3947
  %v3949 = vpop.xlane.xlu0 %3948
  %v3950 = vsel %vm1290, %v3796, -inf
  %3951 = vmax.xlane.f32.xlu0 %v3950
  %v3952 = vpop.xlane.xlu0 %3951
  %v3953 = vsel %vm1290, %v3799, -inf
  %3954 = vmax.xlane.f32.xlu0 %v3953
  %v3955 = vpop.xlane.xlu0 %3954
  %v3956 = vsel %vm1290, %v3843, -inf
  %3957 = vmax.xlane.f32.xlu0 %v3956
  %v3958 = vpop.xlane.xlu0 %3957
  %v3959 = vsel %vm1290, %v3846, -inf
  %3960 = vmax.xlane.f32.xlu0 %v3959
  %v3961 = vpop.xlane.xlu0 %3960
  %v3962 = vsel %vm1290, %v3890, -inf
  %3963 = vmax.xlane.f32.xlu0 %v3962
  %v3964 = vpop.xlane.xlu0 %3963
  %v3965 = vsel %vm1290, %v3893, -inf
  %3966 = vmax.xlane.f32.xlu0 %v3965
  %v3967 = vpop.xlane.xlu0 %3966
  %v3968 = vsub.f32 %v3373, %v3898
  %v3969 = vsub.f32 %v3376, %v3901
  %v3970 = vsub.f32 %v3420, %v3904
  %v3971 = vsub.f32 %v3423, %v3907
  %v3972 = vsub.f32 %v3467, %v3910
  %v3973 = vsub.f32 %v3470, %v3913
  %v3974 = vsub.f32 %v3514, %v3916
  %v3975 = vsub.f32 %v3517, %v3919
  %v3976 = vsub.f32 %v3561, %v3922
  %v3977 = vsub.f32 %v3564, %v3925
  %v3978 = vsub.f32 %v3608, %v3928
  %v3979 = vsub.f32 %v3611, %v3931
  %v3980 = vsub.f32 %v3655, %v3934
  %v3981 = vsub.f32 %v3658, %v3937
  %v3982 = vsub.f32 %v3702, %v3940
  %v3983 = vsub.f32 %v3705, %v3943
  %v3984 = vsub.f32 %v3749, %v3946
  %v3985 = vsub.f32 %v3752, %v3949
  %v3986 = vsub.f32 %v3796, %v3952
  %v3987 = vsub.f32 %v3799, %v3955
  %v3988 = vsub.f32 %v3843, %v3958
  %v3989 = vsub.f32 %v3846, %v3961
  %v3990 = vsub.f32 %v3890, %v3964
  %v3991 = vsub.f32 %v3893, %v3967
  %v3992 = vmul.f32 %v3968, 1.442695
  %v3993 = vpow.pop %v3992
  %v3994 = vmul.f32 %v3969, 1.442695
  %v3995 = vpow.pop %v3994
  %v3996 = vmul.f32 %v3970, 1.442695
  %v3997 = vpow.pop %v3996
  %v3998 = vmul.f32 %v3971, 1.442695
  %v3999 = vpow.pop %v3998
  %v4000 = vmul.f32 %v3972, 1.442695
  %v4001 = vpow.pop %v4000
  %v4002 = vmul.f32 %v3973, 1.442695
  %v4003 = vpow.pop %v4002
  %v4004 = vmul.f32 %v3974, 1.442695
  %v4005 = vpow.pop %v4004
  %v4006 = vmul.f32 %v3975, 1.442695
  %v4007 = vpow.pop %v4006
  %v4008 = vmul.f32 %v3976, 1.442695
  %v4009 = vpow.pop %v4008
  %v4010 = vmul.f32 %v3977, 1.442695
  %v4011 = vpow.pop %v4010
  %v4012 = vmul.f32 %v3978, 1.442695
  %v4013 = vpow.pop %v4012
  %v4014 = vmul.f32 %v3979, 1.442695
  %v4015 = vpow.pop %v4014
  %v4016 = vmul.f32 %v3980, 1.442695
  %v4017 = vpow.pop %v4016
  %v4018 = vmul.f32 %v3981, 1.442695
  %v4019 = vpow.pop %v4018
  %v4020 = vmul.f32 %v3982, 1.442695
  %v4021 = vpow.pop %v4020
  %v4022 = vmul.f32 %v3983, 1.442695
  %v4023 = vpow.pop %v4022
  %v4024 = vmul.f32 %v3984, 1.442695
  %v4025 = vpow.pop %v4024
  %v4026 = vmul.f32 %v3985, 1.442695
  %v4027 = vpow.pop %v4026
  %v4028 = vmul.f32 %v3986, 1.442695
  %v4029 = vpow.pop %v4028
  %v4030 = vmul.f32 %v3987, 1.442695
  %v4031 = vpow.pop %v4030
  %v4032 = vmul.f32 %v3988, 1.442695
  %v4033 = vpow.pop %v4032
  %v4034 = vmul.f32 %v3989, 1.442695
  %v4035 = vpow.pop %v4034
  %v4036 = vmul.f32 %v3990, 1.442695
  %v4037 = vpow.pop %v4036
  %v4038 = vmul.f32 %v3991, 1.442695
  %v4039 = vpow.pop %v4038
  %v4040 = vmul.f32 %v3993, %v231
  %v4041 = vmul.f32 %v3995, %v232
  %v4042 = vmul.f32 %v3997, %v231
  %v4043 = vmul.f32 %v3999, %v232
  %v4044 = vmul.f32 %v4001, %v231
  %v4045 = vmul.f32 %v4003, %v232
  %v4046 = vmul.f32 %v4005, %v231
  %v4047 = vmul.f32 %v4007, %v232
  %v4048 = vmul.f32 %v4009, %v234
  %v4049 = vmul.f32 %v4011, %v235
  %v4050 = vmul.f32 %v4013, %v234
  %v4051 = vmul.f32 %v4015, %v235
  %v4052 = vmul.f32 %v4017, %v234
  %v4053 = vmul.f32 %v4019, %v235
  %v4054 = vmul.f32 %v4021, %v234
  %v4055 = vmul.f32 %v4023, %v235
  %v4056 = vmul.f32 %v4025, %v237
  %v4057 = vmul.f32 %v4027, %v238
  %v4058 = vmul.f32 %v4029, %v237
  %v4059 = vmul.f32 %v4031, %v238
  %v4060 = vmul.f32 %v4033, %v237
  %v4061 = vmul.f32 %v4035, %v238
  %v4062 = vmul.f32 %v4037, %v237
  %v4063 = vmul.f32 %v4039, %v238
  %v4064 = vsel %vm1290, %v4040, 0.0
  %4065 = vadd.xlane.f32.xlu0 %v4064
  %v4066 = vpop.xlane.xlu0 %4065
  %v4067 = vsel %vm1290, %v4041, 0.0
  %4068 = vadd.xlane.f32.xlu0 %v4067
  %v4069 = vpop.xlane.xlu0 %4068
  %v4070 = vsel %vm1290, %v4042, 0.0
  %4071 = vadd.xlane.f32.xlu0 %v4070
  %v4072 = vpop.xlane.xlu0 %4071
  %v4073 = vsel %vm1290, %v4043, 0.0
  %4074 = vadd.xlane.f32.xlu0 %v4073
  %v4075 = vpop.xlane.xlu0 %4074
  %v4076 = vsel %vm1290, %v4044, 0.0
  %4077 = vadd.xlane.f32.xlu0 %v4076
  %v4078 = vpop.xlane.xlu0 %4077
  %v4079 = vsel %vm1290, %v4045, 0.0
  %4080 = vadd.xlane.f32.xlu0 %v4079
  %v4081 = vpop.xlane.xlu0 %4080
  %v4082 = vsel %vm1290, %v4046, 0.0
  %4083 = vadd.xlane.f32.xlu0 %v4082
  %v4084 = vpop.xlane.xlu0 %4083
  %v4085 = vsel %vm1290, %v4047, 0.0
  %4086 = vadd.xlane.f32.xlu0 %v4085
  %v4087 = vpop.xlane.xlu0 %4086
  %v4088 = vsel %vm1290, %v4048, 0.0
  %4089 = vadd.xlane.f32.xlu0 %v4088
  %v4090 = vpop.xlane.xlu0 %4089
  %v4091 = vsel %vm1290, %v4049, 0.0
  %4092 = vadd.xlane.f32.xlu0 %v4091
  %v4093 = vpop.xlane.xlu0 %4092
  %v4094 = vsel %vm1290, %v4050, 0.0
  %4095 = vadd.xlane.f32.xlu0 %v4094
  %v4096 = vpop.xlane.xlu0 %4095
  %v4097 = vsel %vm1290, %v4051, 0.0
  %4098 = vadd.xlane.f32.xlu0 %v4097
  %v4099 = vpop.xlane.xlu0 %4098
  %v4100 = vsel %vm1290, %v4052, 0.0
  %4101 = vadd.xlane.f32.xlu0 %v4100
  %v4102 = vpop.xlane.xlu0 %4101
  %v4103 = vsel %vm1290, %v4053, 0.0
  %4104 = vadd.xlane.f32.xlu0 %v4103
  %v4105 = vpop.xlane.xlu0 %4104
  %v4106 = vsel %vm1290, %v4054, 0.0
  %4107 = vadd.xlane.f32.xlu0 %v4106
  %v4108 = vpop.xlane.xlu0 %4107
  %v4109 = vsel %vm1290, %v4055, 0.0
  %4110 = vadd.xlane.f32.xlu0 %v4109
  %v4111 = vpop.xlane.xlu0 %4110
  %v4112 = vsel %vm1290, %v4056, 0.0
  %4113 = vadd.xlane.f32.xlu0 %v4112
  %v4114 = vpop.xlane.xlu0 %4113
  %v4115 = vsel %vm1290, %v4057, 0.0
  %4116 = vadd.xlane.f32.xlu0 %v4115
  %v4117 = vpop.xlane.xlu0 %4116
  %v4118 = vsel %vm1290, %v4058, 0.0
  %4119 = vadd.xlane.f32.xlu0 %v4118
  %v4120 = vpop.xlane.xlu0 %4119
  %v4121 = vsel %vm1290, %v4059, 0.0
  %4122 = vadd.xlane.f32.xlu0 %v4121
  %v4123 = vpop.xlane.xlu0 %4122
  %v4124 = vsel %vm1290, %v4060, 0.0
  %4125 = vadd.xlane.f32.xlu0 %v4124
  %v4126 = vpop.xlane.xlu0 %4125
  %v4127 = vsel %vm1290, %v4061, 0.0
  %4128 = vadd.xlane.f32.xlu0 %v4127
  %v4129 = vpop.xlane.xlu0 %4128
  %v4130 = vsel %vm1290, %v4062, 0.0
  %4131 = vadd.xlane.f32.xlu0 %v4130
  %v4132 = vpop.xlane.xlu0 %4131
  %v4133 = vsel %vm1290, %v4063, 0.0
  %4134 = vadd.xlane.f32.xlu0 %v4133
  %v4135 = vpop.xlane.xlu0 %4134
  %v4136 = vmax.f32 %v4066, 1e-20
  %v4137 = vmax.f32 %v4069, 1e-20
  %v4138 = vmax.f32 %v4072, 1e-20
  %v4139 = vmax.f32 %v4075, 1e-20
  %v4140 = vmax.f32 %v4078, 1e-20
  %v4141 = vmax.f32 %v4081, 1e-20
  %v4142 = vmax.f32 %v4084, 1e-20
  %v4143 = vmax.f32 %v4087, 1e-20
  %v4144 = vmax.f32 %v4090, 1e-20
  %v4145 = vmax.f32 %v4093, 1e-20
  %v4146 = vmax.f32 %v4096, 1e-20
  %v4147 = vmax.f32 %v4099, 1e-20
  %v4148 = vmax.f32 %v4102, 1e-20
  %v4149 = vmax.f32 %v4105, 1e-20
  %v4150 = vmax.f32 %v4108, 1e-20
  %v4151 = vmax.f32 %v4111, 1e-20
  %v4152 = vmax.f32 %v4114, 1e-20
  %v4153 = vmax.f32 %v4117, 1e-20
  %v4154 = vmax.f32 %v4120, 1e-20
  %v4155 = vmax.f32 %v4123, 1e-20
  %v4156 = vmax.f32 %v4126, 1e-20
  %v4157 = vmax.f32 %v4129, 1e-20
  %v4158 = vmax.f32 %v4132, 1e-20
  %v4159 = vmax.f32 %v4135, 1e-20
  %v4160 = vrcp.pop %v4136
  %v4161 = vmul.f32 %v4040, %v4160
  %v4162 = vrcp.pop %v4137
  %v4163 = vmul.f32 %v4041, %v4162
  %v4164 = vrcp.pop %v4138
  %v4165 = vmul.f32 %v4042, %v4164
  %v4166 = vrcp.pop %v4139
  %v4167 = vmul.f32 %v4043, %v4166
  %v4168 = vrcp.pop %v4140
  %v4169 = vmul.f32 %v4044, %v4168
  %v4170 = vrcp.pop %v4141
  %v4171 = vmul.f32 %v4045, %v4170
  %v4172 = vrcp.pop %v4142
  %v4173 = vmul.f32 %v4046, %v4172
  %v4174 = vrcp.pop %v4143
  %v4175 = vmul.f32 %v4047, %v4174
  %v4176 = vrcp.pop %v4144
  %v4177 = vmul.f32 %v4048, %v4176
  %v4178 = vrcp.pop %v4145
  %v4179 = vmul.f32 %v4049, %v4178
  %v4180 = vrcp.pop %v4146
  %v4181 = vmul.f32 %v4050, %v4180
  %v4182 = vrcp.pop %v4147
  %v4183 = vmul.f32 %v4051, %v4182
  %v4184 = vrcp.pop %v4148
  %v4185 = vmul.f32 %v4052, %v4184
  %v4186 = vrcp.pop %v4149
  %v4187 = vmul.f32 %v4053, %v4186
  %v4188 = vrcp.pop %v4150
  %v4189 = vmul.f32 %v4054, %v4188
  %v4190 = vrcp.pop %v4151
  %v4191 = vmul.f32 %v4055, %v4190
  %v4192 = vrcp.pop %v4152
  %v4193 = vmul.f32 %v4056, %v4192
  %v4194 = vrcp.pop %v4153
  %v4195 = vmul.f32 %v4057, %v4194
  %v4196 = vrcp.pop %v4154
  %v4197 = vmul.f32 %v4058, %v4196
  %v4198 = vrcp.pop %v4155
  %v4199 = vmul.f32 %v4059, %v4198
  %v4200 = vrcp.pop %v4156
  %v4201 = vmul.f32 %v4060, %v4200
  %v4202 = vrcp.pop %v4157
  %v4203 = vmul.f32 %v4061, %v4202
  %v4204 = vrcp.pop %v4158
  %v4205 = vmul.f32 %v4062, %v4204
  %v4206 = vrcp.pop %v4159
  %v4207 = vmul.f32 %v4063, %v4206
  %v4208 = vpack.c.bf16 %v4163, %v4161
  %v4209 = vpack.c.bf16 %v4167, %v4165
  %v4210 = vpack.c.bf16 %v4171, %v4169
  %v4211 = vpack.c.bf16 %v4175, %v4173
  %v4212 = vpack.c.bf16 %v4179, %v4177
  %v4213 = vpack.c.bf16 %v4183, %v4181
  %v4214 = vpack.c.bf16 %v4187, %v4185
  %v4215 = vpack.c.bf16 %v4191, %v4189
  %v4216 = vpack.c.bf16 %v4195, %v4193
  %v4217 = vpack.c.bf16 %v4199, %v4197
  %v4218 = vpack.c.bf16 %v4203, %v4201
  %v4219 = vpack.c.bf16 %v4207, %v4205
  %v4221 = vsel %vm1290, %v4208, 0
  %4223 = vmatprep.subr.bf16.mxu0 0
  %4224 = vmatpush1.bf16.msra.mxu0 0
  %4225 = vmatprep.subr.bf16.mxu0 0
  %4226 = vmatpush1.bf16.msra.mxu0 0
  %4227 = vmatprep.subr.bf16.mxu0 0
  %4228 = vmatpush1.bf16.msra.mxu0 0
  %4229 = vmatprep.subr.bf16.mxu0 0
  %4230 = vmatpush1.bf16.msra.mxu0 0
  %4231 = vmatprep.subr.bf16.mxu0 0
  %4232 = vmatpush1.bf16.msra.mxu0 0
  %4233 = vmatprep.subr.bf16.mxu0 0
  %4234 = vmatpush1.bf16.msra.mxu0 0
  %4235 = vmatprep.subr.bf16.mxu0 0
  %4236 = vmatpush1.bf16.msra.mxu0 0
  %4237 = vmatprep.subr.bf16.mxu0 0
  %4238 = vmatpush1.bf16.msra.mxu0 %v3257
  %4239 = vmatprep.subr.bf16.mxu0 0
  %4240 = vmatpush2.bf16.msra.mxu0 0
  %4241 = vmatprep.subr.bf16.mxu0 0
  %4242 = vmatpush2.bf16.msra.mxu0 0
  %4243 = vmatprep.subr.bf16.mxu0 0
  %4244 = vmatpush2.bf16.msra.mxu0 0
  %4245 = vmatprep.subr.bf16.mxu0 0
  %4246 = vmatpush2.bf16.msra.mxu0 0
  %4247 = vmatprep.subr.bf16.mxu0 0
  %4248 = vmatpush2.bf16.msra.mxu0 0
  %4249 = vmatprep.subr.bf16.mxu0 0
  %4250 = vmatpush2.bf16.msra.mxu0 0
  %4251 = vmatprep.subr.bf16.mxu0 0
  %4252 = vmatpush2.bf16.msra.mxu0 0
  %4253 = vmatprep.subr.bf16.mxu0 0
  %4254 = vmatpush2.bf16.msra.mxu0 0
  %4255 = vmatprep.mubr.bf16.mxu0 0
  %4256 = vmatmul.mubr.bf16.gmra.mxu0 %v4221
  %v4257 = vpop.f32.mrf.mxu0
  %v4258 = vadd.f32 0.0, %v4257
  %v4259 = vpop.f32.mrf.mxu0
  %v4260 = vpop.f32.mrf.mxu0
  %v4261 = vadd.f32 0.0, %v4260
  %v4262 = vpop.f32.mrf.mxu0
  %4263 = vdwg.mxu0
  %v4265 = vsel %vm1290, %v4209, 0
  %4267 = vmatprep.subr.bf16.mxu0 0
  %4268 = vmatpush1.bf16.msra.mxu0 0
  %4269 = vmatprep.subr.bf16.mxu0 0
  %4270 = vmatpush1.bf16.msra.mxu0 0
  %4271 = vmatprep.subr.bf16.mxu0 0
  %4272 = vmatpush1.bf16.msra.mxu0 0
  %4273 = vmatprep.subr.bf16.mxu0 0
  %4274 = vmatpush1.bf16.msra.mxu0 0
  %4275 = vmatprep.subr.bf16.mxu0 0
  %4276 = vmatpush1.bf16.msra.mxu0 0
  %4277 = vmatprep.subr.bf16.mxu0 0
  %4278 = vmatpush1.bf16.msra.mxu0 0
  %4279 = vmatprep.subr.bf16.mxu0 0
  %4280 = vmatpush1.bf16.msra.mxu0 0
  %4281 = vmatprep.subr.bf16.mxu0 0
  %4282 = vmatpush1.bf16.msra.mxu0 %v3304
  %4283 = vmatprep.subr.bf16.mxu0 0
  %4284 = vmatpush2.bf16.msra.mxu0 0
  %4285 = vmatprep.subr.bf16.mxu0 0
  %4286 = vmatpush2.bf16.msra.mxu0 0
  %4287 = vmatprep.subr.bf16.mxu0 0
  %4288 = vmatpush2.bf16.msra.mxu0 0
  %4289 = vmatprep.subr.bf16.mxu0 0
  %4290 = vmatpush2.bf16.msra.mxu0 0
  %4291 = vmatprep.subr.bf16.mxu0 0
  %4292 = vmatpush2.bf16.msra.mxu0 0
  %4293 = vmatprep.subr.bf16.mxu0 0
  %4294 = vmatpush2.bf16.msra.mxu0 0
  %4295 = vmatprep.subr.bf16.mxu0 0
  %4296 = vmatpush2.bf16.msra.mxu0 0
  %4297 = vmatprep.subr.bf16.mxu0 0
  %4298 = vmatpush2.bf16.msra.mxu0 0
  %4299 = vmatprep.mubr.bf16.mxu0 0
  %4300 = vmatmul.mubr.bf16.gmra.mxu0 %v4265
  %v4301 = vpop.f32.mrf.mxu0
  %v4302 = vadd.f32 0.0, %v4301
  %v4303 = vpop.f32.mrf.mxu0
  %v4304 = vpop.f32.mrf.mxu0
  %v4305 = vadd.f32 0.0, %v4304
  %v4306 = vpop.f32.mrf.mxu0
  %4307 = vdwg.mxu0
  %v4309 = vsel %vm1290, %v4210, 0
  %4311 = vmatprep.subr.bf16.mxu0 0
  %4312 = vmatpush1.bf16.msra.mxu0 0
  %4313 = vmatprep.subr.bf16.mxu0 0
  %4314 = vmatpush1.bf16.msra.mxu0 0
  %4315 = vmatprep.subr.bf16.mxu0 0
  %4316 = vmatpush1.bf16.msra.mxu0 0
  %4317 = vmatprep.subr.bf16.mxu0 0
  %4318 = vmatpush1.bf16.msra.mxu0 0
  %4319 = vmatprep.subr.bf16.mxu0 0
  %4320 = vmatpush1.bf16.msra.mxu0 0
  %4321 = vmatprep.subr.bf16.mxu0 0
  %4322 = vmatpush1.bf16.msra.mxu0 0
  %4323 = vmatprep.subr.bf16.mxu0 0
  %4324 = vmatpush1.bf16.msra.mxu0 0
  %4325 = vmatprep.subr.bf16.mxu0 0
  %4326 = vmatpush1.bf16.msra.mxu0 %v3307
  %4327 = vmatprep.subr.bf16.mxu0 0
  %4328 = vmatpush2.bf16.msra.mxu0 0
  %4329 = vmatprep.subr.bf16.mxu0 0
  %4330 = vmatpush2.bf16.msra.mxu0 0
  %4331 = vmatprep.subr.bf16.mxu0 0
  %4332 = vmatpush2.bf16.msra.mxu0 0
  %4333 = vmatprep.subr.bf16.mxu0 0
  %4334 = vmatpush2.bf16.msra.mxu0 0
  %4335 = vmatprep.subr.bf16.mxu0 0
  %4336 = vmatpush2.bf16.msra.mxu0 0
  %4337 = vmatprep.subr.bf16.mxu0 0
  %4338 = vmatpush2.bf16.msra.mxu0 0
  %4339 = vmatprep.subr.bf16.mxu0 0
  %4340 = vmatpush2.bf16.msra.mxu0 0
  %4341 = vmatprep.subr.bf16.mxu0 0
  %4342 = vmatpush2.bf16.msra.mxu0 0
  %4343 = vmatprep.mubr.bf16.mxu0 0
  %4344 = vmatmul.mubr.bf16.gmra.mxu0 %v4309
  %v4345 = vpop.f32.mrf.mxu0
  %v4346 = vadd.f32 0.0, %v4345
  %v4347 = vpop.f32.mrf.mxu0
  %v4348 = vpop.f32.mrf.mxu0
  %v4349 = vadd.f32 0.0, %v4348
  %v4350 = vpop.f32.mrf.mxu0
  %4351 = vdwg.mxu0
  %v4353 = vsel %vm1290, %v4211, 0
  %4355 = vmatprep.subr.bf16.mxu0 0
  %4356 = vmatpush1.bf16.msra.mxu0 0
  %4357 = vmatprep.subr.bf16.mxu0 0
  %4358 = vmatpush1.bf16.msra.mxu0 0
  %4359 = vmatprep.subr.bf16.mxu0 0
  %4360 = vmatpush1.bf16.msra.mxu0 0
  %4361 = vmatprep.subr.bf16.mxu0 0
  %4362 = vmatpush1.bf16.msra.mxu0 0
  %4363 = vmatprep.subr.bf16.mxu0 0
  %4364 = vmatpush1.bf16.msra.mxu0 0
  %4365 = vmatprep.subr.bf16.mxu0 0
  %4366 = vmatpush1.bf16.msra.mxu0 0
  %4367 = vmatprep.subr.bf16.mxu0 0
  %4368 = vmatpush1.bf16.msra.mxu0 0
  %4369 = vmatprep.subr.bf16.mxu0 0
  %4370 = vmatpush1.bf16.msra.mxu0 %v3310
  %4371 = vmatprep.subr.bf16.mxu0 0
  %4372 = vmatpush2.bf16.msra.mxu0 0
  %4373 = vmatprep.subr.bf16.mxu0 0
  %4374 = vmatpush2.bf16.msra.mxu0 0
  %4375 = vmatprep.subr.bf16.mxu0 0
  %4376 = vmatpush2.bf16.msra.mxu0 0
  %4377 = vmatprep.subr.bf16.mxu0 0
  %4378 = vmatpush2.bf16.msra.mxu0 0
  %4379 = vmatprep.subr.bf16.mxu0 0
  %4380 = vmatpush2.bf16.msra.mxu0 0
  %4381 = vmatprep.subr.bf16.mxu0 0
  %4382 = vmatpush2.bf16.msra.mxu0 0
  %4383 = vmatprep.subr.bf16.mxu0 0
  %4384 = vmatpush2.bf16.msra.mxu0 0
  %4385 = vmatprep.subr.bf16.mxu0 0
  %4386 = vmatpush2.bf16.msra.mxu0 0
  %4387 = vmatprep.mubr.bf16.mxu0 0
  %4388 = vmatmul.mubr.bf16.gmra.mxu0 %v4353
  %v4389 = vpop.f32.mrf.mxu0
  %v4390 = vadd.f32 0.0, %v4389
  %v4391 = vpop.f32.mrf.mxu0
  %v4392 = vpop.f32.mrf.mxu0
  %v4393 = vadd.f32 0.0, %v4392
  %v4394 = vpop.f32.mrf.mxu0
  %4395 = vdwg.mxu0
  %v4397 = vsel %vm1290, %v4212, 0
  %4399 = vmatprep.subr.bf16.mxu0 0
  %4400 = vmatpush1.bf16.msra.mxu0 0
  %4401 = vmatprep.subr.bf16.mxu0 0
  %4402 = vmatpush1.bf16.msra.mxu0 0
  %4403 = vmatprep.subr.bf16.mxu0 0
  %4404 = vmatpush1.bf16.msra.mxu0 0
  %4405 = vmatprep.subr.bf16.mxu0 0
  %4406 = vmatpush1.bf16.msra.mxu0 0
  %4407 = vmatprep.subr.bf16.mxu0 0
  %4408 = vmatpush1.bf16.msra.mxu0 0
  %4409 = vmatprep.subr.bf16.mxu0 0
  %4410 = vmatpush1.bf16.msra.mxu0 0
  %4411 = vmatprep.subr.bf16.mxu0 0
  %4412 = vmatpush1.bf16.msra.mxu0 0
  %4413 = vmatprep.subr.bf16.mxu0 0
  %4414 = vmatpush1.bf16.msra.mxu0 %v3258
  %4415 = vmatprep.subr.bf16.mxu0 0
  %4416 = vmatpush2.bf16.msra.mxu0 0
  %4417 = vmatprep.subr.bf16.mxu0 0
  %4418 = vmatpush2.bf16.msra.mxu0 0
  %4419 = vmatprep.subr.bf16.mxu0 0
  %4420 = vmatpush2.bf16.msra.mxu0 0
  %4421 = vmatprep.subr.bf16.mxu0 0
  %4422 = vmatpush2.bf16.msra.mxu0 0
  %4423 = vmatprep.subr.bf16.mxu0 0
  %4424 = vmatpush2.bf16.msra.mxu0 0
  %4425 = vmatprep.subr.bf16.mxu0 0
  %4426 = vmatpush2.bf16.msra.mxu0 0
  %4427 = vmatprep.subr.bf16.mxu0 0
  %4428 = vmatpush2.bf16.msra.mxu0 0
  %4429 = vmatprep.subr.bf16.mxu0 0
  %4430 = vmatpush2.bf16.msra.mxu0 0
  %4431 = vmatprep.mubr.bf16.mxu0 0
  %4432 = vmatmul.mubr.bf16.gmra.mxu0 %v4397
  %v4433 = vpop.f32.mrf.mxu0
  %v4434 = vadd.f32 0.0, %v4433
  %v4435 = vpop.f32.mrf.mxu0
  %v4436 = vpop.f32.mrf.mxu0
  %v4437 = vadd.f32 0.0, %v4436
  %v4438 = vpop.f32.mrf.mxu0
  %4439 = vdwg.mxu0
  %v4441 = vsel %vm1290, %v4213, 0
  %4443 = vmatprep.subr.bf16.mxu0 0
  %4444 = vmatpush1.bf16.msra.mxu0 0
  %4445 = vmatprep.subr.bf16.mxu0 0
  %4446 = vmatpush1.bf16.msra.mxu0 0
  %4447 = vmatprep.subr.bf16.mxu0 0
  %4448 = vmatpush1.bf16.msra.mxu0 0
  %4449 = vmatprep.subr.bf16.mxu0 0
  %4450 = vmatpush1.bf16.msra.mxu0 0
  %4451 = vmatprep.subr.bf16.mxu0 0
  %4452 = vmatpush1.bf16.msra.mxu0 0
  %4453 = vmatprep.subr.bf16.mxu0 0
  %4454 = vmatpush1.bf16.msra.mxu0 0
  %4455 = vmatprep.subr.bf16.mxu0 0
  %4456 = vmatpush1.bf16.msra.mxu0 0
  %4457 = vmatprep.subr.bf16.mxu0 0
  %4458 = vmatpush1.bf16.msra.mxu0 %v3314
  %4459 = vmatprep.subr.bf16.mxu0 0
  %4460 = vmatpush2.bf16.msra.mxu0 0
  %4461 = vmatprep.subr.bf16.mxu0 0
  %4462 = vmatpush2.bf16.msra.mxu0 0
  %4463 = vmatprep.subr.bf16.mxu0 0
  %4464 = vmatpush2.bf16.msra.mxu0 0
  %4465 = vmatprep.subr.bf16.mxu0 0
  %4466 = vmatpush2.bf16.msra.mxu0 0
  %4467 = vmatprep.subr.bf16.mxu0 0
  %4468 = vmatpush2.bf16.msra.mxu0 0
  %4469 = vmatprep.subr.bf16.mxu0 0
  %4470 = vmatpush2.bf16.msra.mxu0 0
  %4471 = vmatprep.subr.bf16.mxu0 0
  %4472 = vmatpush2.bf16.msra.mxu0 0
  %4473 = vmatprep.subr.bf16.mxu0 0
  %4474 = vmatpush2.bf16.msra.mxu0 0
  %4475 = vmatprep.mubr.bf16.mxu0 0
  %4476 = vmatmul.mubr.bf16.gmra.mxu0 %v4441
  %v4477 = vpop.f32.mrf.mxu0
  %v4478 = vadd.f32 0.0, %v4477
  %v4479 = vpop.f32.mrf.mxu0
  %v4480 = vpop.f32.mrf.mxu0
  %v4481 = vadd.f32 0.0, %v4480
  %v4482 = vpop.f32.mrf.mxu0
  %4483 = vdwg.mxu0
  %v4485 = vsel %vm1290, %v4214, 0
  %4487 = vmatprep.subr.bf16.mxu0 0
  %4488 = vmatpush1.bf16.msra.mxu0 0
  %4489 = vmatprep.subr.bf16.mxu0 0
  %4490 = vmatpush1.bf16.msra.mxu0 0
  %4491 = vmatprep.subr.bf16.mxu0 0
  %4492 = vmatpush1.bf16.msra.mxu0 0
  %4493 = vmatprep.subr.bf16.mxu0 0
  %4494 = vmatpush1.bf16.msra.mxu0 0
  %4495 = vmatprep.subr.bf16.mxu0 0
  %4496 = vmatpush1.bf16.msra.mxu0 0
  %4497 = vmatprep.subr.bf16.mxu0 0
  %4498 = vmatpush1.bf16.msra.mxu0 0
  %4499 = vmatprep.subr.bf16.mxu0 0
  %4500 = vmatpush1.bf16.msra.mxu0 0
  %4501 = vmatprep.subr.bf16.mxu0 0
  %4502 = vmatpush1.bf16.msra.mxu0 %v3317
  %4503 = vmatprep.subr.bf16.mxu0 0
  %4504 = vmatpush2.bf16.msra.mxu0 0
  %4505 = vmatprep.subr.bf16.mxu0 0
  %4506 = vmatpush2.bf16.msra.mxu0 0
  %4507 = vmatprep.subr.bf16.mxu0 0
  %4508 = vmatpush2.bf16.msra.mxu0 0
  %4509 = vmatprep.subr.bf16.mxu0 0
  %4510 = vmatpush2.bf16.msra.mxu0 0
  %4511 = vmatprep.subr.bf16.mxu0 0
  %4512 = vmatpush2.bf16.msra.mxu0 0
  %4513 = vmatprep.subr.bf16.mxu0 0
  %4514 = vmatpush2.bf16.msra.mxu0 0
  %4515 = vmatprep.subr.bf16.mxu0 0
  %4516 = vmatpush2.bf16.msra.mxu0 0
  %4517 = vmatprep.subr.bf16.mxu0 0
  %4518 = vmatpush2.bf16.msra.mxu0 0
  %4519 = vmatprep.mubr.bf16.mxu0 0
  %4520 = vmatmul.mubr.bf16.gmra.mxu0 %v4485
  %v4521 = vpop.f32.mrf.mxu0
  %v4522 = vadd.f32 0.0, %v4521
  %v4523 = vpop.f32.mrf.mxu0
  %v4524 = vpop.f32.mrf.mxu0
  %v4525 = vadd.f32 0.0, %v4524
  %v4526 = vpop.f32.mrf.mxu0
  %4527 = vdwg.mxu0
  %v4529 = vsel %vm1290, %v4215, 0
  %4531 = vmatprep.subr.bf16.mxu0 0
  %4532 = vmatpush1.bf16.msra.mxu0 0
  %4533 = vmatprep.subr.bf16.mxu0 0
  %4534 = vmatpush1.bf16.msra.mxu0 0
  %4535 = vmatprep.subr.bf16.mxu0 0
  %4536 = vmatpush1.bf16.msra.mxu0 0
  %4537 = vmatprep.subr.bf16.mxu0 0
  %4538 = vmatpush1.bf16.msra.mxu0 0
  %4539 = vmatprep.subr.bf16.mxu0 0
  %4540 = vmatpush1.bf16.msra.mxu0 0
  %4541 = vmatprep.subr.bf16.mxu0 0
  %4542 = vmatpush1.bf16.msra.mxu0 0
  %4543 = vmatprep.subr.bf16.mxu0 0
  %4544 = vmatpush1.bf16.msra.mxu0 0
  %4545 = vmatprep.subr.bf16.mxu0 0
  %4546 = vmatpush1.bf16.msra.mxu0 %v3320
  %4547 = vmatprep.subr.bf16.mxu0 0
  %4548 = vmatpush2.bf16.msra.mxu0 0
  %4549 = vmatprep.subr.bf16.mxu0 0
  %4550 = vmatpush2.bf16.msra.mxu0 0
  %4551 = vmatprep.subr.bf16.mxu0 0
  %4552 = vmatpush2.bf16.msra.mxu0 0
  %4553 = vmatprep.subr.bf16.mxu0 0
  %4554 = vmatpush2.bf16.msra.mxu0 0
  %4555 = vmatprep.subr.bf16.mxu0 0
  %4556 = vmatpush2.bf16.msra.mxu0 0
  %4557 = vmatprep.subr.bf16.mxu0 0
  %4558 = vmatpush2.bf16.msra.mxu0 0
  %4559 = vmatprep.subr.bf16.mxu0 0
  %4560 = vmatpush2.bf16.msra.mxu0 0
  %4561 = vmatprep.subr.bf16.mxu0 0
  %4562 = vmatpush2.bf16.msra.mxu0 0
  %4563 = vmatprep.mubr.bf16.mxu0 0
  %4564 = vmatmul.mubr.bf16.gmra.mxu0 %v4529
  %v4565 = vpop.f32.mrf.mxu0
  %v4566 = vadd.f32 0.0, %v4565
  %v4567 = vpop.f32.mrf.mxu0
  %v4568 = vpop.f32.mrf.mxu0
  %v4569 = vadd.f32 0.0, %v4568
  %v4570 = vpop.f32.mrf.mxu0
  %4571 = vdwg.mxu0
  %v4573 = vsel %vm1290, %v4216, 0
  %4575 = vmatprep.subr.bf16.mxu0 0
  %4576 = vmatpush1.bf16.msra.mxu0 0
  %4577 = vmatprep.subr.bf16.mxu0 0
  %4578 = vmatpush1.bf16.msra.mxu0 0
  %4579 = vmatprep.subr.bf16.mxu0 0
  %4580 = vmatpush1.bf16.msra.mxu0 0
  %4581 = vmatprep.subr.bf16.mxu0 0
  %4582 = vmatpush1.bf16.msra.mxu0 0
  %4583 = vmatprep.subr.bf16.mxu0 0
  %4584 = vmatpush1.bf16.msra.mxu0 0
  %4585 = vmatprep.subr.bf16.mxu0 0
  %4586 = vmatpush1.bf16.msra.mxu0 0
  %4587 = vmatprep.subr.bf16.mxu0 0
  %4588 = vmatpush1.bf16.msra.mxu0 0
  %4589 = vmatprep.subr.bf16.mxu0 0
  %4590 = vmatpush1.bf16.msra.mxu0 %v3259
  %4591 = vmatprep.subr.bf16.mxu0 0
  %4592 = vmatpush2.bf16.msra.mxu0 0
  %4593 = vmatprep.subr.bf16.mxu0 0
  %4594 = vmatpush2.bf16.msra.mxu0 0
  %4595 = vmatprep.subr.bf16.mxu0 0
  %4596 = vmatpush2.bf16.msra.mxu0 0
  %4597 = vmatprep.subr.bf16.mxu0 0
  %4598 = vmatpush2.bf16.msra.mxu0 0
  %4599 = vmatprep.subr.bf16.mxu0 0
  %4600 = vmatpush2.bf16.msra.mxu0 0
  %4601 = vmatprep.subr.bf16.mxu0 0
  %4602 = vmatpush2.bf16.msra.mxu0 0
  %4603 = vmatprep.subr.bf16.mxu0 0
  %4604 = vmatpush2.bf16.msra.mxu0 0
  %4605 = vmatprep.subr.bf16.mxu0 0
  %4606 = vmatpush2.bf16.msra.mxu0 0
  %4607 = vmatprep.mubr.bf16.mxu0 0
  %4608 = vmatmul.mubr.bf16.gmra.mxu0 %v4573
  %v4609 = vpop.f32.mrf.mxu0
  %v4610 = vadd.f32 0.0, %v4609
  %v4611 = vpop.f32.mrf.mxu0
  %v4612 = vpop.f32.mrf.mxu0
  %v4613 = vadd.f32 0.0, %v4612
  %v4614 = vpop.f32.mrf.mxu0
  %4615 = vdwg.mxu0
  %v4617 = vsel %vm1290, %v4217, 0
  %4619 = vmatprep.subr.bf16.mxu0 0
  %4620 = vmatpush1.bf16.msra.mxu0 0
  %4621 = vmatprep.subr.bf16.mxu0 0
  %4622 = vmatpush1.bf16.msra.mxu0 0
  %4623 = vmatprep.subr.bf16.mxu0 0
  %4624 = vmatpush1.bf16.msra.mxu0 0
  %4625 = vmatprep.subr.bf16.mxu0 0
  %4626 = vmatpush1.bf16.msra.mxu0 0
  %4627 = vmatprep.subr.bf16.mxu0 0
  %4628 = vmatpush1.bf16.msra.mxu0 0
  %4629 = vmatprep.subr.bf16.mxu0 0
  %4630 = vmatpush1.bf16.msra.mxu0 0
  %4631 = vmatprep.subr.bf16.mxu0 0
  %4632 = vmatpush1.bf16.msra.mxu0 0
  %4633 = vmatprep.subr.bf16.mxu0 0
  %4634 = vmatpush1.bf16.msra.mxu0 %v3324
  %4635 = vmatprep.subr.bf16.mxu0 0
  %4636 = vmatpush2.bf16.msra.mxu0 0
  %4637 = vmatprep.subr.bf16.mxu0 0
  %4638 = vmatpush2.bf16.msra.mxu0 0
  %4639 = vmatprep.subr.bf16.mxu0 0
  %4640 = vmatpush2.bf16.msra.mxu0 0
  %4641 = vmatprep.subr.bf16.mxu0 0
  %4642 = vmatpush2.bf16.msra.mxu0 0
  %4643 = vmatprep.subr.bf16.mxu0 0
  %4644 = vmatpush2.bf16.msra.mxu0 0
  %4645 = vmatprep.subr.bf16.mxu0 0
  %4646 = vmatpush2.bf16.msra.mxu0 0
  %4647 = vmatprep.subr.bf16.mxu0 0
  %4648 = vmatpush2.bf16.msra.mxu0 0
  %4649 = vmatprep.subr.bf16.mxu0 0
  %4650 = vmatpush2.bf16.msra.mxu0 0
  %4651 = vmatprep.mubr.bf16.mxu0 0
  %4652 = vmatmul.mubr.bf16.gmra.mxu0 %v4617
  %v4653 = vpop.f32.mrf.mxu0
  %v4654 = vadd.f32 0.0, %v4653
  %v4655 = vpop.f32.mrf.mxu0
  %v4656 = vpop.f32.mrf.mxu0
  %v4657 = vadd.f32 0.0, %v4656
  %v4658 = vpop.f32.mrf.mxu0
  %4659 = vdwg.mxu0
  %v4661 = vsel %vm1290, %v4218, 0
  %4663 = vmatprep.subr.bf16.mxu0 0
  %4664 = vmatpush1.bf16.msra.mxu0 0
  %4665 = vmatprep.subr.bf16.mxu0 0
  %4666 = vmatpush1.bf16.msra.mxu0 0
  %4667 = vmatprep.subr.bf16.mxu0 0
  %4668 = vmatpush1.bf16.msra.mxu0 0
  %4669 = vmatprep.subr.bf16.mxu0 0
  %4670 = vmatpush1.bf16.msra.mxu0 0
  %4671 = vmatprep.subr.bf16.mxu0 0
  %4672 = vmatpush1.bf16.msra.mxu0 0
  %4673 = vmatprep.subr.bf16.mxu0 0
  %4674 = vmatpush1.bf16.msra.mxu0 0
  %4675 = vmatprep.subr.bf16.mxu0 0
  %4676 = vmatpush1.bf16.msra.mxu0 0
  %4677 = vmatprep.subr.bf16.mxu0 0
  %4678 = vmatpush1.bf16.msra.mxu0 %v3327
  %4679 = vmatprep.subr.bf16.mxu0 0
  %4680 = vmatpush2.bf16.msra.mxu0 0
  %4681 = vmatprep.subr.bf16.mxu0 0
  %4682 = vmatpush2.bf16.msra.mxu0 0
  %4683 = vmatprep.subr.bf16.mxu0 0
  %4684 = vmatpush2.bf16.msra.mxu0 0
  %4685 = vmatprep.subr.bf16.mxu0 0
  %4686 = vmatpush2.bf16.msra.mxu0 0
  %4687 = vmatprep.subr.bf16.mxu0 0
  %4688 = vmatpush2.bf16.msra.mxu0 0
  %4689 = vmatprep.subr.bf16.mxu0 0
  %4690 = vmatpush2.bf16.msra.mxu0 0
  %4691 = vmatprep.subr.bf16.mxu0 0
  %4692 = vmatpush2.bf16.msra.mxu0 0
  %4693 = vmatprep.subr.bf16.mxu0 0
  %4694 = vmatpush2.bf16.msra.mxu0 0
  %4695 = vmatprep.mubr.bf16.mxu0 0
  %4696 = vmatmul.mubr.bf16.gmra.mxu0 %v4661
  %v4697 = vpop.f32.mrf.mxu0
  %v4698 = vadd.f32 0.0, %v4697
  %v4699 = vpop.f32.mrf.mxu0
  %v4700 = vpop.f32.mrf.mxu0
  %v4701 = vadd.f32 0.0, %v4700
  %v4702 = vpop.f32.mrf.mxu0
  %4703 = vdwg.mxu0
  %v4705 = vsel %vm1290, %v4219, 0
  %4707 = vmatprep.subr.bf16.mxu0 0
  %4708 = vmatpush1.bf16.msra.mxu0 0
  %4709 = vmatprep.subr.bf16.mxu0 0
  %4710 = vmatpush1.bf16.msra.mxu0 0
  %4711 = vmatprep.subr.bf16.mxu0 0
  %4712 = vmatpush1.bf16.msra.mxu0 0
  %4713 = vmatprep.subr.bf16.mxu0 0
  %4714 = vmatpush1.bf16.msra.mxu0 0
  %4715 = vmatprep.subr.bf16.mxu0 0
  %4716 = vmatpush1.bf16.msra.mxu0 0
  %4717 = vmatprep.subr.bf16.mxu0 0
  %4718 = vmatpush1.bf16.msra.mxu0 0
  %4719 = vmatprep.subr.bf16.mxu0 0
  %4720 = vmatpush1.bf16.msra.mxu0 0
  %4721 = vmatprep.subr.bf16.mxu0 0
  %4722 = vmatpush1.bf16.msra.mxu0 %v3330
  %4723 = vmatprep.subr.bf16.mxu0 0
  %4724 = vmatpush2.bf16.msra.mxu0 0
  %4725 = vmatprep.subr.bf16.mxu0 0
  %4726 = vmatpush2.bf16.msra.mxu0 0
  %4727 = vmatprep.subr.bf16.mxu0 0
  %4728 = vmatpush2.bf16.msra.mxu0 0
  %4729 = vmatprep.subr.bf16.mxu0 0
  %4730 = vmatpush2.bf16.msra.mxu0 0
  %4731 = vmatprep.subr.bf16.mxu0 0
  %4732 = vmatpush2.bf16.msra.mxu0 0
  %4733 = vmatprep.subr.bf16.mxu0 0
  %4734 = vmatpush2.bf16.msra.mxu0 0
  %4735 = vmatprep.subr.bf16.mxu0 0
  %4736 = vmatpush2.bf16.msra.mxu0 0
  %4737 = vmatprep.subr.bf16.mxu0 0
  %4738 = vmatpush2.bf16.msra.mxu0 0
  %4739 = vmatprep.mubr.bf16.mxu0 0
  %4740 = vmatmul.mubr.bf16.gmra.mxu0 %v4705
  %v4741 = vpop.f32.mrf.mxu0
  %v4742 = vadd.f32 0.0, %v4741
  %v4743 = vpop.f32.mrf.mxu0
  %v4744 = vpop.f32.mrf.mxu0
  %v4745 = vadd.f32 0.0, %v4744
  %v4746 = vpop.f32.mrf.mxu0
  %4747 = vdwg.mxu0
  %v4748 = vadd.f32 %v4258, %v4302
  %v4749 = vadd.f32 %v4261, %v4305
  %v4750 = vadd.f32 %v4748, %v4346
  %v4751 = vadd.f32 %v4749, %v4349
  %v4752 = vadd.f32 %v4750, %v4390
  %v4753 = vadd.f32 %v4751, %v4393
  %v4754 = vmul.f32 %v4752, 0.25
  %v4755 = vmul.f32 %v4753, 0.25
  %v4756 = vadd.f32 %v4754, %v3245
  %v4757 = vadd.f32 %v4755, %v3249
  %v4758 = vadd.f32 %v4434, %v4478
  %v4759 = vadd.f32 %v4437, %v4481
  %v4760 = vadd.f32 %v4758, %v4522
  %v4761 = vadd.f32 %v4759, %v4525
  %v4762 = vadd.f32 %v4760, %v4566
  %v4763 = vadd.f32 %v4761, %v4569
  %v4764 = vmul.f32 %v4762, 0.25
  %v4765 = vmul.f32 %v4763, 0.25
  %4768 = vrot.lane.b32.xlu0 %v3245, 96
  %v4769 = vpop.permute.xlu0 %4768
  %4770 = vrot.lane.b32.xlu0 %v3249, 96
  %v4771 = vpop.permute.xlu0 %4770
  %v4774 = vadd.f32 %v4764, %v4769
  %v4775 = vadd.f32 %v4765, %v4771
  %v4776 = vadd.f32 %v4610, %v4654
  %v4777 = vadd.f32 %v4613, %v4657
  %v4778 = vadd.f32 %v4776, %v4698
  %v4779 = vadd.f32 %v4777, %v4701
  %v4780 = vadd.f32 %v4778, %v4742
  %v4781 = vadd.f32 %v4779, %v4745
  %v4782 = vmul.f32 %v4780, 0.25
  %v4783 = vmul.f32 %v4781, 0.25
  %4784 = vrot.lane.b32.xlu0 %v3245, 64
  %v4785 = vpop.permute.xlu0 %4784
  %4786 = vrot.lane.b32.xlu0 %v3249, 64
  %v4787 = vpop.permute.xlu0 %4786
  %v4790 = vadd.f32 %v4782, %v4785
  %v4791 = vadd.f32 %v4783, %v4787
  %v4792 = vpack.c.bf16 %v4757, %v4756
  %v4793 = vpack.c.bf16 %v4775, %v4774
  %v4794 = vpack.c.bf16 %v4791, %v4790
  %v4799 = vunpack.c.l.b16 %v41
  %v4800 = vunpack.c.l.b16 %v42
  %v4801 = vunpack.c.l.b16 %v43
  %v4802 = vunpack.c.l.b16 %v44
  %v4803 = vpack.c.b16 %v4799, %v2455
  %v4804 = vpack.c.b16 %v4801, %v4800
  %v4805 = vpack.c.b16 %v4802, %v4802
  %v4807 = vshrl.u32 %v4803, 16
  %v4809 = vrot.slane %v4807, 1
  %v4810 = vshll.u32 %v4803, 16
  %v4812 = vrot.slane %v4810, 2
  %v4813 = vor.u32 %v4809, %v4812
  %v4815 = vshrl.u32 %v4804, 16
  %v4817 = vrot.slane %v4815, 1
  %v4818 = vshll.u32 %v4804, 16
  %v4820 = vrot.slane %v4818, 2
  %v4821 = vor.u32 %v4817, %v4820
  %v4822 = vsel %vm2459, %v4813, %v4821
  %v4824 = vshrl.u32 %v4805, 16
  %v4826 = vrot.slane %v4824, 1
  %v4827 = vshll.u32 %v4805, 16
  %v4829 = vrot.slane %v4827, 2
  %v4830 = vor.u32 %v4826, %v4829
  %v4831 = vsel %vm2459, %v4821, %v4830
  %4834 = vrot.lane.b32.xlu0 %v3245, 32
  %v4835 = vpop.permute.xlu0 %4834
  %4836 = vrot.lane.b32.xlu0 %v3249, 32
  %v4837 = vpop.permute.xlu0 %4836
  %v4841 = vsel %vm180, %v4792, 0
  %v4844 = vsel %vm180, %v4793, 0
  %v4847 = vsel %vm180, %v4794, 0
  %4849 = vmatprep.subr.bf16.mxu0 0
  %4850 = vmatpush1.bf16.msra.mxu0 0
  %4851 = vmatprep.subr.bf16.mxu0 0
  %4852 = vmatpush1.bf16.msra.mxu0 0
  %4853 = vmatprep.subr.bf16.mxu0 0
  %4854 = vmatpush1.bf16.msra.mxu0 0
  %4855 = vmatprep.subr.bf16.mxu0 0
  %4856 = vmatpush1.bf16.msra.mxu0 0
  %4857 = vmatprep.subr.bf16.mxu0 0
  %4858 = vmatpush1.bf16.msra.mxu0 0
  %4859 = vmatprep.subr.bf16.mxu0 0
  %4860 = vmatpush1.bf16.msra.mxu0 0
  %4861 = vmatprep.subr.bf16.mxu0 0
  %4862 = vmatpush1.bf16.msra.mxu0 %v4831
  %4863 = vmatprep.subr.bf16.mxu0 0
  %4864 = vmatpush1.bf16.msra.mxu0 %v4822
  %4865 = vmatprep.subr.bf16.mxu0 0
  %4866 = vmatpush2.bf16.msra.mxu0 0
  %4867 = vmatprep.subr.bf16.mxu0 0
  %4868 = vmatpush2.bf16.msra.mxu0 0
  %4869 = vmatprep.subr.bf16.mxu0 0
  %4870 = vmatpush2.bf16.msra.mxu0 0
  %4871 = vmatprep.subr.bf16.mxu0 0
  %4872 = vmatpush2.bf16.msra.mxu0 0
  %4873 = vmatprep.subr.bf16.mxu0 0
  %4874 = vmatpush2.bf16.msra.mxu0 0
  %4875 = vmatprep.subr.bf16.mxu0 0
  %4876 = vmatpush2.bf16.msra.mxu0 0
  %4877 = vmatprep.subr.bf16.mxu0 0
  %4878 = vmatpush2.bf16.msra.mxu0 0
  %4879 = vmatprep.subr.bf16.mxu0 0
  %4880 = vmatpush2.bf16.msra.mxu0 0
  %4881 = vmatprep.mubr.bf16.mxu0 0
  %4882 = vmatmul.mubr.bf16.gmra.mxu0 %v4841
  %v4883 = vpop.f32.mrf.mxu0
  %v4884 = vadd.f32 %v4835, %v4883
  %v4885 = vpop.f32.mrf.mxu0
  %v4886 = vpop.f32.mrf.mxu0
  %v4887 = vadd.f32 %v4837, %v4886
  %v4888 = vpop.f32.mrf.mxu0
  %4889 = vmatprep.mubr.bf16.mxu0 0
  %4890 = vmatmul.mubr.bf16.gmra.mxu0 %v4844
  %v4891 = vpop.f32.mrf.mxu0
  %v4892 = vadd.f32 %v4835, %v4891
  %v4893 = vpop.f32.mrf.mxu0
  %v4894 = vpop.f32.mrf.mxu0
  %v4895 = vadd.f32 %v4837, %v4894
  %v4896 = vpop.f32.mrf.mxu0
  %4897 = vmatprep.mubr.bf16.mxu0 0
  %4898 = vmatmul.mubr.bf16.gmra.mxu0 %v4847
  %v4899 = vpop.f32.mrf.mxu0
  %v4900 = vadd.f32 %v4835, %v4899
  %v4901 = vpop.f32.mrf.mxu0
  %v4902 = vpop.f32.mrf.mxu0
  %v4903 = vadd.f32 %v4837, %v4902
  %v4904 = vpop.f32.mrf.mxu0
  %4905 = vdwg.mxu0
  %v4906 = vxor.u32 %v4884, 2147483648
  %v4907 = vxor.u32 %v4887, 2147483648
  %v4908 = vxor.u32 %v4892, 2147483648
  %v4909 = vxor.u32 %v4895, 2147483648
  %v4910 = vxor.u32 %v4900, 2147483648
  %v4911 = vxor.u32 %v4903, 2147483648
  %v4912 = vmul.f32 %v4906, 1.442695
  %v4913 = vpow.pop %v4912
  %v4914 = vmul.f32 %v4907, 1.442695
  %v4915 = vpow.pop %v4914
  %v4916 = vmul.f32 %v4908, 1.442695
  %v4917 = vpow.pop %v4916
  %v4918 = vmul.f32 %v4909, 1.442695
  %v4919 = vpow.pop %v4918
  %v4920 = vmul.f32 %v4910, 1.442695
  %v4921 = vpow.pop %v4920
  %v4922 = vmul.f32 %v4911, 1.442695
  %v4923 = vpow.pop %v4922
  %v4924 = vadd.f32 %v4913, 1.0
  %v4925 = vadd.f32 %v4915, 1.0
  %v4926 = vadd.f32 %v4917, 1.0
  %v4927 = vadd.f32 %v4919, 1.0
  %v4928 = vadd.f32 %v4921, 1.0
  %v4929 = vadd.f32 %v4923, 1.0
  %v4930 = vrcp.pop %v4924
  %v4931 = vmul.f32 1.0, %v4930
  %v4932 = vrcp.pop %v4925
  %v4933 = vmul.f32 1.0, %v4932
  %v4934 = vrcp.pop %v4926
  %v4935 = vmul.f32 1.0, %v4934
  %v4936 = vrcp.pop %v4927
  %v4937 = vmul.f32 1.0, %v4936
  %v4938 = vrcp.pop %v4928
  %v4939 = vmul.f32 1.0, %v4938
  %v4940 = vrcp.pop %v4929
  %v4941 = vmul.f32 1.0, %v4940
  %v4942 = vtanh.pop %v4756
  %v4943 = vtanh.pop %v4757
  %v4944 = vtanh.pop %v4774
  %v4945 = vtanh.pop %v4775
  %v4946 = vtanh.pop %v4790
  %v4947 = vtanh.pop %v4791
  %v4948 = vmul.f32 %v4942, %v4931
  %v4949 = vmul.f32 %v4943, %v4933
  %v4950 = vmul.f32 %v4944, %v4935
  %v4951 = vmul.f32 %v4945, %v4937
  %v4952 = vmul.f32 %v4946, %v4939
  %v4953 = vmul.f32 %v4947, %v4941
  %v4954 = vsub.f32 1.0, %v4931
  %v4955 = vsub.f32 1.0, %v4933
  %v4956 = vsub.f32 1.0, %v4935
  %v4957 = vsub.f32 1.0, %v4937
  %v4958 = vsub.f32 1.0, %v4939
  %v4959 = vsub.f32 1.0, %v4941
  %v4960 = vmul.f32 %v2630, %v4954
  %v4961 = vmul.f32 %v2631, %v4955
  %v4962 = vmul.f32 %v2630, %v4956
  %v4963 = vmul.f32 %v2631, %v4957
  %v4964 = vmul.f32 %v2630, %v4958
  %v4965 = vmul.f32 %v2631, %v4959
  %v4966 = vadd.f32 %v4948, %v4960
  %v4967 = vadd.f32 %v4949, %v4961
  %v4968 = vadd.f32 %v4950, %v4962
  %v4969 = vadd.f32 %v4951, %v4963
  %v4970 = vadd.f32 %v4952, %v4964
  %v4971 = vadd.f32 %v4953, %v4965
  %v4972 = vpack.c.bf16 %v4967, %v4966
  %v4973 = vpack.c.bf16 %v4969, %v4968
  %v4974 = vpack.c.bf16 %v4971, %v4970
  %v4975 = vunpack.c.l.bf16 %v48
  %v4976 = vlaneseq
  %v4977 = vshrl.u32 %v4976, 7
  %v4978 = vsub.s32 3, %v4977
  %v4979 = vrot.slane %v4975, %v4978
  %v4984 = vunpack.c.l.b16 %v45
  %v4985 = vunpack.c.l.b16 %v46
  %v4986 = vunpack.c.l.b16 %v47
  %v4987 = vunpack.c.l.b16 %v48
  %v4988 = vpack.c.b16 %v4984, %v4802
  %v4989 = vpack.c.b16 %v4986, %v4985
  %v4990 = vpack.c.b16 %v4987, %v4987
  %v4992 = vshrl.u32 %v4988, 16
  %v4994 = vrot.slane %v4992, 1
  %v4995 = vshll.u32 %v4988, 16
  %v4997 = vrot.slane %v4995, 2
  %v4998 = vor.u32 %v4994, %v4997
  %v5000 = vshrl.u32 %v4989, 16
  %v5002 = vrot.slane %v5000, 1
  %v5003 = vshll.u32 %v4989, 16
  %v5005 = vrot.slane %v5003, 2
  %v5006 = vor.u32 %v5002, %v5005
  %v5007 = vsel %vm2459, %v4998, %v5006
  %v5009 = vshrl.u32 %v4990, 16
  %v5011 = vrot.slane %v5009, 1
  %v5012 = vshll.u32 %v4990, 16
  %v5014 = vrot.slane %v5012, 2
  %v5015 = vor.u32 %v5011, %v5014
  %v5016 = vsel %vm2459, %v5006, %v5015
  %v5020 = vsel %vm180, %v4972, 0
  %v5023 = vsel %vm180, %v4973, 0
  %v5026 = vsel %vm180, %v4974, 0
  %5028 = vmatprep.subr.bf16.mxu0 0
  %5029 = vmatpush1.bf16.msra.mxu0 0
  %5030 = vmatprep.subr.bf16.mxu0 0
  %5031 = vmatpush1.bf16.msra.mxu0 0
  %5032 = vmatprep.subr.bf16.mxu0 0
  %5033 = vmatpush1.bf16.msra.mxu0 0
  %5034 = vmatprep.subr.bf16.mxu0 0
  %5035 = vmatpush1.bf16.msra.mxu0 0
  %5036 = vmatprep.subr.bf16.mxu0 0
  %5037 = vmatpush1.bf16.msra.mxu0 0
  %5038 = vmatprep.subr.bf16.mxu0 0
  %5039 = vmatpush1.bf16.msra.mxu0 0
  %5040 = vmatprep.subr.bf16.mxu0 0
  %5041 = vmatpush1.bf16.msra.mxu0 %v5016
  %5042 = vmatprep.subr.bf16.mxu0 0
  %5043 = vmatpush1.bf16.msra.mxu0 %v5007
  %5044 = vmatprep.subr.bf16.mxu0 0
  %5045 = vmatpush2.bf16.msra.mxu0 0
  %5046 = vmatprep.subr.bf16.mxu0 0
  %5047 = vmatpush2.bf16.msra.mxu0 0
  %5048 = vmatprep.subr.bf16.mxu0 0
  %5049 = vmatpush2.bf16.msra.mxu0 0
  %5050 = vmatprep.subr.bf16.mxu0 0
  %5051 = vmatpush2.bf16.msra.mxu0 0
  %5052 = vmatprep.subr.bf16.mxu0 0
  %5053 = vmatpush2.bf16.msra.mxu0 0
  %5054 = vmatprep.subr.bf16.mxu0 0
  %5055 = vmatpush2.bf16.msra.mxu0 0
  %5056 = vmatprep.subr.bf16.mxu0 0
  %5057 = vmatpush2.bf16.msra.mxu0 0
  %5058 = vmatprep.subr.bf16.mxu0 0
  %5059 = vmatpush2.bf16.msra.mxu0 0
  %5060 = vmatprep.mubr.bf16.mxu0 0
  %5061 = vmatmul.mubr.bf16.gmra.mxu0 %v5020
  %v5062 = vpop.f32.mrf.mxu0
  %v5063 = vadd.f32 %v4979, %v5062
  %v5064 = vpop.f32.mrf.mxu0
  %v5065 = vpop.f32.mrf.mxu0
  %v5066 = vadd.f32 %v4979, %v5065
  %v5067 = vpop.f32.mrf.mxu0
  %5068 = vmatprep.mubr.bf16.mxu0 0
  %5069 = vmatmul.mubr.bf16.gmra.mxu0 %v5023
  %v5070 = vpop.f32.mrf.mxu0
  %v5071 = vadd.f32 %v4979, %v5070
  %v5072 = vpop.f32.mrf.mxu0
  %v5073 = vpop.f32.mrf.mxu0
  %v5074 = vadd.f32 %v4979, %v5073
  %v5075 = vpop.f32.mrf.mxu0
  %5076 = vmatprep.mubr.bf16.mxu0 0
  %5077 = vmatmul.mubr.bf16.gmra.mxu0 %v5026
  %v5078 = vpop.f32.mrf.mxu0
  %v5079 = vadd.f32 %v4979, %v5078
  %v5080 = vpop.f32.mrf.mxu0
  %v5081 = vpop.f32.mrf.mxu0
  %v5082 = vadd.f32 %v4979, %v5081
  %v5083 = vpop.f32.mrf.mxu0
  %5084 = vdwg.mxu0
  %v5085 = vtanh.pop %v5063
  %v5086 = vtanh.pop %v5066
  %v5087 = vtanh.pop %v5071
  %v5088 = vtanh.pop %v5074
  %v5089 = vtanh.pop %v5079
  %v5090 = vtanh.pop %v5082
  %v5091 = vpack.c.bf16 %v5086, %v5085
  %v5092 = vpack.c.bf16 %v5088, %v5087
  %v5093 = vpack.c.bf16 %v5090, %v5089
  %v5098 = vunpack.c.l.b16 %v49
  %v5099 = vunpack.c.l.b16 %v50
  %v5100 = vunpack.c.l.b16 %v51
  %v5101 = vunpack.c.l.b16 %v52
  %v5102 = vpack.c.b16 %v5098, %v4987
  %v5103 = vpack.c.b16 %v5100, %v5099
  %v5104 = vpack.c.b16 %v5101, %v5101
  %vm5105 = vcmask 1045504
  %v5106 = vrot.slane %v5102, 2
  %v5107 = vrot.slane %v5103, 2
  %v5108 = vsel %vm5105, %v5106, %v5107
  %v5109 = vrot.slane %v5104, 2
  %v5110 = vsel %vm5105, %v5107, %v5109
  %v5114 = vsel %vm180, %v5091, 0
  %v5117 = vsel %vm180, %v5092, 0
  %v5120 = vsel %vm180, %v5093, 0
  %5122 = vmatprep.subr.bf16.mxu0 0
  %5123 = vmatpush1.bf16.msra.mxu0 0
  %5124 = vmatprep.subr.bf16.mxu0 0
  %5125 = vmatpush1.bf16.msra.mxu0 0
  %5126 = vmatprep.subr.bf16.mxu0 0
  %5127 = vmatpush1.bf16.msra.mxu0 0
  %5128 = vmatprep.subr.bf16.mxu0 0
  %5129 = vmatpush1.bf16.msra.mxu0 0
  %5130 = vmatprep.subr.bf16.mxu0 0
  %5131 = vmatpush1.bf16.msra.mxu0 0
  %5132 = vmatprep.subr.bf16.mxu0 0
  %5133 = vmatpush1.bf16.msra.mxu0 0
  %5134 = vmatprep.subr.bf16.mxu0 0
  %5135 = vmatpush1.bf16.msra.mxu0 %v5110
  %5136 = vmatprep.subr.bf16.mxu0 0
  %5137 = vmatpush1.bf16.msra.mxu0 %v5108
  %5138 = vmatprep.subr.bf16.mxu0 0
  %5139 = vmatpush2.bf16.msra.mxu0 0
  %5140 = vmatprep.subr.bf16.mxu0 0
  %5141 = vmatpush2.bf16.msra.mxu0 0
  %5142 = vmatprep.subr.bf16.mxu0 0
  %5143 = vmatpush2.bf16.msra.mxu0 0
  %5144 = vmatprep.subr.bf16.mxu0 0
  %5145 = vmatpush2.bf16.msra.mxu0 0
  %5146 = vmatprep.subr.bf16.mxu0 0
  %5147 = vmatpush2.bf16.msra.mxu0 0
  %5148 = vmatprep.subr.bf16.mxu0 0
  %5149 = vmatpush2.bf16.msra.mxu0 0
  %5150 = vmatprep.subr.bf16.mxu0 0
  %5151 = vmatpush2.bf16.msra.mxu0 0
  %5152 = vmatprep.subr.bf16.mxu0 0
  %5153 = vmatpush2.bf16.msra.mxu0 0
  %5154 = vmatprep.mubr.bf16.mxu0 0
  %5155 = vmatmul.mubr.bf16.gmra.mxu0 %v5114
  %v5156 = vpop.f32.mrf.mxu0
  %v5157 = vadd.f32 0.0, %v5156
  %v5158 = vpop.f32.mrf.mxu0
  %v5159 = vpop.f32.mrf.mxu0
  %v5160 = vadd.f32 0.0, %v5159
  %v5161 = vpop.f32.mrf.mxu0
  %5162 = vmatprep.mubr.bf16.mxu0 0
  %5163 = vmatmul.mubr.bf16.gmra.mxu0 %v5117
  %v5164 = vpop.f32.mrf.mxu0
  %v5165 = vadd.f32 0.0, %v5164
  %v5166 = vpop.f32.mrf.mxu0
  %v5167 = vpop.f32.mrf.mxu0
  %v5168 = vadd.f32 0.0, %v5167
  %v5169 = vpop.f32.mrf.mxu0
  %5170 = vmatprep.mubr.bf16.mxu0 0
  %5171 = vmatmul.mubr.bf16.gmra.mxu0 %v5120
  %v5172 = vpop.f32.mrf.mxu0
  %v5173 = vadd.f32 0.0, %v5172
  %v5174 = vpop.f32.mrf.mxu0
  %v5175 = vpop.f32.mrf.mxu0
  %v5176 = vadd.f32 0.0, %v5175
  %v5177 = vpop.f32.mrf.mxu0
  %5178 = vdwg.mxu0
  %v5179 = vsel %vm180, %v5157, 0.0
  %v5180 = vsel %vm180, %v5160, 0.0
  %v5181 = vadd.f32 %v5179, %v5180
  %v5182 = vrot.slane %v5181, 4
  %v5183 = vadd.f32 %v5181, %v5182
  %v5184 = vrot.slane %v5183, 2
  %v5185 = vadd.f32 %v5183, %v5184
  %v5186 = vrot.slane %v5185, 1
  %v5187 = vadd.f32 %v5185, %v5186
  %v5188 = vmul.f32 %v5187, %v2563
  %v5189 = vsel %vm180, %v5165, 0.0
  %v5190 = vsel %vm180, %v5168, 0.0
  %v5191 = vadd.f32 %v5189, %v5190
  %v5192 = vrot.slane %v5191, 4
  %v5193 = vadd.f32 %v5191, %v5192
  %v5194 = vrot.slane %v5193, 2
  %v5195 = vadd.f32 %v5193, %v5194
  %v5196 = vrot.slane %v5195, 1
  %v5197 = vadd.f32 %v5195, %v5196
  %v5198 = vmul.f32 %v5197, %v2563
  %v5199 = vsel %vm180, %v5173, 0.0
  %v5200 = vsel %vm180, %v5176, 0.0
  %v5201 = vadd.f32 %v5199, %v5200
  %v5202 = vrot.slane %v5201, 4
  %v5203 = vadd.f32 %v5201, %v5202
  %v5204 = vrot.slane %v5203, 2
  %v5205 = vadd.f32 %v5203, %v5204
  %v5206 = vrot.slane %v5205, 1
  %v5207 = vadd.f32 %v5205, %v5206
  %v5208 = vmul.f32 %v5207, %v2563
  %v5209 = vmax.f32 %v5188, %v5198
  %v5210 = vmax.f32 %v5209, %v5208
  %v5211 = vsub.f32 %v5188, %v5210
  %v5212 = vmul.f32 %v5211, 1.442695
  %v5213 = vpow.pop %v5212
  %v5214 = vsub.f32 %v5198, %v5210
  %v5215 = vmul.f32 %v5214, 1.442695
  %v5216 = vpow.pop %v5215
  %v5217 = vsub.f32 %v5208, %v5210
  %v5218 = vmul.f32 %v5217, 1.442695
  %v5219 = vpow.pop %v5218
  %v5220 = vadd.f32 %v5213, %v5216
  %v5221 = vadd.f32 %v5220, %v5219
  %v5222 = vrcp.pop %v5221
  %v5223 = vmul.f32 %v5213, %v5222
  %v5224 = vsel %vm2600, %v5223, 0.0
  %5225 = vadd.xlane.f32.xlu0 %v5224
  %v5226 = vpop.xlane.xlu0 %5225
  %v5227 = vmul.f32 %v4966, %v5226
  %v5228 = vmul.f32 %v4967, %v5226
  %v5229 = vadd.f32 %v5227, 0.0
  %v5230 = vadd.f32 %v5228, 0.0
  %v5231 = vmul.f32 %v5216, %v5222
  %v5232 = vsel %vm2600, %v5231, 0.0
  %5233 = vadd.xlane.f32.xlu0 %v5232
  %v5234 = vpop.xlane.xlu0 %5233
  %v5235 = vmul.f32 %v4968, %v5234
  %v5236 = vmul.f32 %v4969, %v5234
  %v5237 = vadd.f32 %v5229, %v5235
  %v5238 = vadd.f32 %v5230, %v5236
  %v5239 = vmul.f32 %v5219, %v5222
  %v5240 = vsel %vm2600, %v5239, 0.0
  %5241 = vadd.xlane.f32.xlu0 %v5240
  %v5242 = vpop.xlane.xlu0 %5241
  %v5243 = vmul.f32 %v4970, %v5242
  %v5244 = vmul.f32 %v4971, %v5242
  %v5245 = vadd.f32 %v5237, %v5243
  %v5246 = vadd.f32 %v5238, %v5244
  %v5247 = vmul.f32 %v5245, 0.5
  %v5248 = vmul.f32 %v5246, 0.5
  %vm5249 = vcmp.ge.f32.partialorder %v5247, 0.0
  %vm5250 = vcmp.ge.f32.partialorder %v5248, 0.0
  %v5251 = vmul.f32 %v5247, 0.01
  %v5252 = vmul.f32 %v5248, 0.01
  %v5253 = vsel %vm5249, %v5247, %v5251
  %v5254 = vsel %vm5250, %v5248, %v5252
  %v5255 = vpack.c.bf16 %v5254, %v5253
  %v5256 = vunpack.c.l.bf16 %v56
  %v5257 = vlaneseq
  %v5258 = vshrl.u32 %v5257, 7
  %v5259 = vsub.s32 4, %v5258
  %v5260 = vrot.slane %v5256, %v5259
  %v5265 = vunpack.c.l.b16 %v53
  %v5266 = vunpack.c.l.b16 %v54
  %v5267 = vunpack.c.l.b16 %v55
  %v5268 = vunpack.c.l.b16 %v56
  %v5269 = vpack.c.b16 %v5265, %v5101
  %v5270 = vpack.c.b16 %v5267, %v5266
  %v5271 = vpack.c.b16 %v5268, %v5268
  %v5272 = vrot.slane %v5269, 2
  %v5273 = vrot.slane %v5270, 2
  %v5274 = vsel %vm5105, %v5272, %v5273
  %v5275 = vrot.slane %v5271, 2
  %v5276 = vsel %vm5105, %v5273, %v5275
  %v5280 = vsel %vm180, %v5255, 0
  %5282 = vmatprep.subr.bf16.mxu0 0
  %5283 = vmatpush1.bf16.msra.mxu0 0
  %5284 = vmatprep.subr.bf16.mxu0 0
  %5285 = vmatpush1.bf16.msra.mxu0 0
  %5286 = vmatprep.subr.bf16.mxu0 0
  %5287 = vmatpush1.bf16.msra.mxu0 0
  %5288 = vmatprep.subr.bf16.mxu0 0
  %5289 = vmatpush1.bf16.msra.mxu0 0
  %5290 = vmatprep.subr.bf16.mxu0 0
  %5291 = vmatpush1.bf16.msra.mxu0 0
  %5292 = vmatprep.subr.bf16.mxu0 0
  %5293 = vmatpush1.bf16.msra.mxu0 0
  %5294 = vmatprep.subr.bf16.mxu0 0
  %5295 = vmatpush1.bf16.msra.mxu0 %v5276
  %5296 = vmatprep.subr.bf16.mxu0 0
  %5297 = vmatpush1.bf16.msra.mxu0 %v5274
  %5298 = vmatprep.subr.bf16.mxu0 0
  %5299 = vmatpush2.bf16.msra.mxu0 0
  %5300 = vmatprep.subr.bf16.mxu0 0
  %5301 = vmatpush2.bf16.msra.mxu0 0
  %5302 = vmatprep.subr.bf16.mxu0 0
  %5303 = vmatpush2.bf16.msra.mxu0 0
  %5304 = vmatprep.subr.bf16.mxu0 0
  %5305 = vmatpush2.bf16.msra.mxu0 0
  %5306 = vmatprep.subr.bf16.mxu0 0
  %5307 = vmatpush2.bf16.msra.mxu0 0
  %5308 = vmatprep.subr.bf16.mxu0 0
  %5309 = vmatpush2.bf16.msra.mxu0 0
  %5310 = vmatprep.subr.bf16.mxu0 0
  %5311 = vmatpush2.bf16.msra.mxu0 0
  %5312 = vmatprep.subr.bf16.mxu0 0
  %5313 = vmatpush2.bf16.msra.mxu0 0
  %5314 = vmatprep.mubr.bf16.mxu0 0
  %5315 = vmatmul.mubr.bf16.gmra.mxu0 %v5280
  %v5316 = vpop.f32.mrf.mxu0
  %v5317 = vadd.f32 %v5260, %v5316
  %v5318 = vpop.f32.mrf.mxu0
  %v5319 = vpop.f32.mrf.mxu0
  %v5320 = vadd.f32 %v5260, %v5319
  %v5321 = vpop.f32.mrf.mxu0
  %5322 = vdwg.mxu0
  %vm5323 = vcmp.ge.f32.partialorder %v5317, 0.0
  %vm5324 = vcmp.ge.f32.partialorder %v5320, 0.0
  %v5325 = vmul.f32 %v5317, 0.01
  %v5326 = vmul.f32 %v5320, 0.01
  %v5327 = vsel %vm5323, %v5317, %v5325
  %v5328 = vsel %vm5324, %v5320, %v5326
  %v5329 = vpack.c.bf16 %v5328, %v5327
  %v5330 = vunpack.c.l.bf16 %v60
  %v5331 = vlaneseq
  %v5332 = vshrl.u32 %v5331, 7
  %v5333 = vsub.s32 5, %v5332
  %v5334 = vrot.slane %v5330, %v5333
  %v5339 = vunpack.c.l.b16 %v57
  %v5340 = vunpack.c.l.b16 %v58
  %v5341 = vunpack.c.l.b16 %v59
  %v5342 = vunpack.c.l.b16 %v60
  %v5343 = vpack.c.b16 %v5339, %v5268
  %v5344 = vpack.c.b16 %v5341, %v5340
  %v5345 = vpack.c.b16 %v5342, %v5342
  %vm5346 = vsmask.f32 5376
  %v5348 = vshrl.u32 %v5343, 16
  %v5350 = vrot.slane %v5348, 2
  %v5351 = vshll.u32 %v5343, 16
  %v5353 = vrot.slane %v5351, 3
  %v5354 = vor.u32 %v5350, %v5353
  %v5356 = vshrl.u32 %v5344, 16
  %v5358 = vrot.slane %v5356, 2
  %v5359 = vshll.u32 %v5344, 16
  %v5361 = vrot.slane %v5359, 3
  %v5362 = vor.u32 %v5358, %v5361
  %v5363 = vsel %vm5346, %v5354, %v5362
  %v5365 = vshrl.u32 %v5345, 16
  %v5367 = vrot.slane %v5365, 2
  %v5368 = vshll.u32 %v5345, 16
  %v5370 = vrot.slane %v5368, 3
  %v5371 = vor.u32 %v5367, %v5370
  %v5372 = vsel %vm5346, %v5362, %v5371
  %v5376 = vsel %vm180, %v5329, 0
  %5378 = vmatprep.subr.bf16.mxu0 0
  %5379 = vmatpush1.bf16.msra.mxu0 0
  %5380 = vmatprep.subr.bf16.mxu0 0
  %5381 = vmatpush1.bf16.msra.mxu0 0
  %5382 = vmatprep.subr.bf16.mxu0 0
  %5383 = vmatpush1.bf16.msra.mxu0 0
  %5384 = vmatprep.subr.bf16.mxu0 0
  %5385 = vmatpush1.bf16.msra.mxu0 0
  %5386 = vmatprep.subr.bf16.mxu0 0
  %5387 = vmatpush1.bf16.msra.mxu0 0
  %5388 = vmatprep.subr.bf16.mxu0 0
  %5389 = vmatpush1.bf16.msra.mxu0 0
  %5390 = vmatprep.subr.bf16.mxu0 0
  %5391 = vmatpush1.bf16.msra.mxu0 %v5372
  %5392 = vmatprep.subr.bf16.mxu0 0
  %5393 = vmatpush1.bf16.msra.mxu0 %v5363
  %5394 = vmatprep.subr.bf16.mxu0 0
  %5395 = vmatpush2.bf16.msra.mxu0 0
  %5396 = vmatprep.subr.bf16.mxu0 0
  %5397 = vmatpush2.bf16.msra.mxu0 0
  %5398 = vmatprep.subr.bf16.mxu0 0
  %5399 = vmatpush2.bf16.msra.mxu0 0
  %5400 = vmatprep.subr.bf16.mxu0 0
  %5401 = vmatpush2.bf16.msra.mxu0 0
  %5402 = vmatprep.subr.bf16.mxu0 0
  %5403 = vmatpush2.bf16.msra.mxu0 0
  %5404 = vmatprep.subr.bf16.mxu0 0
  %5405 = vmatpush2.bf16.msra.mxu0 0
  %5406 = vmatprep.subr.bf16.mxu0 0
  %5407 = vmatpush2.bf16.msra.mxu0 0
  %5408 = vmatprep.subr.bf16.mxu0 0
  %5409 = vmatpush2.bf16.msra.mxu0 0
  %5410 = vmatprep.mubr.bf16.mxu0 0
  %5411 = vmatmul.mubr.bf16.gmra.mxu0 %v5376
  %v5412 = vpop.f32.mrf.mxu0
  %v5413 = vadd.f32 %v5334, %v5412
  %v5414 = vpop.f32.mrf.mxu0
  %v5415 = vpop.f32.mrf.mxu0
  %v5416 = vadd.f32 %v5334, %v5415
  %v5417 = vpop.f32.mrf.mxu0
  %5418 = vdwg.mxu0
  %5419 = vst.msk [vmem:[%s4] sm:$0xff] %vm2600, %v5413
  %5420 = vst.msk [vmem:[%s4 + $0x8] sm:$0xff] %vm2600, %v5416
  // Predicated region
  $region18: #{rgt_forward.1} parent=0 // pred_check
    _
  $region19: #{rgt_forward.1} parent=0 // pred_check_branch
    %5422 = sbr.rel (0) target = $region21
  $region20: #{rgt_forward.1} parent=0 // pred_region
    _
  $region21: #{rgt_forward.1} parent=0 // pred_fallthru
    _
  // Predicated region
  $region22: #{rgt_forward.1} parent=0 // pred_check
    _
  $region23: #{rgt_forward.1} parent=0 // pred_check_branch
    %5424 = sbr.rel (0) target = $region25
  $region24: #{rgt_forward.1} parent=0 // pred_region
    _
  $region25: #{rgt_forward.1} parent=0 // pred_fallthru
    _

</llo_original>
